<compile_context>
chip_gen: v7x
topology: tpu7x:2x2x1
jax: 0.10.0
libtpu: 0.0.40
codegen_flags: <defaults>
</compile_context>

<pallas_src>
import functools

import jax
import jax.numpy as jnp
from jax.experimental import pallas as pl
from jax.experimental.pallas import tpu as pltpu


def _vmem_limit_bytes():
    # Generation-aware scoped-VMEM limit: ~3/4 of physical, capped at 100 MiB
    # (=> ~96-100 MiB on 128 MiB v5e/v6e, 48 MiB on 64 MiB-per-TC v7x).
    try:
        cap = pltpu.get_tpu_info().vmem_capacity_bytes
        return int(min(100 * 1024 * 1024, cap * 3 // 4))
    except Exception:
        return 48 * 1024 * 1024


def _fold_bn(gamma, beta, mean, var, eps=1e-5):
    scale = gamma / jnp.sqrt(var + eps)
    bias = beta - mean * scale
    return scale, bias


# ---------------------------------------------------------------------------
# Fused Bottleneck kernel: one image per grid step, everything in VMEM.
# ---------------------------------------------------------------------------
def _bottleneck_kernel(x_ref, w1_ref, s1_ref, b1_ref, w2_ref, s2_ref, b2_ref,
                       w3_ref, s3_ref, b3_ref, o_ref, *, H, W, d, chunk):
    # x:  (1, H*W, Cin)  bf16   (also the residual; Cin == Cout)
    # w1: (Cin, width)   bf16
    # w2: (9*width, width) bf16  rows ordered [ky*3+kx, cin]
    # w3: (width, Cout)  bf16
    # s*/b*: (1, C) f32 folded BatchNorm scale/bias
    HW = H * W
    width = w1_ref.shape[1]

    x = x_ref[0]                                              # (HW, Cin) bf16

    # --- conv1 (1x1) + bn1 + relu -------------------------------------------
    h1 = jnp.dot(x, w1_ref[...], preferred_element_type=jnp.float32)
    h1 = jnp.maximum(h1 * s1_ref[...] + b1_ref[...], 0.0).astype(jnp.bfloat16)

    # --- column-shifted (kx) variants of h1, zeroed at horizontal borders ----
    col = jax.lax.broadcasted_iota(jnp.int32, (HW, 1), 0) % W

    def col_shift(dx):
        if dx == 0:
            return h1
        if dx > 0:
            shifted = jnp.concatenate(
                [h1[dx:], jnp.zeros((dx, width), h1.dtype)], axis=0)
            mask = col < (W - dx)
        else:
            shifted = jnp.concatenate(
                [jnp.zeros((-dx, width), h1.dtype), h1[:dx]], axis=0)
            mask = col >= (-dx)
        return jnp.where(mask, shifted, jnp.zeros_like(shifted))

    h1_cols = [col_shift((kx - 1) * d) for kx in range(3)]

    def row_window(a, r, c0, c1):
        # a[c0+r : c1+r] with zero fill outside [0, HW)  (all offsets static).
        lo, hi = c0 + r, c1 + r
        lo_c, hi_c = max(lo, 0), min(hi, HW)
        parts = []
        if lo_c > lo:
            parts.append(jnp.zeros((lo_c - lo, width), a.dtype))
        if hi_c > lo_c:
            parts.append(a[lo_c:hi_c])
        if hi > hi_c:
            parts.append(jnp.zeros((hi - hi_c, width), a.dtype))
        return parts[0] if len(parts) == 1 else jnp.concatenate(parts, axis=0)

    # --- conv2 (3x3) + bn2 + relu + conv3 (1x1) + bn3 + residual + relu ------
    # Row-chunked so lhs/accumulators stay bounded; 3x3 conv is ONE matmul with
    # the contraction over all 9 taps (K = 9*width).
    for c0 in range(0, HW, chunk):
        c1 = min(c0 + chunk, HW)
        taps = []
        for ky in range(3):
            r = (ky - 1) * d * W
            for kx in range(3):
                taps.append(row_window(h1_cols[kx], r, c0, c1))
        lhs = jnp.concatenate(taps, axis=1)                   # (rows, 9*width) bf16
        acc = jnp.dot(lhs, w2_ref[...], preferred_element_type=jnp.float32)
        h2 = jnp.maximum(acc * s2_ref[...] + b2_ref[...], 0.0).astype(jnp.bfloat16)
        y = jnp.dot(h2, w3_ref[...], preferred_element_type=jnp.float32)
        y = y * s3_ref[...] + b3_ref[...] + x[c0:c1].astype(jnp.float32)
        o_ref[0, pl.ds(c0, c1 - c0), :] = jnp.maximum(y, 0.0).astype(o_ref.dtype)


# ---------------------------------------------------------------------------
# Bottleneck forward wrapper
# ---------------------------------------------------------------------------
def bottleneck_forward(x_nchw, params, stride=1, dilation=1, row_chunk=512):
    """x_nchw: (N, Cin, H, W) f32. Identity-shortcut Bottleneck (downsample=None)."""
    if stride != 1:
        raise NotImplementedError("stride>1 needs the downsample path")  # TODO(synk)
    N, Cin, H, W = x_nchw.shape
    d = dilation

    w1 = params["w1"]                                  # (width, Cin, 1, 1)
    w2 = params["w2"]                                  # (width, width, 3, 3)
    w3 = params["w3"]                                  # (Cout, width, 1, 1)
    width = w1.shape[0]
    Cout = w3.shape[0]
    if Cin != Cout:
        raise NotImplementedError("identity shortcut requires Cin == 4*planes")  # TODO(synk)

    HW = H * W
    chunk = min(row_chunk, HW)
    if HW > 16:
        chunk = max(16, (chunk // 16) * 16)            # sublane-friendly bf16 chunk rows

    # Single NHWC+bf16 materialization of x; the kernel reads it once (conv1
    # input AND residual). TODO(synk): stay NHWC/bf16 across chained blocks.
    x2d = jnp.transpose(x_nchw, (0, 2, 3, 1)).astype(jnp.bfloat16).reshape(N, HW, Cin)

    # Weight / BN prep (tiny; jit constants in practice).
    w1_2d = jnp.transpose(w1[:, :, 0, 0], (1, 0)).astype(jnp.bfloat16)             # (Cin, width)
    w2_cat = jnp.transpose(w2, (2, 3, 1, 0)).reshape(9 * width, width)             # [(ky*3+kx)*width+ci, co]
    w2_cat = w2_cat.astype(jnp.bfloat16)
    w3_2d = jnp.transpose(w3[:, :, 0, 0], (1, 0)).astype(jnp.bfloat16)             # (width, Cout)
    s1, b1 = _fold_bn(*params["bn1"])
    s2, b2 = _fold_bn(*params["bn2"])
    s3, b3 = _fold_bn(*params["bn3"])
    s1 = s1.reshape(1, width).astype(jnp.float32); b1 = b1.reshape(1, width).astype(jnp.float32)
    s2 = s2.reshape(1, width).astype(jnp.float32); b2 = b2.reshape(1, width).astype(jnp.float32)
    s3 = s3.reshape(1, Cout).astype(jnp.float32);  b3 = b3.reshape(1, Cout).astype(jnp.float32)

    kernel = functools.partial(_bottleneck_kernel, H=H, W=W, d=d, chunk=chunk)
    const2 = lambda n: (0, 0)

    out = pl.pallas_call(
        kernel,
        out_shape=jax.ShapeDtypeStruct((N, HW, Cout), jnp.bfloat16),
        grid_spec=pltpu.PrefetchScalarGridSpec(
            num_scalar_prefetch=0,
            grid=(N,),
            in_specs=[
                pl.BlockSpec((1, HW, Cin), lambda n: (n, 0, 0)),   # x / residual
                pl.BlockSpec((Cin, width), const2),                # w1 (resident)
                pl.BlockSpec((1, width), const2),                  # bn1 scale
                pl.BlockSpec((1, width), const2),                  # bn1 bias
                pl.BlockSpec((9 * width, width), const2),          # w2 (K-concat)
                pl.BlockSpec((1, width), const2),                  # bn2 scale
                pl.BlockSpec((1, width), const2),                  # bn2 bias
                pl.BlockSpec((width, Cout), const2),               # w3
                pl.BlockSpec((1, Cout), const2),                   # bn3 scale
                pl.BlockSpec((1, Cout), const2),                   # bn3 bias
            ],
            out_specs=pl.BlockSpec((1, HW, Cout), lambda n: (n, 0, 0)),
        ),
        compiler_params=pltpu.CompilerParams(
            dimension_semantics=("parallel",),
            vmem_limit_bytes=_vmem_limit_bytes()),
    )(x2d, w1_2d, s1, b1, w2_cat, s2, b2, w3_2d, s3, b3)

    out = out.reshape(N, H, W, Cout)
    return jnp.transpose(out, (0, 3, 1, 2)).astype(jnp.float32)   # back to NCHW f32


# ---------------------------------------------------------------------------
# Deterministic parameter init (synthetic; matches module __init__ shapes)
# ---------------------------------------------------------------------------
def init_params(key, inplanes, planes, base_width=64, groups=1):
    width = int(planes * (base_width / 64.0)) * groups
    cout = planes * 4
    ks = jax.random.split(key, 9)

    def bn(kg, kb, c):
        gamma = 1.0 + 0.1 * jax.random.normal(kg, (c,), jnp.float32)
        beta = 0.1 * jax.random.normal(kb, (c,), jnp.float32)
        mean = 0.05 * jnp.arange(c, dtype=jnp.float32)
        var = 1.0 + 0.01 * jnp.arange(c, dtype=jnp.float32)
        return gamma, beta, mean, var

    return {
        "w1": 0.1 * jax.random.normal(ks[0], (width, inplanes, 1, 1), jnp.float32),
        "w2": 0.1 * jax.random.normal(ks[1], (width, width, 3, 3), jnp.float32),
        "w3": 0.1 * jax.random.normal(ks[2], (cout, width, 1, 1), jnp.float32),
        "bn1": bn(ks[3], ks[4], width),
        "bn2": bn(ks[5], ks[6], width),
        "bn3": bn(ks[7], ks[8], cout),
    }


# ---------------------------------------------------------------------------
# Pure-JAX reference (mimics the kernel's bf16 cast points when mimic_bf16=True)
# ---------------------------------------------------------------------------
def bottleneck_reference(x_nchw, params, stride=1, dilation=1, mimic_bf16=True):
    cast = (lambda a: a.astype(jnp.bfloat16)) if mimic_bf16 else (lambda a: a)

    def conv(x, w, st, pad, dil):
        return jax.lax.conv_general_dilated(
            cast(x), cast(w), window_strides=(st, st),
            padding=[(pad, pad), (pad, pad)], rhs_dilation=(dil, dil),
            dimension_numbers=("NCHW", "OIHW", "NCHW"),
            preferred_element_type=jnp.float32)

    def bn(x, p):
        g, b, m, v = p
        sh = (1, -1, 1, 1)
        return (x - m.reshape(sh)) / jnp.sqrt(v.reshape(sh) + 1e-5) * g.reshape(sh) + b.reshape(sh)

    h1 = jax.nn.relu(bn(conv(x_nchw, params["w1"], 1, 0, 1), params["bn1"]))
    h2 = jax.nn.relu(bn(conv(h1, params["w2"], stride, dilation, dilation), params["bn2"]))
    identity = cast(x_nchw).astype(jnp.float32) if mimic_bf16 else x_nchw
    y = bn(conv(h2, params["w3"], 1, 0, 1), params["bn3"]) + identity
    out = jax.nn.relu(y)
    if mimic_bf16:
        out = out.astype(jnp.bfloat16).astype(jnp.float32)
    return out


if __name__ == "__main__":
    key = jax.random.PRNGKey(0)
    k_x, k_p = jax.random.split(key)

    # Small shapes consistent with Bottleneck (identity shortcut => inplanes = 4*planes).
    # planes=32 -> width=32, Cout=128: x/out last dim lane-dense; row_chunk=128
    # exercises the chunked epilogue path (HW=256 -> 2 chunks per image).
    N, planes, H, W = 2, 32, 16, 16
    inplanes = planes * 4
    x = jax.random.normal(k_x, (N, inplanes, H, W), jnp.float32)
    params = init_params(k_p, inplanes, planes)

    fwd = jax.jit(functools.partial(bottleneck_forward, stride=1, dilation=1,
                                    row_chunk=128))
    out = fwd(x, params)
    jax.block_until_ready(out)

    ref = bottleneck_reference(x, params, stride=1, dilation=1, mimic_bf16=True)
    assert out.shape == (N, planes * 4, H, W), out.shape
    max_err = float(jnp.max(jnp.abs(out - ref)))
    assert jnp.allclose(out, ref, atol=1e-2, rtol=1e-2), max_err

    print("KERNEL_OK")
</pallas_src>

<mosaic_0001>
module attributes {stable_mosaic.version = 11 : i64} {
  func.func @_bottleneck_kernel(%arg0: i32, %arg1: memref<1x256x128xbf16, #tpu.memory_space<vmem>>, %arg2: memref<128x32xbf16, #tpu.memory_space<vmem>>, %arg3: memref<1x32xf32, #tpu.memory_space<vmem>>, %arg4: memref<1x32xf32, #tpu.memory_space<vmem>>, %arg5: memref<288x32xbf16, #tpu.memory_space<vmem>>, %arg6: memref<1x32xf32, #tpu.memory_space<vmem>>, %arg7: memref<1x32xf32, #tpu.memory_space<vmem>>, %arg8: memref<32x128xbf16, #tpu.memory_space<vmem>>, %arg9: memref<1x128xf32, #tpu.memory_space<vmem>>, %arg10: memref<1x128xf32, #tpu.memory_space<vmem>>, %arg11: memref<1x256x128xbf16, #tpu.memory_space<vmem>>) attributes {dimension_semantics = [#tpu.dimension_semantics<parallel>], iteration_bounds = array<i64: 2>, scalar_prefetch = 0 : i64, scratch_operands = 0 : i64, tpu.core_type = #tpu.core_type<tc>, window_params = [{transform_indices = @transform_0, window_bounds = array<i64: 1, 256, 128>}, {pipeline_mode = #tpu.pipeline_mode<synchronous>, transform_indices = @transform_1, window_bounds = array<i64: 128, 32>}, {pipeline_mode = #tpu.pipeline_mode<synchronous>, transform_indices = @transform_2, window_bounds = array<i64: 1, 32>}, {pipeline_mode = #tpu.pipeline_mode<synchronous>, transform_indices = @transform_3, window_bounds = array<i64: 1, 32>}, {pipeline_mode = #tpu.pipeline_mode<synchronous>, transform_indices = @transform_4, window_bounds = array<i64: 288, 32>}, {pipeline_mode = #tpu.pipeline_mode<synchronous>, transform_indices = @transform_5, window_bounds = array<i64: 1, 32>}, {pipeline_mode = #tpu.pipeline_mode<synchronous>, transform_indices = @transform_6, window_bounds = array<i64: 1, 32>}, {pipeline_mode = #tpu.pipeline_mode<synchronous>, transform_indices = @transform_7, window_bounds = array<i64: 32, 128>}, {pipeline_mode = #tpu.pipeline_mode<synchronous>, transform_indices = @transform_8, window_bounds = array<i64: 1, 128>}, {pipeline_mode = #tpu.pipeline_mode<synchronous>, transform_indices = @transform_9, window_bounds = array<i64: 1, 128>}, {transform_indices = @transform_10, window_bounds = array<i64: 1, 256, 128>}]} {
    %c0 = arith.constant 0 : index
    %c0_0 = arith.constant 0 : index
    %c0_1 = arith.constant 0 : index
    %0 = vector.load %arg1[%c0, %c0_0, %c0_1] : memref<1x256x128xbf16, #tpu.memory_space<vmem>>, vector<1x256x128xbf16>
    %1 = vector.shape_cast %0 : vector<1x256x128xbf16> to vector<256x128xbf16>
    %c0_2 = arith.constant 0 : index
    %c0_3 = arith.constant 0 : index
    %2 = vector.load %arg2[%c0_2, %c0_3] : memref<128x32xbf16, #tpu.memory_space<vmem>>, vector<128x32xbf16>
    %cst = arith.constant dense<0.000000e+00> : vector<256x32xf32>
    %3 = tpu.matmul %1, %2, %cst {dimension_numbers = #tpu.dot_dimension_numbers<[1], [0], [0], [1], [0, 0, 1, 1], [], []>} : vector<256x128xbf16>, vector<128x32xbf16>, vector<256x32xf32> -> vector<256x32xf32>
    %c0_4 = arith.constant 0 : index
    %c0_5 = arith.constant 0 : index
    %4 = vector.load %arg3[%c0_4, %c0_5] : memref<1x32xf32, #tpu.memory_space<vmem>>, vector<1x32xf32>
    %5 = vector.broadcast %4 : vector<1x32xf32> to vector<256x32xf32>
    %6 = arith.mulf %3, %5 : vector<256x32xf32>
    %c0_6 = arith.constant 0 : index
    %c0_7 = arith.constant 0 : index
    %7 = vector.load %arg4[%c0_6, %c0_7] : memref<1x32xf32, #tpu.memory_space<vmem>>, vector<1x32xf32>
    %8 = vector.broadcast %7 : vector<1x32xf32> to vector<256x32xf32>
    %9 = arith.addf %6, %8 : vector<256x32xf32>
    %cst_8 = arith.constant 0.000000e+00 : f32
    %10 = vector.broadcast %cst_8 : f32 to vector<256x32xf32>
    %11 = arith.maximumf %9, %10 : vector<256x32xf32>
    %12 = arith.truncf %11 : vector<256x32xf32> to vector<256x32xbf16>
    %13 = tpu.iota {dimensions = array<i32: 0>} : vector<256x1xi32>
    %c16_i32 = arith.constant 16 : i32
    %c0_i32 = arith.constant 0 : i32
    %14 = arith.cmpi eq, %c16_i32, %c0_i32 : i32
    %c1_i32 = arith.constant 1 : i32
    %15 = arith.select %14, %c1_i32, %c16_i32 : i32
    %16 = vector.broadcast %15 : i32 to vector<256x1xi32>
    %17 = arith.remsi %13, %16 : vector<256x1xi32>
    %c0_i32_9 = arith.constant 0 : i32
    %18 = vector.broadcast %c0_i32_9 : i32 to vector<256x1xi32>
    %19 = arith.cmpi ne, %17, %18 : vector<256x1xi32>
    %c0_i32_10 = arith.constant 0 : i32
    %20 = vector.broadcast %c0_i32_10 : i32 to vector<256x1xi32>
    %21 = arith.cmpi slt, %17, %20 : vector<256x1xi32>
    %c0_i32_11 = arith.constant 0 : i32
    %22 = arith.cmpi slt, %15, %c0_i32_11 : i32
    %23 = vector.broadcast %22 : i1 to vector<256x1xi1>
    %24 = vector.broadcast %23 : vector<256x1xi1> to vector<256x1xi1>
    %25 = arith.xori %21, %24 : vector<256x1xi1>
    %26 = arith.andi %25, %19 : vector<256x1xi1>
    %27 = vector.broadcast %15 : i32 to vector<256x1xi32>
    %28 = arith.addi %17, %27 : vector<256x1xi32>
    %29 = arith.select %26, %28, %17 : vector<256x1xi1>, vector<256x1xi32>
    %cst_12 = arith.constant 0.000000e+00 : bf16
    %30 = vector.broadcast %cst_12 : bf16 to vector<1x32xbf16>
    %31 = vector.extract_strided_slice %12 {offsets = [0, 0], sizes = [255, 32], strides = [1, 1]} : vector<256x32xbf16> to vector<255x32xbf16>
    %32 = tpu.concatenate %30, %31 in 0 : vector<1x32xbf16>, vector<255x32xbf16> -> vector<256x32xbf16>
    %c1_i32_13 = arith.constant 1 : i32
    %33 = vector.broadcast %c1_i32_13 : i32 to vector<256x1xi32>
    %34 = arith.cmpi sge, %29, %33 : vector<256x1xi32>
    %cst_14 = arith.constant 0.000000e+00 : bf16
    %35 = vector.broadcast %cst_14 : bf16 to vector<256x32xbf16>
    %36 = vector.shape_cast %34 : vector<256x1xi1> to vector<256x1xi1>
    %37 = vector.broadcast %36 : vector<256x1xi1> to vector<256x32xi1>
    %38 = arith.select %37, %32, %35 : vector<256x32xi1>, vector<256x32xbf16>
    %39 = vector.extract_strided_slice %12 {offsets = [1, 0], sizes = [255, 32], strides = [1, 1]} : vector<256x32xbf16> to vector<255x32xbf16>
    %cst_15 = arith.constant 0.000000e+00 : bf16
    %40 = vector.broadcast %cst_15 : bf16 to vector<1x32xbf16>
    %41 = tpu.concatenate %39, %40 in 0 : vector<255x32xbf16>, vector<1x32xbf16> -> vector<256x32xbf16>
    %c15_i32 = arith.constant 15 : i32
    %42 = vector.broadcast %c15_i32 : i32 to vector<256x1xi32>
    %43 = arith.cmpi slt, %29, %42 : vector<256x1xi32>
    %cst_16 = arith.constant 0.000000e+00 : bf16
    %44 = vector.broadcast %cst_16 : bf16 to vector<256x32xbf16>
    %45 = vector.shape_cast %43 : vector<256x1xi1> to vector<256x1xi1>
    %46 = vector.broadcast %45 : vector<256x1xi1> to vector<256x32xi1>
    %47 = arith.select %46, %41, %44 : vector<256x32xi1>, vector<256x32xbf16>
    %cst_17 = arith.constant 0.000000e+00 : bf16
    %48 = vector.broadcast %cst_17 : bf16 to vector<16x32xbf16>
    %49 = vector.extract_strided_slice %38 {offsets = [0, 0], sizes = [112, 32], strides = [1, 1]} : vector<256x32xbf16> to vector<112x32xbf16>
    %50 = tpu.concatenate %48, %49 in 0 : vector<16x32xbf16>, vector<112x32xbf16> -> vector<128x32xbf16>
    %cst_18 = arith.constant 0.000000e+00 : bf16
    %51 = vector.broadcast %cst_18 : bf16 to vector<16x32xbf16>
    %52 = vector.extract_strided_slice %12 {offsets = [0, 0], sizes = [112, 32], strides = [1, 1]} : vector<256x32xbf16> to vector<112x32xbf16>
    %53 = tpu.concatenate %51, %52 in 0 : vector<16x32xbf16>, vector<112x32xbf16> -> vector<128x32xbf16>
    %cst_19 = arith.constant 0.000000e+00 : bf16
    %54 = vector.broadcast %cst_19 : bf16 to vector<16x32xbf16>
    %55 = vector.extract_strided_slice %47 {offsets = [0, 0], sizes = [112, 32], strides = [1, 1]} : vector<256x32xbf16> to vector<112x32xbf16>
    %56 = tpu.concatenate %54, %55 in 0 : vector<16x32xbf16>, vector<112x32xbf16> -> vector<128x32xbf16>
    %57 = vector.extract_strided_slice %38 {offsets = [0, 0], sizes = [128, 32], strides = [1, 1]} : vector<256x32xbf16> to vector<128x32xbf16>
    %58 = vector.extract_strided_slice %12 {offsets = [0, 0], sizes = [128, 32], strides = [1, 1]} : vector<256x32xbf16> to vector<128x32xbf16>
    %59 = vector.extract_strided_slice %47 {offsets = [0, 0], sizes = [128, 32], strides = [1, 1]} : vector<256x32xbf16> to vector<128x32xbf16>
    %60 = vector.extract_strided_slice %38 {offsets = [16, 0], sizes = [128, 32], strides = [1, 1]} : vector<256x32xbf16> to vector<128x32xbf16>
    %61 = vector.extract_strided_slice %12 {offsets = [16, 0], sizes = [128, 32], strides = [1, 1]} : vector<256x32xbf16> to vector<128x32xbf16>
    %62 = vector.extract_strided_slice %47 {offsets = [16, 0], sizes = [128, 32], strides = [1, 1]} : vector<256x32xbf16> to vector<128x32xbf16>
    %63 = tpu.concatenate %50, %53, %56, %57, %58, %59, %60, %61, %62 in 1 : vector<128x32xbf16>, vector<128x32xbf16>, vector<128x32xbf16>, vector<128x32xbf16>, vector<128x32xbf16>, vector<128x32xbf16>, vector<128x32xbf16>, vector<128x32xbf16>, vector<128x32xbf16> -> vector<128x288xbf16>
    %c0_20 = arith.constant 0 : index
    %c0_21 = arith.constant 0 : index
    %64 = vector.load %arg5[%c0_20, %c0_21] : memref<288x32xbf16, #tpu.memory_space<vmem>>, vector<288x32xbf16>
    %cst_22 = arith.constant dense<0.000000e+00> : vector<128x32xf32>
    %65 = tpu.matmul %63, %64, %cst_22 {dimension_numbers = #tpu.dot_dimension_numbers<[1], [0], [0], [1], [0, 0, 1, 1], [], []>} : vector<128x288xbf16>, vector<288x32xbf16>, vector<128x32xf32> -> vector<128x32xf32>
    %c0_23 = arith.constant 0 : index
    %c0_24 = arith.constant 0 : index
    %66 = vector.load %arg6[%c0_23, %c0_24] : memref<1x32xf32, #tpu.memory_space<vmem>>, vector<1x32xf32>
    %67 = vector.broadcast %66 : vector<1x32xf32> to vector<128x32xf32>
    %68 = arith.mulf %65, %67 : vector<128x32xf32>
    %c0_25 = arith.constant 0 : index
    %c0_26 = arith.constant 0 : index
    %69 = vector.load %arg7[%c0_25, %c0_26] : memref<1x32xf32, #tpu.memory_space<vmem>>, vector<1x32xf32>
    %70 = vector.broadcast %69 : vector<1x32xf32> to vector<128x32xf32>
    %71 = arith.addf %68, %70 : vector<128x32xf32>
    %cst_27 = arith.constant 0.000000e+00 : f32
    %72 = vector.broadcast %cst_27 : f32 to vector<128x32xf32>
    %73 = arith.maximumf %71, %72 : vector<128x32xf32>
    %74 = arith.truncf %73 : vector<128x32xf32> to vector<128x32xbf16>
    %c0_28 = arith.constant 0 : index
    %c0_29 = arith.constant 0 : index
    %75 = vector.load %arg8[%c0_28, %c0_29] : memref<32x128xbf16, #tpu.memory_space<vmem>>, vector<32x128xbf16>
    %cst_30 = arith.constant dense<0.000000e+00> : vector<128x128xf32>
    %76 = tpu.matmul %74, %75, %cst_30 {dimension_numbers = #tpu.dot_dimension_numbers<[1], [0], [0], [1], [0, 0, 1, 1], [], []>} : vector<128x32xbf16>, vector<32x128xbf16>, vector<128x128xf32> -> vector<128x128xf32>
    %c0_31 = arith.constant 0 : index
    %c0_32 = arith.constant 0 : index
    %77 = vector.load %arg9[%c0_31, %c0_32] : memref<1x128xf32, #tpu.memory_space<vmem>>, vector<1x128xf32>
    %78 = vector.broadcast %77 : vector<1x128xf32> to vector<128x128xf32>
    %79 = arith.mulf %76, %78 : vector<128x128xf32>
    %c0_33 = arith.constant 0 : index
    %c0_34 = arith.constant 0 : index
    %80 = vector.load %arg10[%c0_33, %c0_34] : memref<1x128xf32, #tpu.memory_space<vmem>>, vector<1x128xf32>
    %81 = vector.broadcast %80 : vector<1x128xf32> to vector<128x128xf32>
    %82 = arith.addf %79, %81 : vector<128x128xf32>
    %83 = vector.extract_strided_slice %1 {offsets = [0, 0], sizes = [128, 128], strides = [1, 1]} : vector<256x128xbf16> to vector<128x128xbf16>
    %84 = arith.extf %83 : vector<128x128xbf16> to vector<128x128xf32>
    %85 = arith.addf %82, %84 : vector<128x128xf32>
    %cst_35 = arith.constant 0.000000e+00 : f32
    %86 = vector.broadcast %cst_35 : f32 to vector<128x128xf32>
    %87 = arith.maximumf %85, %86 : vector<128x128xf32>
    %88 = arith.truncf %87 : vector<128x128xf32> to vector<128x128xbf16>
    %c0_36 = arith.constant 0 : index
    %c0_37 = arith.constant 0 : index
    %c0_38 = arith.constant 0 : index
    %89 = vector.load %arg11[%c0_36, %c0_37, %c0_38] : memref<1x256x128xbf16, #tpu.memory_space<vmem>>, vector<1x128x128xbf16>
    %90 = vector.shape_cast %89 : vector<1x128x128xbf16> to vector<128x128xbf16>
    %91 = vector.shape_cast %88 : vector<128x128xbf16> to vector<1x128x128xbf16>
    tpu.vector_store %arg11[%c0_36, %c0_37, %c0_38], %91 {strides = array<i32>} : memref<1x256x128xbf16, #tpu.memory_space<vmem>>, vector<1x128x128xbf16>,
    %92 = vector.extract_strided_slice %38 {offsets = [112, 0], sizes = [128, 32], strides = [1, 1]} : vector<256x32xbf16> to vector<128x32xbf16>
    %93 = vector.extract_strided_slice %12 {offsets = [112, 0], sizes = [128, 32], strides = [1, 1]} : vector<256x32xbf16> to vector<128x32xbf16>
    %94 = vector.extract_strided_slice %47 {offsets = [112, 0], sizes = [128, 32], strides = [1, 1]} : vector<256x32xbf16> to vector<128x32xbf16>
    %95 = vector.extract_strided_slice %38 {offsets = [128, 0], sizes = [128, 32], strides = [1, 1]} : vector<256x32xbf16> to vector<128x32xbf16>
    %96 = vector.extract_strided_slice %12 {offsets = [128, 0], sizes = [128, 32], strides = [1, 1]} : vector<256x32xbf16> to vector<128x32xbf16>
    %97 = vector.extract_strided_slice %47 {offsets = [128, 0], sizes = [128, 32], strides = [1, 1]} : vector<256x32xbf16> to vector<128x32xbf16>
    %98 = vector.extract_strided_slice %38 {offsets = [144, 0], sizes = [112, 32], strides = [1, 1]} : vector<256x32xbf16> to vector<112x32xbf16>
    %cst_39 = arith.constant 0.000000e+00 : bf16
    %99 = vector.broadcast %cst_39 : bf16 to vector<16x32xbf16>
    %100 = tpu.concatenate %98, %99 in 0 : vector<112x32xbf16>, vector<16x32xbf16> -> vector<128x32xbf16>
    %101 = vector.extract_strided_slice %12 {offsets = [144, 0], sizes = [112, 32], strides = [1, 1]} : vector<256x32xbf16> to vector<112x32xbf16>
    %cst_40 = arith.constant 0.000000e+00 : bf16
    %102 = vector.broadcast %cst_40 : bf16 to vector<16x32xbf16>
    %103 = tpu.concatenate %101, %102 in 0 : vector<112x32xbf16>, vector<16x32xbf16> -> vector<128x32xbf16>
    %104 = vector.extract_strided_slice %47 {offsets = [144, 0], sizes = [112, 32], strides = [1, 1]} : vector<256x32xbf16> to vector<112x32xbf16>
    %cst_41 = arith.constant 0.000000e+00 : bf16
    %105 = vector.broadcast %cst_41 : bf16 to vector<16x32xbf16>
    %106 = tpu.concatenate %104, %105 in 0 : vector<112x32xbf16>, vector<16x32xbf16> -> vector<128x32xbf16>
    %107 = tpu.concatenate %92, %93, %94, %95, %96, %97, %100, %103, %106 in 1 : vector<128x32xbf16>, vector<128x32xbf16>, vector<128x32xbf16>, vector<128x32xbf16>, vector<128x32xbf16>, vector<128x32xbf16>, vector<128x32xbf16>, vector<128x32xbf16>, vector<128x32xbf16> -> vector<128x288xbf16>
    %c0_42 = arith.constant 0 : index
    %c0_43 = arith.constant 0 : index
    %108 = vector.load %arg5[%c0_42, %c0_43] : memref<288x32xbf16, #tpu.memory_space<vmem>>, vector<288x32xbf16>
    %cst_44 = arith.constant dense<0.000000e+00> : vector<128x32xf32>
    %109 = tpu.matmul %107, %108, %cst_44 {dimension_numbers = #tpu.dot_dimension_numbers<[1], [0], [0], [1], [0, 0, 1, 1], [], []>} : vector<128x288xbf16>, vector<288x32xbf16>, vector<128x32xf32> -> vector<128x32xf32>
    %c0_45 = arith.constant 0 : index
    %c0_46 = arith.constant 0 : index
    %110 = vector.load %arg6[%c0_45, %c0_46] : memref<1x32xf32, #tpu.memory_space<vmem>>, vector<1x32xf32>
    %111 = vector.broadcast %110 : vector<1x32xf32> to vector<128x32xf32>
    %112 = arith.mulf %109, %111 : vector<128x32xf32>
    %c0_47 = arith.constant 0 : index
    %c0_48 = arith.constant 0 : index
    %113 = vector.load %arg7[%c0_47, %c0_48] : memref<1x32xf32, #tpu.memory_space<vmem>>, vector<1x32xf32>
    %114 = vector.broadcast %113 : vector<1x32xf32> to vector<128x32xf32>
    %115 = arith.addf %112, %114 : vector<128x32xf32>
    %cst_49 = arith.constant 0.000000e+00 : f32
    %116 = vector.broadcast %cst_49 : f32 to vector<128x32xf32>
    %117 = arith.maximumf %115, %116 : vector<128x32xf32>
    %118 = arith.truncf %117 : vector<128x32xf32> to vector<128x32xbf16>
    %c0_50 = arith.constant 0 : index
    %c0_51 = arith.constant 0 : index
    %119 = vector.load %arg8[%c0_50, %c0_51] : memref<32x128xbf16, #tpu.memory_space<vmem>>, vector<32x128xbf16>
    %cst_52 = arith.constant dense<0.000000e+00> : vector<128x128xf32>
    %120 = tpu.matmul %118, %119, %cst_52 {dimension_numbers = #tpu.dot_dimension_numbers<[1], [0], [0], [1], [0, 0, 1, 1], [], []>} : vector<128x32xbf16>, vector<32x128xbf16>, vector<128x128xf32> -> vector<128x128xf32>
    %c0_53 = arith.constant 0 : index
    %c0_54 = arith.constant 0 : index
    %121 = vector.load %arg9[%c0_53, %c0_54] : memref<1x128xf32, #tpu.memory_space<vmem>>, vector<1x128xf32>
    %122 = vector.broadcast %121 : vector<1x128xf32> to vector<128x128xf32>
    %123 = arith.mulf %120, %122 : vector<128x128xf32>
    %c0_55 = arith.constant 0 : index
    %c0_56 = arith.constant 0 : index
    %124 = vector.load %arg10[%c0_55, %c0_56] : memref<1x128xf32, #tpu.memory_space<vmem>>, vector<1x128xf32>
    %125 = vector.broadcast %124 : vector<1x128xf32> to vector<128x128xf32>
    %126 = arith.addf %123, %125 : vector<128x128xf32>
    %127 = vector.extract_strided_slice %1 {offsets = [128, 0], sizes = [128, 128], strides = [1, 1]} : vector<256x128xbf16> to vector<128x128xbf16>
    %128 = arith.extf %127 : vector<128x128xbf16> to vector<128x128xf32>
    %129 = arith.addf %126, %128 : vector<128x128xf32>
    %cst_57 = arith.constant 0.000000e+00 : f32
    %130 = vector.broadcast %cst_57 : f32 to vector<128x128xf32>
    %131 = arith.maximumf %129, %130 : vector<128x128xf32>
    %132 = arith.truncf %131 : vector<128x128xf32> to vector<128x128xbf16>
    %c0_58 = arith.constant 0 : index
    %c128 = arith.constant 128 : index
    %c0_59 = arith.constant 0 : index
    %133 = vector.load %arg11[%c0_58, %c128, %c0_59] : memref<1x256x128xbf16, #tpu.memory_space<vmem>>, vector<1x128x128xbf16>
    %134 = vector.shape_cast %133 : vector<1x128x128xbf16> to vector<128x128xbf16>
    %135 = vector.shape_cast %132 : vector<128x128xbf16> to vector<1x128x128xbf16>
    tpu.vector_store %arg11[%c0_58, %c128, %c0_59], %135 {strides = array<i32>} : memref<1x256x128xbf16, #tpu.memory_space<vmem>>, vector<1x128x128xbf16>,
    return
  }
  func.func @transform_0(%arg0: i32) -> (i32, i32, i32) {
    %c0_i32 = arith.constant 0 : i32
    %c0_i32_0 = arith.constant 0 : i32
    %c0_i32_1 = arith.constant 0 : i32
    return %arg0, %c0_i32, %c0_i32_0 : i32, i32, i32
  }
  func.func @transform_1(%arg0: i32) -> (i32, i32) {
    %c0_i32 = arith.constant 0 : i32
    %c0_i32_0 = arith.constant 0 : i32
    %c0_i32_1 = arith.constant 0 : i32
    return %c0_i32, %c0_i32_0 : i32, i32
  }
  func.func @transform_2(%arg0: i32) -> (i32, i32) {
    %c0_i32 = arith.constant 0 : i32
    %c0_i32_0 = arith.constant 0 : i32
    %c0_i32_1 = arith.constant 0 : i32
    return %c0_i32, %c0_i32_0 : i32, i32
  }
  func.func @transform_3(%arg0: i32) -> (i32, i32) {
    %c0_i32 = arith.constant 0 : i32
    %c0_i32_0 = arith.constant 0 : i32
    %c0_i32_1 = arith.constant 0 : i32
    return %c0_i32, %c0_i32_0 : i32, i32
  }
  func.func @transform_4(%arg0: i32) -> (i32, i32) {
    %c0_i32 = arith.constant 0 : i32
    %c0_i32_0 = arith.constant 0 : i32
    %c0_i32_1 = arith.constant 0 : i32
    return %c0_i32, %c0_i32_0 : i32, i32
  }
  func.func @transform_5(%arg0: i32) -> (i32, i32) {
    %c0_i32 = arith.constant 0 : i32
    %c0_i32_0 = arith.constant 0 : i32
    %c0_i32_1 = arith.constant 0 : i32
    return %c0_i32, %c0_i32_0 : i32, i32
  }
  func.func @transform_6(%arg0: i32) -> (i32, i32) {
    %c0_i32 = arith.constant 0 : i32
    %c0_i32_0 = arith.constant 0 : i32
    %c0_i32_1 = arith.constant 0 : i32
    return %c0_i32, %c0_i32_0 : i32, i32
  }
  func.func @transform_7(%arg0: i32) -> (i32, i32) {
    %c0_i32 = arith.constant 0 : i32
    %c0_i32_0 = arith.constant 0 : i32
    %c0_i32_1 = arith.constant 0 : i32
    return %c0_i32, %c0_i32_0 : i32, i32
  }
  func.func @transform_8(%arg0: i32) -> (i32, i32) {
    %c0_i32 = arith.constant 0 : i32
    %c0_i32_0 = arith.constant 0 : i32
    %c0_i32_1 = arith.constant 0 : i32
    return %c0_i32, %c0_i32_0 : i32, i32
  }
  func.func @transform_9(%arg0: i32) -> (i32, i32) {
    %c0_i32 = arith.constant 0 : i32
    %c0_i32_0 = arith.constant 0 : i32
    %c0_i32_1 = arith.constant 0 : i32
    return %c0_i32, %c0_i32_0 : i32, i32
  }
  func.func @transform_10(%arg0: i32) -> (i32, i32, i32) {
    %c0_i32 = arith.constant 0 : i32
    %c0_i32_0 = arith.constant 0 : i32
    %c0_i32_1 = arith.constant 0 : i32
    return %arg0, %c0_i32, %c0_i32_0 : i32, i32, i32
  }
}

</mosaic_0001>

<llo_original>
// kernel: bottleneck_forward.1
$region0: #{bottleneck_forward.1}
  #allocation0 [shape = 'u32[]', space=smem, size = 0x4, offset = 0x4, fixed_abs, tag = 'smem constant byte address 0x4 - core index']
  #allocation1 [shape = 'u32[144,128]{1,0:T(1,128)}', space=vmem, size = 0x12000, scoped, tag = 'internal scratch']
  %s0 = inlined_call_operand.vmem [shape: bf16[2,256,128], index: 0, kind: input, shape index: {}]
  %s1 = inlined_call_operand.vmem [shape: bf16[128,32], index: 1, kind: input, shape index: {}]
  %s2 = inlined_call_operand.vmem [shape: f32[1,32], index: 2, kind: input, shape index: {}]
  %s3 = inlined_call_operand.vmem [shape: f32[1,32], index: 3, kind: input, shape index: {}]
  %s4 = inlined_call_operand.vmem [shape: bf16[288,32], index: 4, kind: input, shape index: {}]
  %s5 = inlined_call_operand.vmem [shape: f32[1,32], index: 5, kind: input, shape index: {}]
  %s6 = inlined_call_operand.vmem [shape: f32[1,32], index: 6, kind: input, shape index: {}]
  %s7 = inlined_call_operand.vmem [shape: bf16[32,128], index: 7, kind: input, shape index: {}]
  %s8 = inlined_call_operand.vmem [shape: f32[1,128], index: 8, kind: input, shape index: {}]
  %s9 = inlined_call_operand.vmem [shape: f32[1,128], index: 9, kind: input, shape index: {}]
  %s10 = inlined_call_operand.vmem [shape: bf16[2,256,128], index: 10, kind: output, shape index: {}]
  %s11 = sld [smem:[#allocation0]]
  $region73: #{bottleneck_forward.1} parent=0
    _
  %s13 = ssub.s32 1, %s11
  %s14 = scalar_select 0, %s13, %s11
  loop: start=0, step=1, limit=4
  $region2: #{bottleneck_forward.1} parent=0 // loop_pre_header
    _
  $region3: #{bottleneck_forward.1} parent=0 // loop_header
    %s16 = sphi 0, %s20
    %p17 = scmp.ge.s32.totalorder %s16, 4
    %s26 = sphi 0, %s28
    %s29 = sphi 0, %s26
    %s30 = sphi 0, %s29
    %s46 = sphi 0, %s30
    %s50 = sphi 0, %s50
    %s52 = sphi 0, %s50
    %s53 = sphi 0, %s52
    %s67 = sphi 0, %s53
    %s71 = sphi 0, %s71
    %s73 = sphi 0, %s71
    %s74 = sphi 0, %s73
    %s88 = sphi 0, %s74
    %s92 = sphi 0, %s92
    %s94 = sphi 0, %s92
    %s95 = sphi 0, %s94
    %s109 = sphi 0, %s95
    %s113 = sphi 0, %s113
    %s115 = sphi 0, %s113
    %s116 = sphi 0, %s115
    %s130 = sphi 0, %s116
    %s134 = sphi 0, %s134
    %s136 = sphi 0, %s134
    %s137 = sphi 0, %s136
    %s151 = sphi 0, %s137
    %s155 = sphi 0, %s155
    %s157 = sphi 0, %s155
    %s158 = sphi 0, %s157
    %s172 = sphi 0, %s158
    %s176 = sphi 0, %s176
    %s178 = sphi 0, %s176
    %s179 = sphi 0, %s178
    %s193 = sphi 0, %s179
    %s197 = sphi 0, %s197
    %s199 = sphi 0, %s197
    %s200 = sphi 0, %s199
    %s214 = sphi 0, %s200
    %s218 = sphi 0, %s218
    %s220 = sphi 0, %s218
    %s221 = sphi 0, %s220
    %s235 = sphi 0, %s221
    %s241 = sphi 0, %s243
    %s244 = sphi 0, %s241
    %s245 = sphi 0, %s244
    %s261 = sphi 0, %s245
  $region4: #{bottleneck_forward.1} parent=0 // loop_header_branch
    %19 = sbr.rel (%p17) target = $region8
  $region5: #{bottleneck_forward.1} parent=0 // loop_body
    %s21 = ssub.s32 %s16, 1
    %s22 = ssub.s32 %s16, 2
    %s23 = sadd.s32 %s16, 1
    %s24 = ssub.s32 %s16, %s23
    %p25 = scmp.eq.s32.totalorder %s24, 0
    %s27 = sadd.s32 %s26, 1
    %s28 = scalar_select %p25, %s26, %s27
    %p31 = pneg %p25
    %p32 = scmp.eq.s32.totalorder %s16, 1
    %p33 = por %p31, %p32
    %p34 = scmp.ne.s32.totalorder %s26, %s29
    %p35 = scmp.eq.s32.totalorder %s16, 0
    %p36 = por %p34, %p35
    %p37 = scmp.ne.s32.totalorder %s26, %s29
    %p38 = scmp.eq.s32.totalorder %s21, 1
    %p39 = por %p37, %p38
    %p40 = scmp.ne.s32.totalorder %s29, %s30
    %p41 = scmp.eq.s32.totalorder %s21, 0
    %p42 = por %p40, %p41
    %p43 = scmp.ne.s32.totalorder %s29, %s30
    %p44 = scmp.eq.s32.totalorder %s22, 1
    %p45 = por %p43, %p44
    %p47 = scmp.ne.s32.totalorder %s30, %s46
    %p48 = scmp.eq.s32.totalorder %s22, 0
    %p49 = por %p47, %p48
    %s51 = sadd.s32 %s50, 1
    %p54 = scmp.eq.s32.totalorder %s16, 1
    %p55 = scmp.ne.s32.totalorder %s50, %s52
    %p56 = scmp.eq.s32.totalorder %s16, 0
    %p57 = por %p55, %p56
    %p58 = scmp.ne.s32.totalorder %s50, %s52
    %p59 = scmp.eq.s32.totalorder %s21, 1
    %p60 = por %p58, %p59
    %p61 = scmp.ne.s32.totalorder %s52, %s53
    %p62 = scmp.eq.s32.totalorder %s21, 0
    %p63 = por %p61, %p62
    %p64 = scmp.ne.s32.totalorder %s52, %s53
    %p65 = scmp.eq.s32.totalorder %s22, 1
    %p66 = por %p64, %p65
    %p68 = scmp.ne.s32.totalorder %s53, %s67
    %p69 = scmp.eq.s32.totalorder %s22, 0
    %p70 = por %p68, %p69
    %s72 = sadd.s32 %s71, 1
    %p75 = scmp.eq.s32.totalorder %s16, 1
    %p76 = scmp.ne.s32.totalorder %s71, %s73
    %p77 = scmp.eq.s32.totalorder %s16, 0
    %p78 = por %p76, %p77
    %p79 = scmp.ne.s32.totalorder %s71, %s73
    %p80 = scmp.eq.s32.totalorder %s21, 1
    %p81 = por %p79, %p80
    %p82 = scmp.ne.s32.totalorder %s73, %s74
    %p83 = scmp.eq.s32.totalorder %s21, 0
    %p84 = por %p82, %p83
    %p85 = scmp.ne.s32.totalorder %s73, %s74
    %p86 = scmp.eq.s32.totalorder %s22, 1
    %p87 = por %p85, %p86
    %p89 = scmp.ne.s32.totalorder %s74, %s88
    %p90 = scmp.eq.s32.totalorder %s22, 0
    %p91 = por %p89, %p90
    %s93 = sadd.s32 %s92, 1
    %p96 = scmp.eq.s32.totalorder %s16, 1
    %p97 = scmp.ne.s32.totalorder %s92, %s94
    %p98 = scmp.eq.s32.totalorder %s16, 0
    %p99 = por %p97, %p98
    %p100 = scmp.ne.s32.totalorder %s92, %s94
    %p101 = scmp.eq.s32.totalorder %s21, 1
    %p102 = por %p100, %p101
    %p103 = scmp.ne.s32.totalorder %s94, %s95
    %p104 = scmp.eq.s32.totalorder %s21, 0
    %p105 = por %p103, %p104
    %p106 = scmp.ne.s32.totalorder %s94, %s95
    %p107 = scmp.eq.s32.totalorder %s22, 1
    %p108 = por %p106, %p107
    %p110 = scmp.ne.s32.totalorder %s95, %s109
    %p111 = scmp.eq.s32.totalorder %s22, 0
    %p112 = por %p110, %p111
    %s114 = sadd.s32 %s113, 1
    %p117 = scmp.eq.s32.totalorder %s16, 1
    %p118 = scmp.ne.s32.totalorder %s113, %s115
    %p119 = scmp.eq.s32.totalorder %s16, 0
    %p120 = por %p118, %p119
    %p121 = scmp.ne.s32.totalorder %s113, %s115
    %p122 = scmp.eq.s32.totalorder %s21, 1
    %p123 = por %p121, %p122
    %p124 = scmp.ne.s32.totalorder %s115, %s116
    %p125 = scmp.eq.s32.totalorder %s21, 0
    %p126 = por %p124, %p125
    %p127 = scmp.ne.s32.totalorder %s115, %s116
    %p128 = scmp.eq.s32.totalorder %s22, 1
    %p129 = por %p127, %p128
    %p131 = scmp.ne.s32.totalorder %s116, %s130
    %p132 = scmp.eq.s32.totalorder %s22, 0
    %p133 = por %p131, %p132
    %s135 = sadd.s32 %s134, 1
    %p138 = scmp.eq.s32.totalorder %s16, 1
    %p139 = scmp.ne.s32.totalorder %s134, %s136
    %p140 = scmp.eq.s32.totalorder %s16, 0
    %p141 = por %p139, %p140
    %p142 = scmp.ne.s32.totalorder %s134, %s136
    %p143 = scmp.eq.s32.totalorder %s21, 1
    %p144 = por %p142, %p143
    %p145 = scmp.ne.s32.totalorder %s136, %s137
    %p146 = scmp.eq.s32.totalorder %s21, 0
    %p147 = por %p145, %p146
    %p148 = scmp.ne.s32.totalorder %s136, %s137
    %p149 = scmp.eq.s32.totalorder %s22, 1
    %p150 = por %p148, %p149
    %p152 = scmp.ne.s32.totalorder %s137, %s151
    %p153 = scmp.eq.s32.totalorder %s22, 0
    %p154 = por %p152, %p153
    %s156 = sadd.s32 %s155, 1
    %p159 = scmp.eq.s32.totalorder %s16, 1
    %p160 = scmp.ne.s32.totalorder %s155, %s157
    %p161 = scmp.eq.s32.totalorder %s16, 0
    %p162 = por %p160, %p161
    %p163 = scmp.ne.s32.totalorder %s155, %s157
    %p164 = scmp.eq.s32.totalorder %s21, 1
    %p165 = por %p163, %p164
    %p166 = scmp.ne.s32.totalorder %s157, %s158
    %p167 = scmp.eq.s32.totalorder %s21, 0
    %p168 = por %p166, %p167
    %p169 = scmp.ne.s32.totalorder %s157, %s158
    %p170 = scmp.eq.s32.totalorder %s22, 1
    %p171 = por %p169, %p170
    %p173 = scmp.ne.s32.totalorder %s158, %s172
    %p174 = scmp.eq.s32.totalorder %s22, 0
    %p175 = por %p173, %p174
    %s177 = sadd.s32 %s176, 1
    %p180 = scmp.eq.s32.totalorder %s16, 1
    %p181 = scmp.ne.s32.totalorder %s176, %s178
    %p182 = scmp.eq.s32.totalorder %s16, 0
    %p183 = por %p181, %p182
    %p184 = scmp.ne.s32.totalorder %s176, %s178
    %p185 = scmp.eq.s32.totalorder %s21, 1
    %p186 = por %p184, %p185
    %p187 = scmp.ne.s32.totalorder %s178, %s179
    %p188 = scmp.eq.s32.totalorder %s21, 0
    %p189 = por %p187, %p188
    %p190 = scmp.ne.s32.totalorder %s178, %s179
    %p191 = scmp.eq.s32.totalorder %s22, 1
    %p192 = por %p190, %p191
    %p194 = scmp.ne.s32.totalorder %s179, %s193
    %p195 = scmp.eq.s32.totalorder %s22, 0
    %p196 = por %p194, %p195
    %s198 = sadd.s32 %s197, 1
    %p201 = scmp.eq.s32.totalorder %s16, 1
    %p202 = scmp.ne.s32.totalorder %s197, %s199
    %p203 = scmp.eq.s32.totalorder %s16, 0
    %p204 = por %p202, %p203
    %p205 = scmp.ne.s32.totalorder %s197, %s199
    %p206 = scmp.eq.s32.totalorder %s21, 1
    %p207 = por %p205, %p206
    %p208 = scmp.ne.s32.totalorder %s199, %s200
    %p209 = scmp.eq.s32.totalorder %s21, 0
    %p210 = por %p208, %p209
    %p211 = scmp.ne.s32.totalorder %s199, %s200
    %p212 = scmp.eq.s32.totalorder %s22, 1
    %p213 = por %p211, %p212
    %p215 = scmp.ne.s32.totalorder %s200, %s214
    %p216 = scmp.eq.s32.totalorder %s22, 0
    %p217 = por %p215, %p216
    %s219 = sadd.s32 %s218, 1
    %p222 = scmp.eq.s32.totalorder %s16, 1
    %p223 = scmp.ne.s32.totalorder %s218, %s220
    %p224 = scmp.eq.s32.totalorder %s16, 0
    %p225 = por %p223, %p224
    %p226 = scmp.ne.s32.totalorder %s218, %s220
    %p227 = scmp.eq.s32.totalorder %s21, 1
    %p228 = por %p226, %p227
    %p229 = scmp.ne.s32.totalorder %s220, %s221
    %p230 = scmp.eq.s32.totalorder %s21, 0
    %p231 = por %p229, %p230
    %p232 = scmp.ne.s32.totalorder %s220, %s221
    %p233 = scmp.eq.s32.totalorder %s22, 1
    %p234 = por %p232, %p233
    %p236 = scmp.ne.s32.totalorder %s221, %s235
    %p237 = scmp.eq.s32.totalorder %s22, 0
    %p238 = por %p236, %p237
    %s239 = ssub.s32 %s16, %s23
    %p240 = scmp.eq.s32.totalorder %s239, 0
    %s242 = sadd.s32 %s241, 1
    %s243 = scalar_select %p240, %s241, %s242
    %p246 = pneg %p240
    %p247 = scmp.eq.s32.totalorder %s16, 1
    %p248 = por %p246, %p247
    %p249 = scmp.ne.s32.totalorder %s241, %s244
    %p250 = scmp.eq.s32.totalorder %s16, 0
    %p251 = por %p249, %p250
    %p252 = scmp.ne.s32.totalorder %s241, %s244
    %p253 = scmp.eq.s32.totalorder %s21, 1
    %p254 = por %p252, %p253
    %p255 = scmp.ne.s32.totalorder %s244, %s245
    %p256 = scmp.eq.s32.totalorder %s21, 0
    %p257 = por %p255, %p256
    %p258 = scmp.ne.s32.totalorder %s244, %s245
    %p259 = scmp.eq.s32.totalorder %s22, 1
    %p260 = por %p258, %p259
    %p262 = scmp.ne.s32.totalorder %s245, %s261
    %p263 = scmp.eq.s32.totalorder %s22, 0
    %p264 = por %p262, %p263
    %p265 = scmp.le.s32.totalorder 1, %s16
    %p266 = scmp.lt.s32.totalorder %s16, 3
    %p267 = pnand %p265, %p266
    %p268 = pneg %p267
    // Predicated region
    $region9: #{bottleneck_forward.1} parent=5 // pred_check
      _
    $region10: #{bottleneck_forward.1} parent=5 // pred_check_branch
      %270 = sbr.rel (%p267) target = $region12
    $region11: #{bottleneck_forward.1} parent=5 // pred_region
      %s271 = ssub.s32 %s16, 1
      // Predicated region
      $region13: #{bottleneck_forward.1} parent=11 // pred_check
        %p272 = pneg %p63
      $region14: #{bottleneck_forward.1} parent=11 // pred_check_branch
        %274 = sbr.rel (%p272) target = $region16
      $region15: #{bottleneck_forward.1} parent=11 // pred_region
        _
      $region16: #{bottleneck_forward.1} parent=11 // pred_fallthru
        _
      // Predicated region
      $region17: #{bottleneck_forward.1} parent=11 // pred_check
        %p275 = pneg %p84
      $region18: #{bottleneck_forward.1} parent=11 // pred_check_branch
        %277 = sbr.rel (%p275) target = $region20
      $region19: #{bottleneck_forward.1} parent=11 // pred_region
        _
      $region20: #{bottleneck_forward.1} parent=11 // pred_fallthru
        _
      // Predicated region
      $region21: #{bottleneck_forward.1} parent=11 // pred_check
        %p278 = pneg %p105
      $region22: #{bottleneck_forward.1} parent=11 // pred_check_branch
        %280 = sbr.rel (%p278) target = $region24
      $region23: #{bottleneck_forward.1} parent=11 // pred_region
        _
      $region24: #{bottleneck_forward.1} parent=11 // pred_fallthru
        _
      // Predicated region
      $region25: #{bottleneck_forward.1} parent=11 // pred_check
        %p281 = pneg %p126
      $region26: #{bottleneck_forward.1} parent=11 // pred_check_branch
        %283 = sbr.rel (%p281) target = $region28
      $region27: #{bottleneck_forward.1} parent=11 // pred_region
        _
      $region28: #{bottleneck_forward.1} parent=11 // pred_fallthru
        _
      // Predicated region
      $region29: #{bottleneck_forward.1} parent=11 // pred_check
        %p284 = pneg %p147
      $region30: #{bottleneck_forward.1} parent=11 // pred_check_branch
        %286 = sbr.rel (%p284) target = $region32
      $region31: #{bottleneck_forward.1} parent=11 // pred_region
        _
      $region32: #{bottleneck_forward.1} parent=11 // pred_fallthru
        _
      // Predicated region
      $region33: #{bottleneck_forward.1} parent=11 // pred_check
        %p287 = pneg %p168
      $region34: #{bottleneck_forward.1} parent=11 // pred_check_branch
        %289 = sbr.rel (%p287) target = $region36
      $region35: #{bottleneck_forward.1} parent=11 // pred_region
        _
      $region36: #{bottleneck_forward.1} parent=11 // pred_fallthru
        _
      // Predicated region
      $region37: #{bottleneck_forward.1} parent=11 // pred_check
        %p290 = pneg %p189
      $region38: #{bottleneck_forward.1} parent=11 // pred_check_branch
        %292 = sbr.rel (%p290) target = $region40
      $region39: #{bottleneck_forward.1} parent=11 // pred_region
        _
      $region40: #{bottleneck_forward.1} parent=11 // pred_fallthru
        _
      // Predicated region
      $region41: #{bottleneck_forward.1} parent=11 // pred_check
        %p293 = pneg %p210
      $region42: #{bottleneck_forward.1} parent=11 // pred_check_branch
        %295 = sbr.rel (%p293) target = $region44
      $region43: #{bottleneck_forward.1} parent=11 // pred_region
        _
      $region44: #{bottleneck_forward.1} parent=11 // pred_fallthru
        _
      // Predicated region
      $region45: #{bottleneck_forward.1} parent=11 // pred_check
        %p296 = pneg %p231
      $region46: #{bottleneck_forward.1} parent=11 // pred_check_branch
        %298 = sbr.rel (%p296) target = $region48
      $region47: #{bottleneck_forward.1} parent=11 // pred_region
        _
      $region48: #{bottleneck_forward.1} parent=11 // pred_fallthru
        _
    $region12: #{bottleneck_forward.1} parent=5 // pred_fallthru
      _
    %p299 = scmp.lt.s32.totalorder %s16, 2
    // Predicated region
    $region49: #{bottleneck_forward.1} parent=5 // pred_check
      %p300 = pneg %p299
    $region50: #{bottleneck_forward.1} parent=5 // pred_check_branch
      %302 = sbr.rel (%p300) target = $region52
    $region51: #{bottleneck_forward.1} parent=5 // pred_region
      // Predicated region
      $region53: #{bottleneck_forward.1} parent=51 // pred_check
        %p303 = pneg %p36
      $region54: #{bottleneck_forward.1} parent=51 // pred_check_branch
        %305 = sbr.rel (%p303) target = $region56
      $region55: #{bottleneck_forward.1} parent=51 // pred_region
        %p306 = scmp.lt.s32.totalorder %s16, 1
        %s307 = scalar_select %p306, %s16, 1
        %s308 = smul.addr %s307, 32
        %s309 = smul.addr %s308, 4
        %s310 = scalar_lea.vmem %s0, %s309
      $region56: #{bottleneck_forward.1} parent=51 // pred_fallthru
        _
    $region52: #{bottleneck_forward.1} parent=5 // pred_fallthru
      _
    %p311 = scmp.le.s32.totalorder 1, %s16
    %p312 = scmp.lt.s32.totalorder %s16, 3
    %p313 = pnand %p311, %p312
    %p314 = pneg %p313
    // Predicated region
    $region57: #{bottleneck_forward.1} parent=5 // pred_check
      _
    $region58: #{bottleneck_forward.1} parent=5 // pred_check_branch
      %316 = sbr.rel (%p313) target = $region60
    $region59: #{bottleneck_forward.1} parent=5 // pred_region
      %s317 = ssub.s32 %s16, 1
      %p318 = scmp.lt.s32.totalorder %s21, 1
      %s319 = scalar_select %p318, %s21, 1
      %s320 = smul.addr %s319, 32
      %s321 = smul.addr %s320, 4
      %s322 = scalar_lea.vmem %s0, %s321
      %p323 = pneg %p42
      %p324 = pneg %p39
      %p325 = pneg %p63
      %p326 = pneg %p60
      %p327 = pneg %p84
      %p328 = pneg %p81
      %p329 = pneg %p105
      %p330 = pneg %p102
      %p331 = pneg %p126
      %p332 = pneg %p123
      %p333 = pneg %p147
      %p334 = pneg %p144
      %p335 = pneg %p168
      %p336 = pneg %p165
      %p337 = pneg %p189
      %p338 = pneg %p186
      %p339 = pneg %p210
      %p340 = pneg %p207
      %p341 = pneg %p231
      %p342 = pneg %p228
      %p343 = pneg %p257
      %p344 = pneg %p254
      %p345 = scmp.lt.s32.totalorder %s21, 1
      %s346 = scalar_select %p345, %s21, 1
      %s347 = smul.addr %s346, 32
      %s348 = smul.addr %s347, 4
      %s349 = scalar_lea.vmem %s10, %s348
      %p350 = scmp.lt.s32.totalorder %s21, 1
      %s351 = scalar_select %p350, %s21, 1
      %s352 = smul.addr %s351, 32
      %s353 = smul.addr %s352, 4
      %s354 = scalar_lea.vmem %s0, %s353
      %p355 = scmp.lt.s32.totalorder %s21, 1
      %s356 = scalar_select %p355, %s21, 1
      %s357 = smul.addr %s356, 32
      %s358 = smul.addr %s357, 4
      %s359 = scalar_lea.vmem %s10, %s358
      %v363 = vld [vmem:[%s354] sm:$0xf]
      %v364 = vld [vmem:[%s354 + $0x4] sm:$0xf]
      %v365 = vld [vmem:[%s354 + $0x8] sm:$0xf]
      %v366 = vld [vmem:[%s354 + $0xc] sm:$0xf]
      %v367 = vld [vmem:[%s354 + $0x10] sm:$0xf]
      %v368 = vld [vmem:[%s354 + $0x14] sm:$0xf]
      %v369 = vld [vmem:[%s354 + $0x18] sm:$0xf]
      %v370 = vld [vmem:[%s354 + $0x1c] sm:$0xf]
      %v371 = vld [vmem:[%s354 + $0x20] sm:$0xf]
      %v372 = vld [vmem:[%s354 + $0x24] sm:$0xf]
      %v373 = vld [vmem:[%s354 + $0x28] sm:$0xf]
      %v374 = vld [vmem:[%s354 + $0x2c] sm:$0xf]
      %v375 = vld [vmem:[%s354 + $0x30] sm:$0xf]
      %v376 = vld [vmem:[%s354 + $0x34] sm:$0xf]
      %v377 = vld [vmem:[%s354 + $0x38] sm:$0xf]
      %v378 = vld [vmem:[%s354 + $0x3c] sm:$0xf]
      %v379 = vld [vmem:[%s354 + $0x40] sm:$0xf]
      %v380 = vld [vmem:[%s354 + $0x44] sm:$0xf]
      %v381 = vld [vmem:[%s354 + $0x48] sm:$0xf]
      %v382 = vld [vmem:[%s354 + $0x4c] sm:$0xf]
      %v383 = vld [vmem:[%s354 + $0x50] sm:$0xf]
      %v384 = vld [vmem:[%s354 + $0x54] sm:$0xf]
      %v385 = vld [vmem:[%s354 + $0x58] sm:$0xf]
      %v386 = vld [vmem:[%s354 + $0x5c] sm:$0xf]
      %v387 = vld [vmem:[%s354 + $0x60] sm:$0xf]
      %v388 = vld [vmem:[%s354 + $0x64] sm:$0xf]
      %v389 = vld [vmem:[%s354 + $0x68] sm:$0xf]
      %v390 = vld [vmem:[%s354 + $0x6c] sm:$0xf]
      %v391 = vld [vmem:[%s354 + $0x70] sm:$0xf]
      %v392 = vld [vmem:[%s354 + $0x74] sm:$0xf]
      %v393 = vld [vmem:[%s354 + $0x78] sm:$0xf]
      %v394 = vld [vmem:[%s354 + $0x7c] sm:$0xf]
      %v395 = vld [vmem:[%s1] sm:$0xf]
      %v396 = vld [vmem:[%s1 + $0x4] sm:$0xf]
      %v397 = vld [vmem:[%s1 + $0x8] sm:$0xf]
      %v398 = vld [vmem:[%s1 + $0xc] sm:$0xf]
      %v399 = vld [vmem:[%s1 + $0x10] sm:$0xf]
      %v400 = vld [vmem:[%s1 + $0x14] sm:$0xf]
      %v401 = vld [vmem:[%s1 + $0x18] sm:$0xf]
      %v402 = vld [vmem:[%s1 + $0x1c] sm:$0xf]
      %v403 = vld [vmem:[%s1 + $0x20] sm:$0xf]
      %v404 = vld [vmem:[%s1 + $0x24] sm:$0xf]
      %v405 = vld [vmem:[%s1 + $0x28] sm:$0xf]
      %v406 = vld [vmem:[%s1 + $0x2c] sm:$0xf]
      %v407 = vld [vmem:[%s1 + $0x30] sm:$0xf]
      %v408 = vld [vmem:[%s1 + $0x34] sm:$0xf]
      %v409 = vld [vmem:[%s1 + $0x38] sm:$0xf]
      %v410 = vld [vmem:[%s1 + $0x3c] sm:$0xf]
      %v443 = vunpack.c.l.b16 %v363
      %v444 = vunpack.c.l.b16 %v364
      %v445 = vunpack.c.l.b16 %v365
      %v446 = vunpack.c.l.b16 %v366
      %v447 = vunpack.c.l.b16 %v367
      %v448 = vunpack.c.l.b16 %v368
      %v449 = vunpack.c.l.b16 %v369
      %v450 = vunpack.c.l.b16 %v370
      %v451 = vunpack.c.l.b16 %v371
      %v452 = vunpack.c.l.b16 %v372
      %v453 = vunpack.c.l.b16 %v373
      %v454 = vunpack.c.l.b16 %v374
      %v455 = vunpack.c.l.b16 %v375
      %v456 = vunpack.c.l.b16 %v376
      %v457 = vunpack.c.l.b16 %v377
      %v458 = vunpack.c.l.b16 %v378
      %v459 = vunpack.c.l.b16 %v379
      %v460 = vunpack.c.l.b16 %v380
      %v461 = vunpack.c.l.b16 %v381
      %v462 = vunpack.c.l.b16 %v382
      %v463 = vunpack.c.l.b16 %v383
      %v464 = vunpack.c.l.b16 %v384
      %v465 = vunpack.c.l.b16 %v385
      %v466 = vunpack.c.l.b16 %v386
      %v467 = vunpack.c.l.b16 %v387
      %v468 = vunpack.c.l.b16 %v388
      %v469 = vunpack.c.l.b16 %v389
      %v470 = vunpack.c.l.b16 %v390
      %v471 = vunpack.c.l.b16 %v391
      %v472 = vunpack.c.l.b16 %v392
      %v473 = vunpack.c.l.b16 %v393
      %v474 = vunpack.c.l.b16 %v394
      %v475 = vpack.c.b16 %v444, %v443
      %v476 = vpack.c.b16 %v446, %v445
      %v477 = vpack.c.b16 %v448, %v447
      %v478 = vpack.c.b16 %v450, %v449
      %v479 = vpack.c.b16 %v452, %v451
      %v480 = vpack.c.b16 %v454, %v453
      %v481 = vpack.c.b16 %v456, %v455
      %v482 = vpack.c.b16 %v458, %v457
      %v483 = vpack.c.b16 %v460, %v459
      %v484 = vpack.c.b16 %v462, %v461
      %v485 = vpack.c.b16 %v464, %v463
      %v486 = vpack.c.b16 %v466, %v465
      %v487 = vpack.c.b16 %v468, %v467
      %v488 = vpack.c.b16 %v470, %v469
      %v489 = vpack.c.b16 %v472, %v471
      %v490 = vpack.c.b16 %v474, %v473
      %v523 = vunpack.c.l.b16 %v395
      %v524 = vunpack.c.l.b16 %v396
      %v525 = vunpack.c.l.b16 %v397
      %v526 = vunpack.c.l.b16 %v398
      %v527 = vunpack.c.l.b16 %v399
      %v528 = vunpack.c.l.b16 %v400
      %v529 = vunpack.c.l.b16 %v401
      %v530 = vunpack.c.l.b16 %v402
      %v531 = vunpack.c.l.b16 %v403
      %v532 = vunpack.c.l.b16 %v404
      %v533 = vunpack.c.l.b16 %v405
      %v534 = vunpack.c.l.b16 %v406
      %v535 = vunpack.c.l.b16 %v407
      %v536 = vunpack.c.l.b16 %v408
      %v537 = vunpack.c.l.b16 %v409
      %v538 = vunpack.c.l.b16 %v410
      %v539 = vpack.c.b16 %v524, %v523
      %v540 = vpack.c.b16 %v526, %v525
      %v541 = vpack.c.b16 %v528, %v527
      %v542 = vpack.c.b16 %v530, %v529
      %v543 = vpack.c.b16 %v532, %v531
      %v544 = vpack.c.b16 %v534, %v533
      %v545 = vpack.c.b16 %v536, %v535
      %v546 = vpack.c.b16 %v538, %v537
      %555 = vmatprep.subr.bf16.mxu0 0
      %556 = vmatpush1.bf16.msra.mxu0 %v539
      %557 = vmatprep.subr.bf16.mxu0 0
      %558 = vmatpush1.bf16.msra.mxu0 %v540
      %559 = vmatprep.subr.bf16.mxu0 0
      %560 = vmatpush1.bf16.msra.mxu0 %v541
      %561 = vmatprep.subr.bf16.mxu0 0
      %562 = vmatpush1.bf16.msra.mxu0 %v542
      %563 = vmatprep.subr.bf16.mxu0 0
      %564 = vmatpush1.bf16.msra.mxu0 %v543
      %565 = vmatprep.subr.bf16.mxu0 0
      %566 = vmatpush1.bf16.msra.mxu0 %v544
      %567 = vmatprep.subr.bf16.mxu0 0
      %568 = vmatpush1.bf16.msra.mxu0 %v545
      %569 = vmatprep.subr.bf16.mxu0 0
      %570 = vmatpush1.bf16.msra.mxu0 %v546
      %571 = vmatprep.subr.bf16.mxu0 0
      %572 = vmatpush1.bf16.msra.mxu0 0
      %573 = vmatprep.subr.bf16.mxu0 0
      %574 = vmatpush1.bf16.msra.mxu0 0
      %575 = vmatprep.subr.bf16.mxu0 0
      %576 = vmatpush1.bf16.msra.mxu0 0
      %577 = vmatprep.subr.bf16.mxu0 0
      %578 = vmatpush1.bf16.msra.mxu0 0
      %579 = vmatprep.subr.bf16.mxu0 0
      %580 = vmatpush1.bf16.msra.mxu0 0
      %581 = vmatprep.subr.bf16.mxu0 0
      %582 = vmatpush1.bf16.msra.mxu0 0
      %583 = vmatprep.subr.bf16.mxu0 0
      %584 = vmatpush1.bf16.msra.mxu0 0
      %585 = vmatprep.subr.bf16.mxu0 0
      %586 = vmatpush1.bf16.msra.mxu0 0
      %587 = vmatprep.mubr.bf16.mxu0 0
      %588 = vmatmul.mubr.bf16.gmra.mrb[0].mxu0 %v475
      %v589 = vpop.f32.mrb[0].mxu0
      %v590 = vadd.f32 0.0, %v589
      %v591 = vpop.f32.mrb[0].mxu0
      %v592 = vpop.f32.mrb[0].mxu0
      %v593 = vadd.f32 0.0, %v592
      %v594 = vpop.f32.mrb[0].mxu0
      %595 = vmatprep.mubr.bf16.mxu0 0
      %596 = vmatmul.mubr.bf16.gmra.mrb[0].mxu0 %v476
      %v597 = vpop.f32.mrb[0].mxu0
      %v598 = vadd.f32 0.0, %v597
      %v599 = vpop.f32.mrb[0].mxu0
      %v600 = vpop.f32.mrb[0].mxu0
      %v601 = vadd.f32 0.0, %v600
      %v602 = vpop.f32.mrb[0].mxu0
      %603 = vmatprep.mubr.bf16.mxu0 0
      %604 = vmatmul.mubr.bf16.gmra.mrb[0].mxu0 %v477
      %v605 = vpop.f32.mrb[0].mxu0
      %v606 = vadd.f32 0.0, %v605
      %v607 = vpop.f32.mrb[0].mxu0
      %v608 = vpop.f32.mrb[0].mxu0
      %v609 = vadd.f32 0.0, %v608
      %v610 = vpop.f32.mrb[0].mxu0
      %611 = vmatprep.mubr.bf16.mxu0 0
      %612 = vmatmul.mubr.bf16.gmra.mrb[0].mxu0 %v478
      %v613 = vpop.f32.mrb[0].mxu0
      %v614 = vadd.f32 0.0, %v613
      %v615 = vpop.f32.mrb[0].mxu0
      %v616 = vpop.f32.mrb[0].mxu0
      %v617 = vadd.f32 0.0, %v616
      %v618 = vpop.f32.mrb[0].mxu0
      %619 = vmatprep.mubr.bf16.mxu0 0
      %620 = vmatmul.mubr.bf16.gmra.mrb[0].mxu0 %v479
      %v621 = vpop.f32.mrb[0].mxu0
      %v622 = vadd.f32 0.0, %v621
      %v623 = vpop.f32.mrb[0].mxu0
      %v624 = vpop.f32.mrb[0].mxu0
      %v625 = vadd.f32 0.0, %v624
      %v626 = vpop.f32.mrb[0].mxu0
      %627 = vmatprep.mubr.bf16.mxu0 0
      %628 = vmatmul.mubr.bf16.gmra.mrb[0].mxu0 %v480
      %v629 = vpop.f32.mrb[0].mxu0
      %v630 = vadd.f32 0.0, %v629
      %v631 = vpop.f32.mrb[0].mxu0
      %v632 = vpop.f32.mrb[0].mxu0
      %v633 = vadd.f32 0.0, %v632
      %v634 = vpop.f32.mrb[0].mxu0
      %635 = vmatprep.mubr.bf16.mxu0 0
      %636 = vmatmul.mubr.bf16.gmra.mrb[0].mxu0 %v481
      %v637 = vpop.f32.mrb[0].mxu0
      %v638 = vadd.f32 0.0, %v637
      %v639 = vpop.f32.mrb[0].mxu0
      %v640 = vpop.f32.mrb[0].mxu0
      %v641 = vadd.f32 0.0, %v640
      %v642 = vpop.f32.mrb[0].mxu0
      %643 = vmatprep.mubr.bf16.mxu0 0
      %644 = vmatmul.mubr.bf16.gmra.mrb[0].mxu0 %v482
      %v645 = vpop.f32.mrb[0].mxu0
      %v646 = vadd.f32 0.0, %v645
      %v647 = vpop.f32.mrb[0].mxu0
      %v648 = vpop.f32.mrb[0].mxu0
      %v649 = vadd.f32 0.0, %v648
      %v650 = vpop.f32.mrb[0].mxu0
      %651 = vmatprep.mubr.bf16.mxu0 0
      %652 = vmatmul.mubr.bf16.gmra.mrb[0].mxu0 %v483
      %v653 = vpop.f32.mrb[0].mxu0
      %v654 = vadd.f32 0.0, %v653
      %v655 = vpop.f32.mrb[0].mxu0
      %v656 = vpop.f32.mrb[0].mxu0
      %v657 = vadd.f32 0.0, %v656
      %v658 = vpop.f32.mrb[0].mxu0
      %659 = vmatprep.mubr.bf16.mxu0 0
      %660 = vmatmul.mubr.bf16.gmra.mrb[0].mxu0 %v484
      %v661 = vpop.f32.mrb[0].mxu0
      %v662 = vadd.f32 0.0, %v661
      %v663 = vpop.f32.mrb[0].mxu0
      %v664 = vpop.f32.mrb[0].mxu0
      %v665 = vadd.f32 0.0, %v664
      %v666 = vpop.f32.mrb[0].mxu0
      %667 = vmatprep.mubr.bf16.mxu0 0
      %668 = vmatmul.mubr.bf16.gmra.mrb[0].mxu0 %v485
      %v669 = vpop.f32.mrb[0].mxu0
      %v670 = vadd.f32 0.0, %v669
      %v671 = vpop.f32.mrb[0].mxu0
      %v672 = vpop.f32.mrb[0].mxu0
      %v673 = vadd.f32 0.0, %v672
      %v674 = vpop.f32.mrb[0].mxu0
      %675 = vmatprep.mubr.bf16.mxu0 0
      %676 = vmatmul.mubr.bf16.gmra.mrb[0].mxu0 %v486
      %v677 = vpop.f32.mrb[0].mxu0
      %v678 = vadd.f32 0.0, %v677
      %v679 = vpop.f32.mrb[0].mxu0
      %v680 = vpop.f32.mrb[0].mxu0
      %v681 = vadd.f32 0.0, %v680
      %v682 = vpop.f32.mrb[0].mxu0
      %683 = vmatprep.mubr.bf16.mxu0 0
      %684 = vmatmul.mubr.bf16.gmra.mrb[0].mxu0 %v487
      %v685 = vpop.f32.mrb[0].mxu0
      %v686 = vadd.f32 0.0, %v685
      %v687 = vpop.f32.mrb[0].mxu0
      %v688 = vpop.f32.mrb[0].mxu0
      %v689 = vadd.f32 0.0, %v688
      %v690 = vpop.f32.mrb[0].mxu0
      %691 = vmatprep.mubr.bf16.mxu0 0
      %692 = vmatmul.mubr.bf16.gmra.mrb[0].mxu0 %v488
      %v693 = vpop.f32.mrb[0].mxu0
      %v694 = vadd.f32 0.0, %v693
      %v695 = vpop.f32.mrb[0].mxu0
      %v696 = vpop.f32.mrb[0].mxu0
      %v697 = vadd.f32 0.0, %v696
      %v698 = vpop.f32.mrb[0].mxu0
      %699 = vmatprep.mubr.bf16.mxu0 0
      %700 = vmatmul.mubr.bf16.gmra.mrb[0].mxu0 %v489
      %v701 = vpop.f32.mrb[0].mxu0
      %v702 = vadd.f32 0.0, %v701
      %v703 = vpop.f32.mrb[0].mxu0
      %v704 = vpop.f32.mrb[0].mxu0
      %v705 = vadd.f32 0.0, %v704
      %v706 = vpop.f32.mrb[0].mxu0
      %707 = vmatprep.mubr.bf16.mxu0 0
      %708 = vmatmul.mubr.bf16.gmra.mrb[0].mxu0 %v490
      %v709 = vpop.f32.mrb[0].mxu0
      %v710 = vadd.f32 0.0, %v709
      %v711 = vpop.f32.mrb[0].mxu0
      %v712 = vpop.f32.mrb[0].mxu0
      %v713 = vadd.f32 0.0, %v712
      %v714 = vpop.f32.mrb[0].mxu0
      %715 = vdwg.mxu0
      %v716 = vld [vmem:[%s2] sm:$0x1]
      %v718 = vlaneseq
      %v719 = vshrl.u32 %v718, 7
      %v720 = vsub.s32 0, %v719
      %v721 = vrot.slane %v716, %v720
      %v723 = vmul.f32 %v590, %v721
      %v724 = vmul.f32 %v593, %v721
      %v725 = vmul.f32 %v598, %v721
      %v726 = vmul.f32 %v601, %v721
      %v727 = vmul.f32 %v606, %v721
      %v728 = vmul.f32 %v609, %v721
      %v729 = vmul.f32 %v614, %v721
      %v730 = vmul.f32 %v617, %v721
      %v731 = vmul.f32 %v622, %v721
      %v732 = vmul.f32 %v625, %v721
      %v733 = vmul.f32 %v630, %v721
      %v734 = vmul.f32 %v633, %v721
      %v735 = vmul.f32 %v638, %v721
      %v736 = vmul.f32 %v641, %v721
      %v737 = vmul.f32 %v646, %v721
      %v738 = vmul.f32 %v649, %v721
      %v739 = vmul.f32 %v654, %v721
      %v740 = vmul.f32 %v657, %v721
      %v741 = vmul.f32 %v662, %v721
      %v742 = vmul.f32 %v665, %v721
      %v743 = vmul.f32 %v670, %v721
      %v744 = vmul.f32 %v673, %v721
      %v745 = vmul.f32 %v678, %v721
      %v746 = vmul.f32 %v681, %v721
      %v747 = vmul.f32 %v686, %v721
      %v748 = vmul.f32 %v689, %v721
      %v749 = vmul.f32 %v694, %v721
      %v750 = vmul.f32 %v697, %v721
      %v751 = vmul.f32 %v702, %v721
      %v752 = vmul.f32 %v705, %v721
      %v753 = vmul.f32 %v710, %v721
      %v754 = vmul.f32 %v713, %v721
      %v755 = vld [vmem:[%s3] sm:$0x1]
      %v757 = vlaneseq
      %v758 = vshrl.u32 %v757, 7
      %v759 = vsub.s32 0, %v758
      %v760 = vrot.slane %v755, %v759
      %v762 = vadd.f32 %v723, %v760
      %v763 = vadd.f32 %v724, %v760
      %v764 = vadd.f32 %v725, %v760
      %v765 = vadd.f32 %v726, %v760
      %v766 = vadd.f32 %v727, %v760
      %v767 = vadd.f32 %v728, %v760
      %v768 = vadd.f32 %v729, %v760
      %v769 = vadd.f32 %v730, %v760
      %v770 = vadd.f32 %v731, %v760
      %v771 = vadd.f32 %v732, %v760
      %v772 = vadd.f32 %v733, %v760
      %v773 = vadd.f32 %v734, %v760
      %v774 = vadd.f32 %v735, %v760
      %v775 = vadd.f32 %v736, %v760
      %v776 = vadd.f32 %v737, %v760
      %v777 = vadd.f32 %v738, %v760
      %v778 = vadd.f32 %v739, %v760
      %v779 = vadd.f32 %v740, %v760
      %v780 = vadd.f32 %v741, %v760
      %v781 = vadd.f32 %v742, %v760
      %v782 = vadd.f32 %v743, %v760
      %v783 = vadd.f32 %v744, %v760
      %v784 = vadd.f32 %v745, %v760
      %v785 = vadd.f32 %v746, %v760
      %v786 = vadd.f32 %v747, %v760
      %v787 = vadd.f32 %v748, %v760
      %v788 = vadd.f32 %v749, %v760
      %v789 = vadd.f32 %v750, %v760
      %v790 = vadd.f32 %v751, %v760
      %v791 = vadd.f32 %v752, %v760
      %v792 = vadd.f32 %v753, %v760
      %v793 = vadd.f32 %v754, %v760
      %v794 = vmax.f32 %v762, 0.0
      %v795 = vmax.f32 %v763, 0.0
      %v796 = vmax.f32 %v764, 0.0
      %v797 = vmax.f32 %v765, 0.0
      %v798 = vmax.f32 %v766, 0.0
      %v799 = vmax.f32 %v767, 0.0
      %v800 = vmax.f32 %v768, 0.0
      %v801 = vmax.f32 %v769, 0.0
      %v802 = vmax.f32 %v770, 0.0
      %v803 = vmax.f32 %v771, 0.0
      %v804 = vmax.f32 %v772, 0.0
      %v805 = vmax.f32 %v773, 0.0
      %v806 = vmax.f32 %v774, 0.0
      %v807 = vmax.f32 %v775, 0.0
      %v808 = vmax.f32 %v776, 0.0
      %v809 = vmax.f32 %v777, 0.0
      %v810 = vmax.f32 %v778, 0.0
      %v811 = vmax.f32 %v779, 0.0
      %v812 = vmax.f32 %v780, 0.0
      %v813 = vmax.f32 %v781, 0.0
      %v814 = vmax.f32 %v782, 0.0
      %v815 = vmax.f32 %v783, 0.0
      %v816 = vmax.f32 %v784, 0.0
      %v817 = vmax.f32 %v785, 0.0
      %v818 = vmax.f32 %v786, 0.0
      %v819 = vmax.f32 %v787, 0.0
      %v820 = vmax.f32 %v788, 0.0
      %v821 = vmax.f32 %v789, 0.0
      %v822 = vmax.f32 %v790, 0.0
      %v823 = vmax.f32 %v791, 0.0
      %v824 = vmax.f32 %v792, 0.0
      %v825 = vmax.f32 %v793, 0.0
      %v826 = vpack.c.bf16 %v795, %v794
      %v827 = vpack.c.bf16 %v797, %v796
      %v828 = vpack.c.bf16 %v799, %v798
      %v829 = vpack.c.bf16 %v801, %v800
      %v830 = vpack.c.bf16 %v803, %v802
      %v831 = vpack.c.bf16 %v805, %v804
      %v832 = vpack.c.bf16 %v807, %v806
      %v833 = vpack.c.bf16 %v809, %v808
      %v834 = vpack.c.bf16 %v811, %v810
      %v835 = vpack.c.bf16 %v813, %v812
      %v836 = vpack.c.bf16 %v815, %v814
      %v837 = vpack.c.bf16 %v817, %v816
      %v838 = vpack.c.bf16 %v819, %v818
      %v839 = vpack.c.bf16 %v821, %v820
      %v840 = vpack.c.bf16 %v823, %v822
      %v841 = vpack.c.bf16 %v825, %v824
      %v842 = vlaneseq
      %v843 = vshrl.u32 %v842, 7
      %v844 = vadd.s32 %v843, 8
      %v845 = vadd.s32 %v843, 16
      %v846 = vadd.s32 %v843, 24
      %v847 = vadd.s32 %v843, 32
      %v848 = vadd.s32 %v843, 40
      %v849 = vadd.s32 %v843, 48
      %v850 = vadd.s32 %v843, 56
      %v851 = vadd.s32 %v843, 64
      %v852 = vadd.s32 %v843, 72
      %v853 = vadd.s32 %v843, 80
      %v854 = vadd.s32 %v843, 88
      %v855 = vadd.s32 %v843, 96
      %v856 = vadd.s32 %v843, 104
      %v857 = vadd.s32 %v843, 112
      %v858 = vadd.s32 %v843, 120
      %v859 = vadd.s32 %v843, 128
      %v860 = vadd.s32 %v843, 136
      %v861 = vadd.s32 %v843, 144
      %v862 = vadd.s32 %v843, 152
      %v863 = vadd.s32 %v843, 160
      %v864 = vadd.s32 %v843, 168
      %v865 = vadd.s32 %v843, 176
      %v866 = vadd.s32 %v843, 184
      %v867 = vadd.s32 %v843, 192
      %v868 = vadd.s32 %v843, 200
      %v869 = vadd.s32 %v843, 208
      %v870 = vadd.s32 %v843, 216
      %v871 = vadd.s32 %v843, 224
      %v872 = vadd.s32 %v843, 232
      %v873 = vadd.s32 %v843, 240
      %v874 = vadd.s32 %v843, 248
      %vm875 = vcmp.lt.s32.totalorder %v843, 0
      %v876 = vsub.s32 0, %v843
      %v877 = vsel %vm875, %v876, %v843
      %v878 = vshrl.u32 %v877, 4
      %v879 = vand.u32 %v877, 15
      %v880 = vsub.s32 0, %v879
      %v881 = vsel %vm875, %v880, %v879
      %vm882 = vcmp.lt.s32.totalorder %v844, 0
      %v883 = vsub.s32 0, %v844
      %v884 = vsel %vm882, %v883, %v844
      %v885 = vshrl.u32 %v884, 4
      %v886 = vand.u32 %v884, 15
      %v887 = vsub.s32 0, %v886
      %v888 = vsel %vm882, %v887, %v886
      %vm889 = vcmp.lt.s32.totalorder %v845, 0
      %v890 = vsub.s32 0, %v845
      %v891 = vsel %vm889, %v890, %v845
      %v892 = vshrl.u32 %v891, 4
      %v893 = vand.u32 %v891, 15
      %v894 = vsub.s32 0, %v893
      %v895 = vsel %vm889, %v894, %v893
      %vm896 = vcmp.lt.s32.totalorder %v846, 0
      %v897 = vsub.s32 0, %v846
      %v898 = vsel %vm896, %v897, %v846
      %v899 = vshrl.u32 %v898, 4
      %v900 = vand.u32 %v898, 15
      %v901 = vsub.s32 0, %v900
      %v902 = vsel %vm896, %v901, %v900
      %vm903 = vcmp.lt.s32.totalorder %v847, 0
      %v904 = vsub.s32 0, %v847
      %v905 = vsel %vm903, %v904, %v847
      %v906 = vshrl.u32 %v905, 4
      %v907 = vand.u32 %v905, 15
      %v908 = vsub.s32 0, %v907
      %v909 = vsel %vm903, %v908, %v907
      %vm910 = vcmp.lt.s32.totalorder %v848, 0
      %v911 = vsub.s32 0, %v848
      %v912 = vsel %vm910, %v911, %v848
      %v913 = vshrl.u32 %v912, 4
      %v914 = vand.u32 %v912, 15
      %v915 = vsub.s32 0, %v914
      %v916 = vsel %vm910, %v915, %v914
      %vm917 = vcmp.lt.s32.totalorder %v849, 0
      %v918 = vsub.s32 0, %v849
      %v919 = vsel %vm917, %v918, %v849
      %v920 = vshrl.u32 %v919, 4
      %v921 = vand.u32 %v919, 15
      %v922 = vsub.s32 0, %v921
      %v923 = vsel %vm917, %v922, %v921
      %vm924 = vcmp.lt.s32.totalorder %v850, 0
      %v925 = vsub.s32 0, %v850
      %v926 = vsel %vm924, %v925, %v850
      %v927 = vshrl.u32 %v926, 4
      %v928 = vand.u32 %v926, 15
      %v929 = vsub.s32 0, %v928
      %v930 = vsel %vm924, %v929, %v928
      %vm931 = vcmp.lt.s32.totalorder %v851, 0
      %v932 = vsub.s32 0, %v851
      %v933 = vsel %vm931, %v932, %v851
      %v934 = vshrl.u32 %v933, 4
      %v935 = vand.u32 %v933, 15
      %v936 = vsub.s32 0, %v935
      %v937 = vsel %vm931, %v936, %v935
      %vm938 = vcmp.lt.s32.totalorder %v852, 0
      %v939 = vsub.s32 0, %v852
      %v940 = vsel %vm938, %v939, %v852
      %v941 = vshrl.u32 %v940, 4
      %v942 = vand.u32 %v940, 15
      %v943 = vsub.s32 0, %v942
      %v944 = vsel %vm938, %v943, %v942
      %vm945 = vcmp.lt.s32.totalorder %v853, 0
      %v946 = vsub.s32 0, %v853
      %v947 = vsel %vm945, %v946, %v853
      %v948 = vshrl.u32 %v947, 4
      %v949 = vand.u32 %v947, 15
      %v950 = vsub.s32 0, %v949
      %v951 = vsel %vm945, %v950, %v949
      %vm952 = vcmp.lt.s32.totalorder %v854, 0
      %v953 = vsub.s32 0, %v854
      %v954 = vsel %vm952, %v953, %v854
      %v955 = vshrl.u32 %v954, 4
      %v956 = vand.u32 %v954, 15
      %v957 = vsub.s32 0, %v956
      %v958 = vsel %vm952, %v957, %v956
      %vm959 = vcmp.lt.s32.totalorder %v855, 0
      %v960 = vsub.s32 0, %v855
      %v961 = vsel %vm959, %v960, %v855
      %v962 = vshrl.u32 %v961, 4
      %v963 = vand.u32 %v961, 15
      %v964 = vsub.s32 0, %v963
      %v965 = vsel %vm959, %v964, %v963
      %vm966 = vcmp.lt.s32.totalorder %v856, 0
      %v967 = vsub.s32 0, %v856
      %v968 = vsel %vm966, %v967, %v856
      %v969 = vshrl.u32 %v968, 4
      %v970 = vand.u32 %v968, 15
      %v971 = vsub.s32 0, %v970
      %v972 = vsel %vm966, %v971, %v970
      %vm973 = vcmp.lt.s32.totalorder %v857, 0
      %v974 = vsub.s32 0, %v857
      %v975 = vsel %vm973, %v974, %v857
      %v976 = vshrl.u32 %v975, 4
      %v977 = vand.u32 %v975, 15
      %v978 = vsub.s32 0, %v977
      %v979 = vsel %vm973, %v978, %v977
      %vm980 = vcmp.lt.s32.totalorder %v858, 0
      %v981 = vsub.s32 0, %v858
      %v982 = vsel %vm980, %v981, %v858
      %v983 = vshrl.u32 %v982, 4
      %v984 = vand.u32 %v982, 15
      %v985 = vsub.s32 0, %v984
      %v986 = vsel %vm980, %v985, %v984
      %vm987 = vcmp.lt.s32.totalorder %v859, 0
      %v988 = vsub.s32 0, %v859
      %v989 = vsel %vm987, %v988, %v859
      %v990 = vshrl.u32 %v989, 4
      %v991 = vand.u32 %v989, 15
      %v992 = vsub.s32 0, %v991
      %v993 = vsel %vm987, %v992, %v991
      %vm994 = vcmp.lt.s32.totalorder %v860, 0
      %v995 = vsub.s32 0, %v860
      %v996 = vsel %vm994, %v995, %v860
      %v997 = vshrl.u32 %v996, 4
      %v998 = vand.u32 %v996, 15
      %v999 = vsub.s32 0, %v998
      %v1000 = vsel %vm994, %v999, %v998
      %vm1001 = vcmp.lt.s32.totalorder %v861, 0
      %v1002 = vsub.s32 0, %v861
      %v1003 = vsel %vm1001, %v1002, %v861
      %v1004 = vshrl.u32 %v1003, 4
      %v1005 = vand.u32 %v1003, 15
      %v1006 = vsub.s32 0, %v1005
      %v1007 = vsel %vm1001, %v1006, %v1005
      %vm1008 = vcmp.lt.s32.totalorder %v862, 0
      %v1009 = vsub.s32 0, %v862
      %v1010 = vsel %vm1008, %v1009, %v862
      %v1011 = vshrl.u32 %v1010, 4
      %v1012 = vand.u32 %v1010, 15
      %v1013 = vsub.s32 0, %v1012
      %v1014 = vsel %vm1008, %v1013, %v1012
      %vm1015 = vcmp.lt.s32.totalorder %v863, 0
      %v1016 = vsub.s32 0, %v863
      %v1017 = vsel %vm1015, %v1016, %v863
      %v1018 = vshrl.u32 %v1017, 4
      %v1019 = vand.u32 %v1017, 15
      %v1020 = vsub.s32 0, %v1019
      %v1021 = vsel %vm1015, %v1020, %v1019
      %vm1022 = vcmp.lt.s32.totalorder %v864, 0
      %v1023 = vsub.s32 0, %v864
      %v1024 = vsel %vm1022, %v1023, %v864
      %v1025 = vshrl.u32 %v1024, 4
      %v1026 = vand.u32 %v1024, 15
      %v1027 = vsub.s32 0, %v1026
      %v1028 = vsel %vm1022, %v1027, %v1026
      %vm1029 = vcmp.lt.s32.totalorder %v865, 0
      %v1030 = vsub.s32 0, %v865
      %v1031 = vsel %vm1029, %v1030, %v865
      %v1032 = vshrl.u32 %v1031, 4
      %v1033 = vand.u32 %v1031, 15
      %v1034 = vsub.s32 0, %v1033
      %v1035 = vsel %vm1029, %v1034, %v1033
      %vm1036 = vcmp.lt.s32.totalorder %v866, 0
      %v1037 = vsub.s32 0, %v866
      %v1038 = vsel %vm1036, %v1037, %v866
      %v1039 = vshrl.u32 %v1038, 4
      %v1040 = vand.u32 %v1038, 15
      %v1041 = vsub.s32 0, %v1040
      %v1042 = vsel %vm1036, %v1041, %v1040
      %vm1043 = vcmp.lt.s32.totalorder %v867, 0
      %v1044 = vsub.s32 0, %v867
      %v1045 = vsel %vm1043, %v1044, %v867
      %v1046 = vshrl.u32 %v1045, 4
      %v1047 = vand.u32 %v1045, 15
      %v1048 = vsub.s32 0, %v1047
      %v1049 = vsel %vm1043, %v1048, %v1047
      %vm1050 = vcmp.lt.s32.totalorder %v868, 0
      %v1051 = vsub.s32 0, %v868
      %v1052 = vsel %vm1050, %v1051, %v868
      %v1053 = vshrl.u32 %v1052, 4
      %v1054 = vand.u32 %v1052, 15
      %v1055 = vsub.s32 0, %v1054
      %v1056 = vsel %vm1050, %v1055, %v1054
      %vm1057 = vcmp.lt.s32.totalorder %v869, 0
      %v1058 = vsub.s32 0, %v869
      %v1059 = vsel %vm1057, %v1058, %v869
      %v1060 = vshrl.u32 %v1059, 4
      %v1061 = vand.u32 %v1059, 15
      %v1062 = vsub.s32 0, %v1061
      %v1063 = vsel %vm1057, %v1062, %v1061
      %vm1064 = vcmp.lt.s32.totalorder %v870, 0
      %v1065 = vsub.s32 0, %v870
      %v1066 = vsel %vm1064, %v1065, %v870
      %v1067 = vshrl.u32 %v1066, 4
      %v1068 = vand.u32 %v1066, 15
      %v1069 = vsub.s32 0, %v1068
      %v1070 = vsel %vm1064, %v1069, %v1068
      %vm1071 = vcmp.lt.s32.totalorder %v871, 0
      %v1072 = vsub.s32 0, %v871
      %v1073 = vsel %vm1071, %v1072, %v871
      %v1074 = vshrl.u32 %v1073, 4
      %v1075 = vand.u32 %v1073, 15
      %v1076 = vsub.s32 0, %v1075
      %v1077 = vsel %vm1071, %v1076, %v1075
      %vm1078 = vcmp.lt.s32.totalorder %v872, 0
      %v1079 = vsub.s32 0, %v872
      %v1080 = vsel %vm1078, %v1079, %v872
      %v1081 = vshrl.u32 %v1080, 4
      %v1082 = vand.u32 %v1080, 15
      %v1083 = vsub.s32 0, %v1082
      %v1084 = vsel %vm1078, %v1083, %v1082
      %vm1085 = vcmp.lt.s32.totalorder %v873, 0
      %v1086 = vsub.s32 0, %v873
      %v1087 = vsel %vm1085, %v1086, %v873
      %v1088 = vshrl.u32 %v1087, 4
      %v1089 = vand.u32 %v1087, 15
      %v1090 = vsub.s32 0, %v1089
      %v1091 = vsel %vm1085, %v1090, %v1089
      %vm1092 = vcmp.lt.s32.totalorder %v874, 0
      %v1093 = vsub.s32 0, %v874
      %v1094 = vsel %vm1092, %v1093, %v874
      %v1095 = vshrl.u32 %v1094, 4
      %v1096 = vand.u32 %v1094, 15
      %v1097 = vsub.s32 0, %v1096
      %v1098 = vsel %vm1092, %v1097, %v1096
      %vm1099 = vcmp.ne.s32.totalorder %v881, 0
      %vm1100 = vcmp.ne.s32.totalorder %v888, 0
      %vm1101 = vcmp.ne.s32.totalorder %v895, 0
      %vm1102 = vcmp.ne.s32.totalorder %v902, 0
      %vm1103 = vcmp.ne.s32.totalorder %v909, 0
      %vm1104 = vcmp.ne.s32.totalorder %v916, 0
      %vm1105 = vcmp.ne.s32.totalorder %v923, 0
      %vm1106 = vcmp.ne.s32.totalorder %v930, 0
      %vm1107 = vcmp.ne.s32.totalorder %v937, 0
      %vm1108 = vcmp.ne.s32.totalorder %v944, 0
      %vm1109 = vcmp.ne.s32.totalorder %v951, 0
      %vm1110 = vcmp.ne.s32.totalorder %v958, 0
      %vm1111 = vcmp.ne.s32.totalorder %v965, 0
      %vm1112 = vcmp.ne.s32.totalorder %v972, 0
      %vm1113 = vcmp.ne.s32.totalorder %v979, 0
      %vm1114 = vcmp.ne.s32.totalorder %v986, 0
      %vm1115 = vcmp.ne.s32.totalorder %v993, 0
      %vm1116 = vcmp.ne.s32.totalorder %v1000, 0
      %vm1117 = vcmp.ne.s32.totalorder %v1007, 0
      %vm1118 = vcmp.ne.s32.totalorder %v1014, 0
      %vm1119 = vcmp.ne.s32.totalorder %v1021, 0
      %vm1120 = vcmp.ne.s32.totalorder %v1028, 0
      %vm1121 = vcmp.ne.s32.totalorder %v1035, 0
      %vm1122 = vcmp.ne.s32.totalorder %v1042, 0
      %vm1123 = vcmp.ne.s32.totalorder %v1049, 0
      %vm1124 = vcmp.ne.s32.totalorder %v1056, 0
      %vm1125 = vcmp.ne.s32.totalorder %v1063, 0
      %vm1126 = vcmp.ne.s32.totalorder %v1070, 0
      %vm1127 = vcmp.ne.s32.totalorder %v1077, 0
      %vm1128 = vcmp.ne.s32.totalorder %v1084, 0
      %vm1129 = vcmp.ne.s32.totalorder %v1091, 0
      %vm1130 = vcmp.ne.s32.totalorder %v1098, 0
      %vm1131 = vcmp.lt.s32.totalorder %v881, 0
      %vm1132 = vcmp.lt.s32.totalorder %v888, 0
      %vm1133 = vcmp.lt.s32.totalorder %v895, 0
      %vm1134 = vcmp.lt.s32.totalorder %v902, 0
      %vm1135 = vcmp.lt.s32.totalorder %v909, 0
      %vm1136 = vcmp.lt.s32.totalorder %v916, 0
      %vm1137 = vcmp.lt.s32.totalorder %v923, 0
      %vm1138 = vcmp.lt.s32.totalorder %v930, 0
      %vm1139 = vcmp.lt.s32.totalorder %v937, 0
      %vm1140 = vcmp.lt.s32.totalorder %v944, 0
      %vm1141 = vcmp.lt.s32.totalorder %v951, 0
      %vm1142 = vcmp.lt.s32.totalorder %v958, 0
      %vm1143 = vcmp.lt.s32.totalorder %v965, 0
      %vm1144 = vcmp.lt.s32.totalorder %v972, 0
      %vm1145 = vcmp.lt.s32.totalorder %v979, 0
      %vm1146 = vcmp.lt.s32.totalorder %v986, 0
      %vm1147 = vcmp.lt.s32.totalorder %v993, 0
      %vm1148 = vcmp.lt.s32.totalorder %v1000, 0
      %vm1149 = vcmp.lt.s32.totalorder %v1007, 0
      %vm1150 = vcmp.lt.s32.totalorder %v1014, 0
      %vm1151 = vcmp.lt.s32.totalorder %v1021, 0
      %vm1152 = vcmp.lt.s32.totalorder %v1028, 0
      %vm1153 = vcmp.lt.s32.totalorder %v1035, 0
      %vm1154 = vcmp.lt.s32.totalorder %v1042, 0
      %vm1155 = vcmp.lt.s32.totalorder %v1049, 0
      %vm1156 = vcmp.lt.s32.totalorder %v1056, 0
      %vm1157 = vcmp.lt.s32.totalorder %v1063, 0
      %vm1158 = vcmp.lt.s32.totalorder %v1070, 0
      %vm1159 = vcmp.lt.s32.totalorder %v1077, 0
      %vm1160 = vcmp.lt.s32.totalorder %v1084, 0
      %vm1161 = vcmp.lt.s32.totalorder %v1091, 0
      %vm1162 = vcmp.lt.s32.totalorder %v1098, 0
      %vm1163 = vmand %vm1131, %vm1099
      %vm1164 = vmand %vm1132, %vm1100
      %vm1165 = vmand %vm1133, %vm1101
      %vm1166 = vmand %vm1134, %vm1102
      %vm1167 = vmand %vm1135, %vm1103
      %vm1168 = vmand %vm1136, %vm1104
      %vm1169 = vmand %vm1137, %vm1105
      %vm1170 = vmand %vm1138, %vm1106
      %vm1171 = vmand %vm1139, %vm1107
      %vm1172 = vmand %vm1140, %vm1108
      %vm1173 = vmand %vm1141, %vm1109
      %vm1174 = vmand %vm1142, %vm1110
      %vm1175 = vmand %vm1143, %vm1111
      %vm1176 = vmand %vm1144, %vm1112
      %vm1177 = vmand %vm1145, %vm1113
      %vm1178 = vmand %vm1146, %vm1114
      %vm1179 = vmand %vm1147, %vm1115
      %vm1180 = vmand %vm1148, %vm1116
      %vm1181 = vmand %vm1149, %vm1117
      %vm1182 = vmand %vm1150, %vm1118
      %vm1183 = vmand %vm1151, %vm1119
      %vm1184 = vmand %vm1152, %vm1120
      %vm1185 = vmand %vm1153, %vm1121
      %vm1186 = vmand %vm1154, %vm1122
      %vm1187 = vmand %vm1155, %vm1123
      %vm1188 = vmand %vm1156, %vm1124
      %vm1189 = vmand %vm1157, %vm1125
      %vm1190 = vmand %vm1158, %vm1126
      %vm1191 = vmand %vm1159, %vm1127
      %vm1192 = vmand %vm1160, %vm1128
      %vm1193 = vmand %vm1161, %vm1129
      %vm1194 = vmand %vm1162, %vm1130
      %v1195 = vadd.s32 %v881, 16
      %v1196 = vadd.s32 %v888, 16
      %v1197 = vadd.s32 %v895, 16
      %v1198 = vadd.s32 %v902, 16
      %v1199 = vadd.s32 %v909, 16
      %v1200 = vadd.s32 %v916, 16
      %v1201 = vadd.s32 %v923, 16
      %v1202 = vadd.s32 %v930, 16
      %v1203 = vadd.s32 %v937, 16
      %v1204 = vadd.s32 %v944, 16
      %v1205 = vadd.s32 %v951, 16
      %v1206 = vadd.s32 %v958, 16
      %v1207 = vadd.s32 %v965, 16
      %v1208 = vadd.s32 %v972, 16
      %v1209 = vadd.s32 %v979, 16
      %v1210 = vadd.s32 %v986, 16
      %v1211 = vadd.s32 %v993, 16
      %v1212 = vadd.s32 %v1000, 16
      %v1213 = vadd.s32 %v1007, 16
      %v1214 = vadd.s32 %v1014, 16
      %v1215 = vadd.s32 %v1021, 16
      %v1216 = vadd.s32 %v1028, 16
      %v1217 = vadd.s32 %v1035, 16
      %v1218 = vadd.s32 %v1042, 16
      %v1219 = vadd.s32 %v1049, 16
      %v1220 = vadd.s32 %v1056, 16
      %v1221 = vadd.s32 %v1063, 16
      %v1222 = vadd.s32 %v1070, 16
      %v1223 = vadd.s32 %v1077, 16
      %v1224 = vadd.s32 %v1084, 16
      %v1225 = vadd.s32 %v1091, 16
      %v1226 = vadd.s32 %v1098, 16
      %v1227 = vsel %vm1163, %v1195, %v881
      %v1228 = vsel %vm1164, %v1196, %v888
      %v1229 = vsel %vm1165, %v1197, %v895
      %v1230 = vsel %vm1166, %v1198, %v902
      %v1231 = vsel %vm1167, %v1199, %v909
      %v1232 = vsel %vm1168, %v1200, %v916
      %v1233 = vsel %vm1169, %v1201, %v923
      %v1234 = vsel %vm1170, %v1202, %v930
      %v1235 = vsel %vm1171, %v1203, %v937
      %v1236 = vsel %vm1172, %v1204, %v944
      %v1237 = vsel %vm1173, %v1205, %v951
      %v1238 = vsel %vm1174, %v1206, %v958
      %v1239 = vsel %vm1175, %v1207, %v965
      %v1240 = vsel %vm1176, %v1208, %v972
      %v1241 = vsel %vm1177, %v1209, %v979
      %v1242 = vsel %vm1178, %v1210, %v986
      %v1243 = vsel %vm1179, %v1211, %v993
      %v1244 = vsel %vm1180, %v1212, %v1000
      %v1245 = vsel %vm1181, %v1213, %v1007
      %v1246 = vsel %vm1182, %v1214, %v1014
      %v1247 = vsel %vm1183, %v1215, %v1021
      %v1248 = vsel %vm1184, %v1216, %v1028
      %v1249 = vsel %vm1185, %v1217, %v1035
      %v1250 = vsel %vm1186, %v1218, %v1042
      %v1251 = vsel %vm1187, %v1219, %v1049
      %v1252 = vsel %vm1188, %v1220, %v1056
      %v1253 = vsel %vm1189, %v1221, %v1063
      %v1254 = vsel %vm1190, %v1222, %v1070
      %v1255 = vsel %vm1191, %v1223, %v1077
      %v1256 = vsel %vm1192, %v1224, %v1084
      %v1257 = vsel %vm1193, %v1225, %v1091
      %v1258 = vsel %vm1194, %v1226, %v1098
      %vm1259 = vsmask.f32 256
      %v1261 = vshrl.u32 %v826, 16
      %v1263 = vrot.slane %v1261, 7
      %v1264 = vshll.u32 %v826, 16
      %v1266 = vor.u32 %v1263, %v1264
      %v1268 = vshrl.u32 %v827, 16
      %v1270 = vrot.slane %v1268, 7
      %v1271 = vshll.u32 %v827, 16
      %v1273 = vor.u32 %v1270, %v1271
      %v1274 = vsel %vm1259, %v1263, %v1273
      %v1276 = vshrl.u32 %v828, 16
      %v1278 = vrot.slane %v1276, 7
      %v1279 = vshll.u32 %v828, 16
      %v1281 = vor.u32 %v1278, %v1279
      %v1282 = vsel %vm1259, %v1270, %v1281
      %v1284 = vshrl.u32 %v829, 16
      %v1286 = vrot.slane %v1284, 7
      %v1287 = vshll.u32 %v829, 16
      %v1289 = vor.u32 %v1286, %v1287
      %v1290 = vsel %vm1259, %v1278, %v1289
      %v1292 = vshrl.u32 %v830, 16
      %v1294 = vrot.slane %v1292, 7
      %v1295 = vshll.u32 %v830, 16
      %v1297 = vor.u32 %v1294, %v1295
      %v1298 = vsel %vm1259, %v1286, %v1297
      %v1300 = vshrl.u32 %v831, 16
      %v1302 = vrot.slane %v1300, 7
      %v1303 = vshll.u32 %v831, 16
      %v1305 = vor.u32 %v1302, %v1303
      %v1306 = vsel %vm1259, %v1294, %v1305
      %v1308 = vshrl.u32 %v832, 16
      %v1310 = vrot.slane %v1308, 7
      %v1311 = vshll.u32 %v832, 16
      %v1313 = vor.u32 %v1310, %v1311
      %v1314 = vsel %vm1259, %v1302, %v1313
      %v1316 = vshrl.u32 %v833, 16
      %v1318 = vrot.slane %v1316, 7
      %v1319 = vshll.u32 %v833, 16
      %v1321 = vor.u32 %v1318, %v1319
      %v1322 = vsel %vm1259, %v1310, %v1321
      %v1324 = vshrl.u32 %v834, 16
      %v1326 = vrot.slane %v1324, 7
      %v1327 = vshll.u32 %v834, 16
      %v1329 = vor.u32 %v1326, %v1327
      %v1330 = vsel %vm1259, %v1318, %v1329
      %v1332 = vshrl.u32 %v835, 16
      %v1334 = vrot.slane %v1332, 7
      %v1335 = vshll.u32 %v835, 16
      %v1337 = vor.u32 %v1334, %v1335
      %v1338 = vsel %vm1259, %v1326, %v1337
      %v1340 = vshrl.u32 %v836, 16
      %v1342 = vrot.slane %v1340, 7
      %v1343 = vshll.u32 %v836, 16
      %v1345 = vor.u32 %v1342, %v1343
      %v1346 = vsel %vm1259, %v1334, %v1345
      %v1348 = vshrl.u32 %v837, 16
      %v1350 = vrot.slane %v1348, 7
      %v1351 = vshll.u32 %v837, 16
      %v1353 = vor.u32 %v1350, %v1351
      %v1354 = vsel %vm1259, %v1342, %v1353
      %v1356 = vshrl.u32 %v838, 16
      %v1358 = vrot.slane %v1356, 7
      %v1359 = vshll.u32 %v838, 16
      %v1361 = vor.u32 %v1358, %v1359
      %v1362 = vsel %vm1259, %v1350, %v1361
      %v1364 = vshrl.u32 %v839, 16
      %v1366 = vrot.slane %v1364, 7
      %v1367 = vshll.u32 %v839, 16
      %v1369 = vor.u32 %v1366, %v1367
      %v1370 = vsel %vm1259, %v1358, %v1369
      %v1372 = vshrl.u32 %v840, 16
      %v1374 = vrot.slane %v1372, 7
      %v1375 = vshll.u32 %v840, 16
      %v1377 = vor.u32 %v1374, %v1375
      %v1378 = vsel %vm1259, %v1366, %v1377
      %v1380 = vshrl.u32 %v841, 16
      %v1382 = vrot.slane %v1380, 7
      %v1383 = vshll.u32 %v841, 16
      %v1385 = vor.u32 %v1382, %v1383
      %v1386 = vsel %vm1259, %v1374, %v1385
      %vm1403 = vcmask 1040384
      %vm1404 = vmand %vm1403, %vm1259
      %v1405 = vsel %vm1404, 0, %v1266
      %vm1406 = vcmp.ge.s32.totalorder %v1227, 1
      %vm1407 = vcmp.ge.s32.totalorder %v1228, 1
      %vm1408 = vcmp.ge.s32.totalorder %v1229, 1
      %vm1409 = vcmp.ge.s32.totalorder %v1230, 1
      %vm1410 = vcmp.ge.s32.totalorder %v1231, 1
      %vm1411 = vcmp.ge.s32.totalorder %v1232, 1
      %vm1412 = vcmp.ge.s32.totalorder %v1233, 1
      %vm1413 = vcmp.ge.s32.totalorder %v1234, 1
      %vm1414 = vcmp.ge.s32.totalorder %v1235, 1
      %vm1415 = vcmp.ge.s32.totalorder %v1236, 1
      %vm1416 = vcmp.ge.s32.totalorder %v1237, 1
      %vm1417 = vcmp.ge.s32.totalorder %v1238, 1
      %vm1418 = vcmp.ge.s32.totalorder %v1239, 1
      %vm1419 = vcmp.ge.s32.totalorder %v1240, 1
      %vm1420 = vcmp.ge.s32.totalorder %v1241, 1
      %vm1421 = vcmp.ge.s32.totalorder %v1242, 1
      %vm1422 = vcmp.ge.s32.totalorder %v1243, 1
      %vm1423 = vcmp.ge.s32.totalorder %v1244, 1
      %vm1424 = vcmp.ge.s32.totalorder %v1245, 1
      %vm1425 = vcmp.ge.s32.totalorder %v1246, 1
      %vm1426 = vcmp.ge.s32.totalorder %v1247, 1
      %vm1427 = vcmp.ge.s32.totalorder %v1248, 1
      %vm1428 = vcmp.ge.s32.totalorder %v1249, 1
      %vm1429 = vcmp.ge.s32.totalorder %v1250, 1
      %vm1430 = vcmp.ge.s32.totalorder %v1251, 1
      %vm1431 = vcmp.ge.s32.totalorder %v1252, 1
      %vm1432 = vcmp.ge.s32.totalorder %v1253, 1
      %vm1433 = vcmp.ge.s32.totalorder %v1254, 1
      %vm1434 = vcmp.ge.s32.totalorder %v1255, 1
      %vm1435 = vcmp.ge.s32.totalorder %v1256, 1
      %vm1436 = vcmp.ge.s32.totalorder %v1257, 1
      %vm1437 = vcmp.ge.s32.totalorder %v1258, 1
      %v1438 = vsel %vm1406, 1, 0
      %v1439 = vsel %vm1407, 1, 0
      %v1440 = vsel %vm1408, 1, 0
      %v1441 = vsel %vm1409, 1, 0
      %v1442 = vsel %vm1410, 1, 0
      %v1443 = vsel %vm1411, 1, 0
      %v1444 = vsel %vm1412, 1, 0
      %v1445 = vsel %vm1413, 1, 0
      %v1446 = vsel %vm1414, 1, 0
      %v1447 = vsel %vm1415, 1, 0
      %v1448 = vsel %vm1416, 1, 0
      %v1449 = vsel %vm1417, 1, 0
      %v1450 = vsel %vm1418, 1, 0
      %v1451 = vsel %vm1419, 1, 0
      %v1452 = vsel %vm1420, 1, 0
      %v1453 = vsel %vm1421, 1, 0
      %v1454 = vsel %vm1422, 1, 0
      %v1455 = vsel %vm1423, 1, 0
      %v1456 = vsel %vm1424, 1, 0
      %v1457 = vsel %vm1425, 1, 0
      %v1458 = vsel %vm1426, 1, 0
      %v1459 = vsel %vm1427, 1, 0
      %v1460 = vsel %vm1428, 1, 0
      %v1461 = vsel %vm1429, 1, 0
      %v1462 = vsel %vm1430, 1, 0
      %v1463 = vsel %vm1431, 1, 0
      %v1464 = vsel %vm1432, 1, 0
      %v1465 = vsel %vm1433, 1, 0
      %v1466 = vsel %vm1434, 1, 0
      %v1467 = vsel %vm1435, 1, 0
      %v1468 = vsel %vm1436, 1, 0
      %v1469 = vsel %vm1437, 1, 0
      %vm1470 = vcmp.eq.s32.totalorder %v1438, 1
      %vm1471 = vcmp.eq.s32.totalorder %v1439, 1
      %vm1472 = vcmp.eq.s32.totalorder %v1440, 1
      %vm1473 = vcmp.eq.s32.totalorder %v1441, 1
      %vm1474 = vcmp.eq.s32.totalorder %v1442, 1
      %vm1475 = vcmp.eq.s32.totalorder %v1443, 1
      %vm1476 = vcmp.eq.s32.totalorder %v1444, 1
      %vm1477 = vcmp.eq.s32.totalorder %v1445, 1
      %vm1478 = vcmp.eq.s32.totalorder %v1446, 1
      %vm1479 = vcmp.eq.s32.totalorder %v1447, 1
      %vm1480 = vcmp.eq.s32.totalorder %v1448, 1
      %vm1481 = vcmp.eq.s32.totalorder %v1449, 1
      %vm1482 = vcmp.eq.s32.totalorder %v1450, 1
      %vm1483 = vcmp.eq.s32.totalorder %v1451, 1
      %vm1484 = vcmp.eq.s32.totalorder %v1452, 1
      %vm1485 = vcmp.eq.s32.totalorder %v1453, 1
      %vm1486 = vcmp.eq.s32.totalorder %v1454, 1
      %vm1487 = vcmp.eq.s32.totalorder %v1455, 1
      %vm1488 = vcmp.eq.s32.totalorder %v1456, 1
      %vm1489 = vcmp.eq.s32.totalorder %v1457, 1
      %vm1490 = vcmp.eq.s32.totalorder %v1458, 1
      %vm1491 = vcmp.eq.s32.totalorder %v1459, 1
      %vm1492 = vcmp.eq.s32.totalorder %v1460, 1
      %vm1493 = vcmp.eq.s32.totalorder %v1461, 1
      %vm1494 = vcmp.eq.s32.totalorder %v1462, 1
      %vm1495 = vcmp.eq.s32.totalorder %v1463, 1
      %vm1496 = vcmp.eq.s32.totalorder %v1464, 1
      %vm1497 = vcmp.eq.s32.totalorder %v1465, 1
      %vm1498 = vcmp.eq.s32.totalorder %v1466, 1
      %vm1499 = vcmp.eq.s32.totalorder %v1467, 1
      %vm1500 = vcmp.eq.s32.totalorder %v1468, 1
      %vm1501 = vcmp.eq.s32.totalorder %v1469, 1
      %vm1502 = vmpackc.low %vm1470, %vm1470
      %vm1503 = vmpackc.low %vm1471, %vm1471
      %vm1504 = vmpackc.low %vm1472, %vm1472
      %vm1505 = vmpackc.low %vm1473, %vm1473
      %vm1506 = vmpackc.low %vm1474, %vm1474
      %vm1507 = vmpackc.low %vm1475, %vm1475
      %vm1508 = vmpackc.low %vm1476, %vm1476
      %vm1509 = vmpackc.low %vm1477, %vm1477
      %vm1510 = vmpackc.low %vm1478, %vm1478
      %vm1511 = vmpackc.low %vm1479, %vm1479
      %vm1512 = vmpackc.low %vm1480, %vm1480
      %vm1513 = vmpackc.low %vm1481, %vm1481
      %vm1514 = vmpackc.low %vm1482, %vm1482
      %vm1515 = vmpackc.low %vm1483, %vm1483
      %vm1516 = vmpackc.low %vm1484, %vm1484
      %vm1517 = vmpackc.low %vm1485, %vm1485
      %vm1518 = vmpackc.low %vm1486, %vm1486
      %vm1519 = vmpackc.low %vm1487, %vm1487
      %vm1520 = vmpackc.low %vm1488, %vm1488
      %vm1521 = vmpackc.low %vm1489, %vm1489
      %vm1522 = vmpackc.low %vm1490, %vm1490
      %vm1523 = vmpackc.low %vm1491, %vm1491
      %vm1524 = vmpackc.low %vm1492, %vm1492
      %vm1525 = vmpackc.low %vm1493, %vm1493
      %vm1526 = vmpackc.low %vm1494, %vm1494
      %vm1527 = vmpackc.low %vm1495, %vm1495
      %vm1528 = vmpackc.low %vm1496, %vm1496
      %vm1529 = vmpackc.low %vm1497, %vm1497
      %vm1530 = vmpackc.low %vm1498, %vm1498
      %vm1531 = vmpackc.low %vm1499, %vm1499
      %vm1532 = vmpackc.low %vm1500, %vm1500
      %vm1533 = vmpackc.low %vm1501, %vm1501
      %v1534 = vsel %vm1502, 65537, 0
      %v1535 = vsel %vm1503, 65537, 0
      %v1536 = vsel %vm1504, 65537, 0
      %v1537 = vsel %vm1505, 65537, 0
      %v1538 = vsel %vm1506, 65537, 0
      %v1539 = vsel %vm1507, 65537, 0
      %v1540 = vsel %vm1508, 65537, 0
      %v1541 = vsel %vm1509, 65537, 0
      %v1542 = vsel %vm1510, 65537, 0
      %v1543 = vsel %vm1511, 65537, 0
      %v1544 = vsel %vm1512, 65537, 0
      %v1545 = vsel %vm1513, 65537, 0
      %v1546 = vsel %vm1514, 65537, 0
      %v1547 = vsel %vm1515, 65537, 0
      %v1548 = vsel %vm1516, 65537, 0
      %v1549 = vsel %vm1517, 65537, 0
      %v1550 = vsel %vm1518, 65537, 0
      %v1551 = vsel %vm1519, 65537, 0
      %v1552 = vsel %vm1520, 65537, 0
      %v1553 = vsel %vm1521, 65537, 0
      %v1554 = vsel %vm1522, 65537, 0
      %v1555 = vsel %vm1523, 65537, 0
      %v1556 = vsel %vm1524, 65537, 0
      %v1557 = vsel %vm1525, 65537, 0
      %v1558 = vsel %vm1526, 65537, 0
      %v1559 = vsel %vm1527, 65537, 0
      %v1560 = vsel %vm1528, 65537, 0
      %v1561 = vsel %vm1529, 65537, 0
      %v1562 = vsel %vm1530, 65537, 0
      %v1563 = vsel %vm1531, 65537, 0
      %v1564 = vsel %vm1532, 65537, 0
      %v1565 = vsel %vm1533, 65537, 0
      %v1566 = vunpack.c.l.b16 %v1534
      %v1567 = vunpack.c.l.b16 %v1535
      %v1568 = vunpack.c.l.b16 %v1536
      %v1569 = vunpack.c.l.b16 %v1537
      %v1570 = vunpack.c.l.b16 %v1538
      %v1571 = vunpack.c.l.b16 %v1539
      %v1572 = vunpack.c.l.b16 %v1540
      %v1573 = vunpack.c.l.b16 %v1541
      %v1574 = vunpack.c.l.b16 %v1542
      %v1575 = vunpack.c.l.b16 %v1543
      %v1576 = vunpack.c.l.b16 %v1544
      %v1577 = vunpack.c.l.b16 %v1545
      %v1578 = vunpack.c.l.b16 %v1546
      %v1579 = vunpack.c.l.b16 %v1547
      %v1580 = vunpack.c.l.b16 %v1548
      %v1581 = vunpack.c.l.b16 %v1549
      %v1582 = vunpack.c.l.b16 %v1550
      %v1583 = vunpack.c.l.b16 %v1551
      %v1584 = vunpack.c.l.b16 %v1552
      %v1585 = vunpack.c.l.b16 %v1553
      %v1586 = vunpack.c.l.b16 %v1554
      %v1587 = vunpack.c.l.b16 %v1555
      %v1588 = vunpack.c.l.b16 %v1556
      %v1589 = vunpack.c.l.b16 %v1557
      %v1590 = vunpack.c.l.b16 %v1558
      %v1591 = vunpack.c.l.b16 %v1559
      %v1592 = vunpack.c.l.b16 %v1560
      %v1593 = vunpack.c.l.b16 %v1561
      %v1594 = vunpack.c.l.b16 %v1562
      %v1595 = vunpack.c.l.b16 %v1563
      %v1596 = vunpack.c.l.b16 %v1564
      %v1597 = vunpack.c.l.b16 %v1565
      %v1598 = vpack.c.b16 %v1567, %v1566
      %v1599 = vpack.c.b16 %v1569, %v1568
      %v1600 = vpack.c.b16 %v1571, %v1570
      %v1601 = vpack.c.b16 %v1573, %v1572
      %v1602 = vpack.c.b16 %v1575, %v1574
      %v1603 = vpack.c.b16 %v1577, %v1576
      %v1604 = vpack.c.b16 %v1579, %v1578
      %v1605 = vpack.c.b16 %v1581, %v1580
      %v1606 = vpack.c.b16 %v1583, %v1582
      %v1607 = vpack.c.b16 %v1585, %v1584
      %v1608 = vpack.c.b16 %v1587, %v1586
      %v1609 = vpack.c.b16 %v1589, %v1588
      %v1610 = vpack.c.b16 %v1591, %v1590
      %v1611 = vpack.c.b16 %v1593, %v1592
      %v1612 = vpack.c.b16 %v1595, %v1594
      %v1613 = vpack.c.b16 %v1597, %v1596
      %vm1614 = vcmp.ne.s16.totalorder %v1598, 0
      %vm1615 = vcmp.ne.s16.totalorder %v1599, 0
      %vm1616 = vcmp.ne.s16.totalorder %v1600, 0
      %vm1617 = vcmp.ne.s16.totalorder %v1601, 0
      %vm1618 = vcmp.ne.s16.totalorder %v1602, 0
      %vm1619 = vcmp.ne.s16.totalorder %v1603, 0
      %vm1620 = vcmp.ne.s16.totalorder %v1604, 0
      %vm1621 = vcmp.ne.s16.totalorder %v1605, 0
      %vm1622 = vcmp.ne.s16.totalorder %v1606, 0
      %vm1623 = vcmp.ne.s16.totalorder %v1607, 0
      %vm1624 = vcmp.ne.s16.totalorder %v1608, 0
      %vm1625 = vcmp.ne.s16.totalorder %v1609, 0
      %vm1626 = vcmp.ne.s16.totalorder %v1610, 0
      %vm1627 = vcmp.ne.s16.totalorder %v1611, 0
      %vm1628 = vcmp.ne.s16.totalorder %v1612, 0
      %vm1629 = vcmp.ne.s16.totalorder %v1613, 0
      %v1630 = vsel %vm1614, %v1405, 0
      %v1631 = vsel %vm1615, %v1274, 0
      %v1632 = vsel %vm1616, %v1282, 0
      %v1633 = vsel %vm1617, %v1290, 0
      %v1634 = vsel %vm1618, %v1298, 0
      %v1635 = vsel %vm1619, %v1306, 0
      %v1636 = vsel %vm1620, %v1314, 0
      %v1637 = vsel %vm1621, %v1322, 0
      %v1638 = vsel %vm1622, %v1330, 0
      %v1639 = vsel %vm1623, %v1338, 0
      %v1640 = vsel %vm1624, %v1346, 0
      %v1641 = vsel %vm1625, %v1354, 0
      %v1642 = vsel %vm1626, %v1362, 0
      %v1643 = vsel %vm1627, %v1370, 0
      %v1644 = vsel %vm1628, %v1378, 0
      %v1645 = vsel %vm1629, %v1386, 0
      %vm1646 = vsmask.f32 7424
      %v1647 = vrot.slane %v1264, 1
      %v1648 = vor.u32 %v1261, %v1647
      %v1649 = vrot.slane %v1271, 1
      %v1650 = vsel %vm1646, %v1648, %v1649
      %v1651 = vor.u32 %v1268, %v1649
      %v1652 = vrot.slane %v1279, 1
      %v1653 = vsel %vm1646, %v1651, %v1652
      %v1654 = vor.u32 %v1276, %v1652
      %v1655 = vrot.slane %v1287, 1
      %v1656 = vsel %vm1646, %v1654, %v1655
      %v1657 = vor.u32 %v1284, %v1655
      %v1658 = vrot.slane %v1295, 1
      %v1659 = vsel %vm1646, %v1657, %v1658
      %v1660 = vor.u32 %v1292, %v1658
      %v1661 = vrot.slane %v1303, 1
      %v1662 = vsel %vm1646, %v1660, %v1661
      %v1663 = vor.u32 %v1300, %v1661
      %v1664 = vrot.slane %v1311, 1
      %v1665 = vsel %vm1646, %v1663, %v1664
      %v1666 = vor.u32 %v1308, %v1664
      %v1667 = vrot.slane %v1319, 1
      %v1668 = vsel %vm1646, %v1666, %v1667
      %v1669 = vor.u32 %v1316, %v1667
      %v1670 = vrot.slane %v1327, 1
      %v1671 = vsel %vm1646, %v1669, %v1670
      %v1672 = vor.u32 %v1324, %v1670
      %v1673 = vrot.slane %v1335, 1
      %v1674 = vsel %vm1646, %v1672, %v1673
      %v1675 = vor.u32 %v1332, %v1673
      %v1676 = vrot.slane %v1343, 1
      %v1677 = vsel %vm1646, %v1675, %v1676
      %v1678 = vor.u32 %v1340, %v1676
      %v1679 = vrot.slane %v1351, 1
      %v1680 = vsel %vm1646, %v1678, %v1679
      %v1681 = vor.u32 %v1348, %v1679
      %v1682 = vrot.slane %v1359, 1
      %v1683 = vsel %vm1646, %v1681, %v1682
      %v1684 = vor.u32 %v1356, %v1682
      %v1685 = vrot.slane %v1367, 1
      %v1686 = vsel %vm1646, %v1684, %v1685
      %v1687 = vor.u32 %v1364, %v1685
      %v1688 = vrot.slane %v1375, 1
      %v1689 = vsel %vm1646, %v1687, %v1688
      %v1690 = vor.u32 %v1372, %v1688
      %v1691 = vrot.slane %v1383, 1
      %v1692 = vsel %vm1646, %v1690, %v1691
      %v1693 = vor.u32 %v1380, %v1691
      %vm1710 = vcmask 1047552
      %vm1711 = vmand %vm1710, %vm1646
      %v1712 = vsel %vm1711, %v1693, 0
      %vm1713 = vcmp.lt.s32.totalorder %v1227, 15
      %vm1714 = vcmp.lt.s32.totalorder %v1228, 15
      %vm1715 = vcmp.lt.s32.totalorder %v1229, 15
      %vm1716 = vcmp.lt.s32.totalorder %v1230, 15
      %vm1717 = vcmp.lt.s32.totalorder %v1231, 15
      %vm1718 = vcmp.lt.s32.totalorder %v1232, 15
      %vm1719 = vcmp.lt.s32.totalorder %v1233, 15
      %vm1720 = vcmp.lt.s32.totalorder %v1234, 15
      %vm1721 = vcmp.lt.s32.totalorder %v1235, 15
      %vm1722 = vcmp.lt.s32.totalorder %v1236, 15
      %vm1723 = vcmp.lt.s32.totalorder %v1237, 15
      %vm1724 = vcmp.lt.s32.totalorder %v1238, 15
      %vm1725 = vcmp.lt.s32.totalorder %v1239, 15
      %vm1726 = vcmp.lt.s32.totalorder %v1240, 15
      %vm1727 = vcmp.lt.s32.totalorder %v1241, 15
      %vm1728 = vcmp.lt.s32.totalorder %v1242, 15
      %vm1729 = vcmp.lt.s32.totalorder %v1243, 15
      %vm1730 = vcmp.lt.s32.totalorder %v1244, 15
      %vm1731 = vcmp.lt.s32.totalorder %v1245, 15
      %vm1732 = vcmp.lt.s32.totalorder %v1246, 15
      %vm1733 = vcmp.lt.s32.totalorder %v1247, 15
      %vm1734 = vcmp.lt.s32.totalorder %v1248, 15
      %vm1735 = vcmp.lt.s32.totalorder %v1249, 15
      %vm1736 = vcmp.lt.s32.totalorder %v1250, 15
      %vm1737 = vcmp.lt.s32.totalorder %v1251, 15
      %vm1738 = vcmp.lt.s32.totalorder %v1252, 15
      %vm1739 = vcmp.lt.s32.totalorder %v1253, 15
      %vm1740 = vcmp.lt.s32.totalorder %v1254, 15
      %vm1741 = vcmp.lt.s32.totalorder %v1255, 15
      %vm1742 = vcmp.lt.s32.totalorder %v1256, 15
      %vm1743 = vcmp.lt.s32.totalorder %v1257, 15
      %vm1744 = vcmp.lt.s32.totalorder %v1258, 15
      %v1745 = vsel %vm1713, 1, 0
      %v1746 = vsel %vm1714, 1, 0
      %v1747 = vsel %vm1715, 1, 0
      %v1748 = vsel %vm1716, 1, 0
      %v1749 = vsel %vm1717, 1, 0
      %v1750 = vsel %vm1718, 1, 0
      %v1751 = vsel %vm1719, 1, 0
      %v1752 = vsel %vm1720, 1, 0
      %v1753 = vsel %vm1721, 1, 0
      %v1754 = vsel %vm1722, 1, 0
      %v1755 = vsel %vm1723, 1, 0
      %v1756 = vsel %vm1724, 1, 0
      %v1757 = vsel %vm1725, 1, 0
      %v1758 = vsel %vm1726, 1, 0
      %v1759 = vsel %vm1727, 1, 0
      %v1760 = vsel %vm1728, 1, 0
      %v1761 = vsel %vm1729, 1, 0
      %v1762 = vsel %vm1730, 1, 0
      %v1763 = vsel %vm1731, 1, 0
      %v1764 = vsel %vm1732, 1, 0
      %v1765 = vsel %vm1733, 1, 0
      %v1766 = vsel %vm1734, 1, 0
      %v1767 = vsel %vm1735, 1, 0
      %v1768 = vsel %vm1736, 1, 0
      %v1769 = vsel %vm1737, 1, 0
      %v1770 = vsel %vm1738, 1, 0
      %v1771 = vsel %vm1739, 1, 0
      %v1772 = vsel %vm1740, 1, 0
      %v1773 = vsel %vm1741, 1, 0
      %v1774 = vsel %vm1742, 1, 0
      %v1775 = vsel %vm1743, 1, 0
      %v1776 = vsel %vm1744, 1, 0
      %vm1777 = vcmp.eq.s32.totalorder %v1745, 1
      %vm1778 = vcmp.eq.s32.totalorder %v1746, 1
      %vm1779 = vcmp.eq.s32.totalorder %v1747, 1
      %vm1780 = vcmp.eq.s32.totalorder %v1748, 1
      %vm1781 = vcmp.eq.s32.totalorder %v1749, 1
      %vm1782 = vcmp.eq.s32.totalorder %v1750, 1
      %vm1783 = vcmp.eq.s32.totalorder %v1751, 1
      %vm1784 = vcmp.eq.s32.totalorder %v1752, 1
      %vm1785 = vcmp.eq.s32.totalorder %v1753, 1
      %vm1786 = vcmp.eq.s32.totalorder %v1754, 1
      %vm1787 = vcmp.eq.s32.totalorder %v1755, 1
      %vm1788 = vcmp.eq.s32.totalorder %v1756, 1
      %vm1789 = vcmp.eq.s32.totalorder %v1757, 1
      %vm1790 = vcmp.eq.s32.totalorder %v1758, 1
      %vm1791 = vcmp.eq.s32.totalorder %v1759, 1
      %vm1792 = vcmp.eq.s32.totalorder %v1760, 1
      %vm1793 = vcmp.eq.s32.totalorder %v1761, 1
      %vm1794 = vcmp.eq.s32.totalorder %v1762, 1
      %vm1795 = vcmp.eq.s32.totalorder %v1763, 1
      %vm1796 = vcmp.eq.s32.totalorder %v1764, 1
      %vm1797 = vcmp.eq.s32.totalorder %v1765, 1
      %vm1798 = vcmp.eq.s32.totalorder %v1766, 1
      %vm1799 = vcmp.eq.s32.totalorder %v1767, 1
      %vm1800 = vcmp.eq.s32.totalorder %v1768, 1
      %vm1801 = vcmp.eq.s32.totalorder %v1769, 1
      %vm1802 = vcmp.eq.s32.totalorder %v1770, 1
      %vm1803 = vcmp.eq.s32.totalorder %v1771, 1
      %vm1804 = vcmp.eq.s32.totalorder %v1772, 1
      %vm1805 = vcmp.eq.s32.totalorder %v1773, 1
      %vm1806 = vcmp.eq.s32.totalorder %v1774, 1
      %vm1807 = vcmp.eq.s32.totalorder %v1775, 1
      %vm1808 = vcmp.eq.s32.totalorder %v1776, 1
      %vm1809 = vmpackc.low %vm1777, %vm1777
      %vm1810 = vmpackc.low %vm1778, %vm1778
      %vm1811 = vmpackc.low %vm1779, %vm1779
      %vm1812 = vmpackc.low %vm1780, %vm1780
      %vm1813 = vmpackc.low %vm1781, %vm1781
      %vm1814 = vmpackc.low %vm1782, %vm1782
      %vm1815 = vmpackc.low %vm1783, %vm1783
      %vm1816 = vmpackc.low %vm1784, %vm1784
      %vm1817 = vmpackc.low %vm1785, %vm1785
      %vm1818 = vmpackc.low %vm1786, %vm1786
      %vm1819 = vmpackc.low %vm1787, %vm1787
      %vm1820 = vmpackc.low %vm1788, %vm1788
      %vm1821 = vmpackc.low %vm1789, %vm1789
      %vm1822 = vmpackc.low %vm1790, %vm1790
      %vm1823 = vmpackc.low %vm1791, %vm1791
      %vm1824 = vmpackc.low %vm1792, %vm1792
      %vm1825 = vmpackc.low %vm1793, %vm1793
      %vm1826 = vmpackc.low %vm1794, %vm1794
      %vm1827 = vmpackc.low %vm1795, %vm1795
      %vm1828 = vmpackc.low %vm1796, %vm1796
      %vm1829 = vmpackc.low %vm1797, %vm1797
      %vm1830 = vmpackc.low %vm1798, %vm1798
      %vm1831 = vmpackc.low %vm1799, %vm1799
      %vm1832 = vmpackc.low %vm1800, %vm1800
      %vm1833 = vmpackc.low %vm1801, %vm1801
      %vm1834 = vmpackc.low %vm1802, %vm1802
      %vm1835 = vmpackc.low %vm1803, %vm1803
      %vm1836 = vmpackc.low %vm1804, %vm1804
      %vm1837 = vmpackc.low %vm1805, %vm1805
      %vm1838 = vmpackc.low %vm1806, %vm1806
      %vm1839 = vmpackc.low %vm1807, %vm1807
      %vm1840 = vmpackc.low %vm1808, %vm1808
      %v1841 = vsel %vm1809, 65537, 0
      %v1842 = vsel %vm1810, 65537, 0
      %v1843 = vsel %vm1811, 65537, 0
      %v1844 = vsel %vm1812, 65537, 0
      %v1845 = vsel %vm1813, 65537, 0
      %v1846 = vsel %vm1814, 65537, 0
      %v1847 = vsel %vm1815, 65537, 0
      %v1848 = vsel %vm1816, 65537, 0
      %v1849 = vsel %vm1817, 65537, 0
      %v1850 = vsel %vm1818, 65537, 0
      %v1851 = vsel %vm1819, 65537, 0
      %v1852 = vsel %vm1820, 65537, 0
      %v1853 = vsel %vm1821, 65537, 0
      %v1854 = vsel %vm1822, 65537, 0
      %v1855 = vsel %vm1823, 65537, 0
      %v1856 = vsel %vm1824, 65537, 0
      %v1857 = vsel %vm1825, 65537, 0
      %v1858 = vsel %vm1826, 65537, 0
      %v1859 = vsel %vm1827, 65537, 0
      %v1860 = vsel %vm1828, 65537, 0
      %v1861 = vsel %vm1829, 65537, 0
      %v1862 = vsel %vm1830, 65537, 0
      %v1863 = vsel %vm1831, 65537, 0
      %v1864 = vsel %vm1832, 65537, 0
      %v1865 = vsel %vm1833, 65537, 0
      %v1866 = vsel %vm1834, 65537, 0
      %v1867 = vsel %vm1835, 65537, 0
      %v1868 = vsel %vm1836, 65537, 0
      %v1869 = vsel %vm1837, 65537, 0
      %v1870 = vsel %vm1838, 65537, 0
      %v1871 = vsel %vm1839, 65537, 0
      %v1872 = vsel %vm1840, 65537, 0
      %v1873 = vunpack.c.l.b16 %v1841
      %v1874 = vunpack.c.l.b16 %v1842
      %v1875 = vunpack.c.l.b16 %v1843
      %v1876 = vunpack.c.l.b16 %v1844
      %v1877 = vunpack.c.l.b16 %v1845
      %v1878 = vunpack.c.l.b16 %v1846
      %v1879 = vunpack.c.l.b16 %v1847
      %v1880 = vunpack.c.l.b16 %v1848
      %v1881 = vunpack.c.l.b16 %v1849
      %v1882 = vunpack.c.l.b16 %v1850
      %v1883 = vunpack.c.l.b16 %v1851
      %v1884 = vunpack.c.l.b16 %v1852
      %v1885 = vunpack.c.l.b16 %v1853
      %v1886 = vunpack.c.l.b16 %v1854
      %v1887 = vunpack.c.l.b16 %v1855
      %v1888 = vunpack.c.l.b16 %v1856
      %v1889 = vunpack.c.l.b16 %v1857
      %v1890 = vunpack.c.l.b16 %v1858
      %v1891 = vunpack.c.l.b16 %v1859
      %v1892 = vunpack.c.l.b16 %v1860
      %v1893 = vunpack.c.l.b16 %v1861
      %v1894 = vunpack.c.l.b16 %v1862
      %v1895 = vunpack.c.l.b16 %v1863
      %v1896 = vunpack.c.l.b16 %v1864
      %v1897 = vunpack.c.l.b16 %v1865
      %v1898 = vunpack.c.l.b16 %v1866
      %v1899 = vunpack.c.l.b16 %v1867
      %v1900 = vunpack.c.l.b16 %v1868
      %v1901 = vunpack.c.l.b16 %v1869
      %v1902 = vunpack.c.l.b16 %v1870
      %v1903 = vunpack.c.l.b16 %v1871
      %v1904 = vunpack.c.l.b16 %v1872
      %v1905 = vpack.c.b16 %v1874, %v1873
      %v1906 = vpack.c.b16 %v1876, %v1875
      %v1907 = vpack.c.b16 %v1878, %v1877
      %v1908 = vpack.c.b16 %v1880, %v1879
      %v1909 = vpack.c.b16 %v1882, %v1881
      %v1910 = vpack.c.b16 %v1884, %v1883
      %v1911 = vpack.c.b16 %v1886, %v1885
      %v1912 = vpack.c.b16 %v1888, %v1887
      %v1913 = vpack.c.b16 %v1890, %v1889
      %v1914 = vpack.c.b16 %v1892, %v1891
      %v1915 = vpack.c.b16 %v1894, %v1893
      %v1916 = vpack.c.b16 %v1896, %v1895
      %v1917 = vpack.c.b16 %v1898, %v1897
      %v1918 = vpack.c.b16 %v1900, %v1899
      %v1919 = vpack.c.b16 %v1902, %v1901
      %v1920 = vpack.c.b16 %v1904, %v1903
      %vm1921 = vcmp.ne.s16.totalorder %v1905, 0
      %vm1922 = vcmp.ne.s16.totalorder %v1906, 0
      %vm1923 = vcmp.ne.s16.totalorder %v1907, 0
      %vm1924 = vcmp.ne.s16.totalorder %v1908, 0
      %vm1925 = vcmp.ne.s16.totalorder %v1909, 0
      %vm1926 = vcmp.ne.s16.totalorder %v1910, 0
      %vm1927 = vcmp.ne.s16.totalorder %v1911, 0
      %vm1928 = vcmp.ne.s16.totalorder %v1912, 0
      %vm1929 = vcmp.ne.s16.totalorder %v1913, 0
      %vm1930 = vcmp.ne.s16.totalorder %v1914, 0
      %vm1931 = vcmp.ne.s16.totalorder %v1915, 0
      %vm1932 = vcmp.ne.s16.totalorder %v1916, 0
      %vm1933 = vcmp.ne.s16.totalorder %v1917, 0
      %vm1934 = vcmp.ne.s16.totalorder %v1918, 0
      %vm1935 = vcmp.ne.s16.totalorder %v1919, 0
      %vm1936 = vcmp.ne.s16.totalorder %v1920, 0
      %v1937 = vsel %vm1921, %v1650, 0
      %v1938 = vsel %vm1922, %v1653, 0
      %v1939 = vsel %vm1923, %v1656, 0
      %v1940 = vsel %vm1924, %v1659, 0
      %v1941 = vsel %vm1925, %v1662, 0
      %v1942 = vsel %vm1926, %v1665, 0
      %v1943 = vsel %vm1927, %v1668, 0
      %v1944 = vsel %vm1928, %v1671, 0
      %v1945 = vsel %vm1929, %v1674, 0
      %v1946 = vsel %vm1930, %v1677, 0
      %v1947 = vsel %vm1931, %v1680, 0
      %v1948 = vsel %vm1932, %v1683, 0
      %v1949 = vsel %vm1933, %v1686, 0
      %v1950 = vsel %vm1934, %v1689, 0
      %v1951 = vsel %vm1935, %v1692, 0
      %v1952 = vsel %vm1936, %v1712, 0
      %1961 = vrot.lane.b32.xlu0 0, 32
      %v1962 = vpop.permute.xlu0 %1961
      %1963 = vrot.lane.b32.xlu0 %v826, 32
      %v1964 = vpop.permute.xlu0 %1963
      %1965 = vrot.lane.b32.xlu0 %v827, 32
      %v1966 = vpop.permute.xlu0 %1965
      %1967 = vrot.lane.b32.xlu0 %v828, 32
      %v1968 = vpop.permute.xlu0 %1967
      %1969 = vrot.lane.b32.xlu0 %v829, 32
      %v1970 = vpop.permute.xlu0 %1969
      %1971 = vrot.lane.b32.xlu0 %v830, 32
      %v1972 = vpop.permute.xlu0 %1971
      %1973 = vrot.lane.b32.xlu0 %v831, 32
      %v1974 = vpop.permute.xlu0 %1973
      %1975 = vrot.lane.b32.xlu0 %v832, 32
      %v1976 = vpop.permute.xlu0 %1975
      %1984 = vrot.lane.b32.xlu0 0, 64
      %v1985 = vpop.permute.xlu0 %1984
      %1986 = vrot.lane.b32.xlu0 %v1937, 64
      %v1987 = vpop.permute.xlu0 %1986
      %1988 = vrot.lane.b32.xlu0 %v1938, 64
      %v1989 = vpop.permute.xlu0 %1988
      %1990 = vrot.lane.b32.xlu0 %v1939, 64
      %v1991 = vpop.permute.xlu0 %1990
      %1992 = vrot.lane.b32.xlu0 %v1940, 64
      %v1993 = vpop.permute.xlu0 %1992
      %1994 = vrot.lane.b32.xlu0 %v1941, 64
      %v1995 = vpop.permute.xlu0 %1994
      %1996 = vrot.lane.b32.xlu0 %v1942, 64
      %v1997 = vpop.permute.xlu0 %1996
      %1998 = vrot.lane.b32.xlu0 %v1943, 64
      %v1999 = vpop.permute.xlu0 %1998
      %2008 = vrot.lane.b32.xlu0 %v1630, 96
      %v2009 = vpop.permute.xlu0 %2008
      %2010 = vrot.lane.b32.xlu0 %v1631, 96
      %v2011 = vpop.permute.xlu0 %2010
      %2012 = vrot.lane.b32.xlu0 %v1632, 96
      %v2013 = vpop.permute.xlu0 %2012
      %2014 = vrot.lane.b32.xlu0 %v1633, 96
      %v2015 = vpop.permute.xlu0 %2014
      %2016 = vrot.lane.b32.xlu0 %v1634, 96
      %v2017 = vpop.permute.xlu0 %2016
      %2018 = vrot.lane.b32.xlu0 %v1635, 96
      %v2019 = vpop.permute.xlu0 %2018
      %2020 = vrot.lane.b32.xlu0 %v1636, 96
      %v2021 = vpop.permute.xlu0 %2020
      %2022 = vrot.lane.b32.xlu0 %v1637, 96
      %v2023 = vpop.permute.xlu0 %2022
      %2025 = vrot.lane.b32.xlu0 %v1937, 32
      %v2026 = vpop.permute.xlu0 %2025
      %2027 = vrot.lane.b32.xlu0 %v1938, 32
      %v2028 = vpop.permute.xlu0 %2027
      %2029 = vrot.lane.b32.xlu0 %v1939, 32
      %v2030 = vpop.permute.xlu0 %2029
      %2031 = vrot.lane.b32.xlu0 %v1940, 32
      %v2032 = vpop.permute.xlu0 %2031
      %2033 = vrot.lane.b32.xlu0 %v1941, 32
      %v2034 = vpop.permute.xlu0 %2033
      %2035 = vrot.lane.b32.xlu0 %v1942, 32
      %v2036 = vpop.permute.xlu0 %2035
      %2037 = vrot.lane.b32.xlu0 %v1943, 32
      %v2038 = vpop.permute.xlu0 %2037
      %2039 = vrot.lane.b32.xlu0 %v1944, 32
      %v2040 = vpop.permute.xlu0 %2039
      %2042 = vrot.lane.b32.xlu0 %v1631, 64
      %v2043 = vpop.permute.xlu0 %2042
      %2044 = vrot.lane.b32.xlu0 %v1632, 64
      %v2045 = vpop.permute.xlu0 %2044
      %2046 = vrot.lane.b32.xlu0 %v1633, 64
      %v2047 = vpop.permute.xlu0 %2046
      %2048 = vrot.lane.b32.xlu0 %v1634, 64
      %v2049 = vpop.permute.xlu0 %2048
      %2050 = vrot.lane.b32.xlu0 %v1635, 64
      %v2051 = vpop.permute.xlu0 %2050
      %2052 = vrot.lane.b32.xlu0 %v1636, 64
      %v2053 = vpop.permute.xlu0 %2052
      %2054 = vrot.lane.b32.xlu0 %v1637, 64
      %v2055 = vpop.permute.xlu0 %2054
      %2056 = vrot.lane.b32.xlu0 %v1638, 64
      %v2057 = vpop.permute.xlu0 %2056
      %2060 = vrot.lane.b32.xlu0 %v827, 96
      %v2061 = vpop.permute.xlu0 %2060
      %2062 = vrot.lane.b32.xlu0 %v828, 96
      %v2063 = vpop.permute.xlu0 %2062
      %2064 = vrot.lane.b32.xlu0 %v829, 96
      %v2065 = vpop.permute.xlu0 %2064
      %2066 = vrot.lane.b32.xlu0 %v830, 96
      %v2067 = vpop.permute.xlu0 %2066
      %2068 = vrot.lane.b32.xlu0 %v831, 96
      %v2069 = vpop.permute.xlu0 %2068
      %2070 = vrot.lane.b32.xlu0 %v832, 96
      %v2071 = vpop.permute.xlu0 %2070
      %2072 = vrot.lane.b32.xlu0 %v833, 96
      %v2073 = vpop.permute.xlu0 %2072
      %2074 = vrot.lane.b32.xlu0 %v834, 96
      %v2075 = vpop.permute.xlu0 %2074
      %vm2076 = vcmask 261120
      %v2079 = vsel %vm2076, 0, %v1962
      %v2082 = vsel %vm2076, %v1630, %v1964
      %v2085 = vsel %vm2076, %v1631, %v1966
      %v2088 = vsel %vm2076, %v1632, %v1968
      %v2091 = vsel %vm2076, %v1633, %v1970
      %v2094 = vsel %vm2076, %v1634, %v1972
      %v2097 = vsel %vm2076, %v1635, %v1974
      %v2100 = vsel %vm2076, %v1636, %v1976
      %vm2101 = vcmask 523264
      %v2103 = vsel %vm2101, %v2079, %v1985
      %v2105 = vsel %vm2101, %v2082, %v1987
      %v2107 = vsel %vm2101, %v2085, %v1989
      %v2109 = vsel %vm2101, %v2088, %v1991
      %v2111 = vsel %vm2101, %v2091, %v1993
      %v2113 = vsel %vm2101, %v2094, %v1995
      %v2115 = vsel %vm2101, %v2097, %v1997
      %v2117 = vsel %vm2101, %v2100, %v1999
      %vm2118 = vcmask 785408
      %v2120 = vsel %vm2118, %v2103, %v2009
      %v2123 = vsel %vm2118, %v2105, %v2011
      %v2126 = vsel %vm2118, %v2107, %v2013
      %v2129 = vsel %vm2118, %v2109, %v2015
      %v2132 = vsel %vm2118, %v2111, %v2017
      %v2135 = vsel %vm2118, %v2113, %v2019
      %v2138 = vsel %vm2118, %v2115, %v2021
      %v2141 = vsel %vm2118, %v2117, %v2023
      %v2144 = vsel %vm2076, %v826, %v2026
      %v2146 = vsel %vm2076, %v827, %v2028
      %v2148 = vsel %vm2076, %v828, %v2030
      %v2150 = vsel %vm2076, %v829, %v2032
      %v2152 = vsel %vm2076, %v830, %v2034
      %v2154 = vsel %vm2076, %v831, %v2036
      %v2156 = vsel %vm2076, %v832, %v2038
      %v2158 = vsel %vm2076, %v833, %v2040
      %v2160 = vsel %vm2101, %v2144, %v2043
      %v2162 = vsel %vm2101, %v2146, %v2045
      %v2164 = vsel %vm2101, %v2148, %v2047
      %v2166 = vsel %vm2101, %v2150, %v2049
      %v2168 = vsel %vm2101, %v2152, %v2051
      %v2170 = vsel %vm2101, %v2154, %v2053
      %v2172 = vsel %vm2101, %v2156, %v2055
      %v2174 = vsel %vm2101, %v2158, %v2057
      %v2176 = vsel %vm2118, %v2160, %v2061
      %v2179 = vsel %vm2118, %v2162, %v2063
      %v2182 = vsel %vm2118, %v2164, %v2065
      %v2185 = vsel %vm2118, %v2166, %v2067
      %v2188 = vsel %vm2118, %v2168, %v2069
      %v2191 = vsel %vm2118, %v2170, %v2071
      %v2194 = vsel %vm2118, %v2172, %v2073
      %v2197 = vsel %vm2118, %v2174, %v2075
      %v2199 = vld [vmem:[%s4] sm:$0xf]
      %v2200 = vld [vmem:[%s4 + $0x4] sm:$0xf]
      %v2201 = vld [vmem:[%s4 + $0x8] sm:$0xf]
      %v2202 = vld [vmem:[%s4 + $0xc] sm:$0xf]
      %v2203 = vld [vmem:[%s4 + $0x10] sm:$0xf]
      %v2204 = vld [vmem:[%s4 + $0x14] sm:$0xf]
      %v2205 = vld [vmem:[%s4 + $0x18] sm:$0xf]
      %v2206 = vld [vmem:[%s4 + $0x1c] sm:$0xf]
      %v2207 = vld [vmem:[%s4 + $0x20] sm:$0xf]
      %v2208 = vld [vmem:[%s4 + $0x24] sm:$0xf]
      %v2209 = vld [vmem:[%s4 + $0x28] sm:$0xf]
      %v2210 = vld [vmem:[%s4 + $0x2c] sm:$0xf]
      %v2211 = vld [vmem:[%s4 + $0x30] sm:$0xf]
      %v2212 = vld [vmem:[%s4 + $0x34] sm:$0xf]
      %v2213 = vld [vmem:[%s4 + $0x38] sm:$0xf]
      %v2214 = vld [vmem:[%s4 + $0x3c] sm:$0xf]
      %v2215 = vld [vmem:[%s4 + $0x40] sm:$0xf]
      %v2216 = vld [vmem:[%s4 + $0x44] sm:$0xf]
      %v2217 = vld [vmem:[%s4 + $0x48] sm:$0xf]
      %v2218 = vld [vmem:[%s4 + $0x4c] sm:$0xf]
      %v2219 = vld [vmem:[%s4 + $0x50] sm:$0xf]
      %v2220 = vld [vmem:[%s4 + $0x54] sm:$0xf]
      %v2221 = vld [vmem:[%s4 + $0x58] sm:$0xf]
      %v2222 = vld [vmem:[%s4 + $0x5c] sm:$0xf]
      %v2223 = vld [vmem:[%s4 + $0x60] sm:$0xf]
      %v2224 = vld [vmem:[%s4 + $0x64] sm:$0xf]
      %v2225 = vld [vmem:[%s4 + $0x68] sm:$0xf]
      %v2226 = vld [vmem:[%s4 + $0x6c] sm:$0xf]
      %v2227 = vld [vmem:[%s4 + $0x70] sm:$0xf]
      %v2228 = vld [vmem:[%s4 + $0x74] sm:$0xf]
      %v2229 = vld [vmem:[%s4 + $0x78] sm:$0xf]
      %v2230 = vld [vmem:[%s4 + $0x7c] sm:$0xf]
      %v2231 = vld [vmem:[%s4 + $0x80] sm:$0xf]
      %v2232 = vld [vmem:[%s4 + $0x84] sm:$0xf]
      %v2233 = vld [vmem:[%s4 + $0x88] sm:$0xf]
      %v2234 = vld [vmem:[%s4 + $0x8c] sm:$0xf]
      %v2271 = vunpack.c.l.b16 %v2199
      %v2272 = vunpack.c.l.b16 %v2200
      %v2273 = vunpack.c.l.b16 %v2201
      %v2274 = vunpack.c.l.b16 %v2202
      %v2275 = vunpack.c.l.b16 %v2203
      %v2276 = vunpack.c.l.b16 %v2204
      %v2277 = vunpack.c.l.b16 %v2205
      %v2278 = vunpack.c.l.b16 %v2206
      %v2279 = vunpack.c.l.b16 %v2207
      %v2280 = vunpack.c.l.b16 %v2208
      %v2281 = vunpack.c.l.b16 %v2209
      %v2282 = vunpack.c.l.b16 %v2210
      %v2283 = vunpack.c.l.b16 %v2211
      %v2284 = vunpack.c.l.b16 %v2212
      %v2285 = vunpack.c.l.b16 %v2213
      %v2286 = vunpack.c.l.b16 %v2214
      %v2287 = vunpack.c.l.b16 %v2215
      %v2288 = vunpack.c.l.b16 %v2216
      %v2289 = vunpack.c.l.b16 %v2217
      %v2290 = vunpack.c.l.b16 %v2218
      %v2291 = vunpack.c.l.b16 %v2219
      %v2292 = vunpack.c.l.b16 %v2220
      %v2293 = vunpack.c.l.b16 %v2221
      %v2294 = vunpack.c.l.b16 %v2222
      %v2295 = vunpack.c.l.b16 %v2223
      %v2296 = vunpack.c.l.b16 %v2224
      %v2297 = vunpack.c.l.b16 %v2225
      %v2298 = vunpack.c.l.b16 %v2226
      %v2299 = vunpack.c.l.b16 %v2227
      %v2300 = vunpack.c.l.b16 %v2228
      %v2301 = vunpack.c.l.b16 %v2229
      %v2302 = vunpack.c.l.b16 %v2230
      %v2303 = vunpack.c.l.b16 %v2231
      %v2304 = vunpack.c.l.b16 %v2232
      %v2305 = vunpack.c.l.b16 %v2233
      %v2306 = vunpack.c.l.b16 %v2234
      %v2307 = vpack.c.b16 %v2272, %v2271
      %v2308 = vpack.c.b16 %v2274, %v2273
      %v2309 = vpack.c.b16 %v2276, %v2275
      %v2310 = vpack.c.b16 %v2278, %v2277
      %v2311 = vpack.c.b16 %v2280, %v2279
      %v2312 = vpack.c.b16 %v2282, %v2281
      %v2313 = vpack.c.b16 %v2284, %v2283
      %v2314 = vpack.c.b16 %v2286, %v2285
      %v2315 = vpack.c.b16 %v2288, %v2287
      %v2316 = vpack.c.b16 %v2290, %v2289
      %v2317 = vpack.c.b16 %v2292, %v2291
      %v2318 = vpack.c.b16 %v2294, %v2293
      %v2319 = vpack.c.b16 %v2296, %v2295
      %v2320 = vpack.c.b16 %v2298, %v2297
      %v2321 = vpack.c.b16 %v2300, %v2299
      %v2322 = vpack.c.b16 %v2302, %v2301
      %v2323 = vpack.c.b16 %v2304, %v2303
      %v2324 = vpack.c.b16 %v2306, %v2305
      %v2344 = vsel %vm2076, %v1938, 0
      %v2347 = vsel %vm2076, %v1939, 0
      %v2350 = vsel %vm2076, %v1940, 0
      %v2353 = vsel %vm2076, %v1941, 0
      %v2356 = vsel %vm2076, %v1942, 0
      %v2359 = vsel %vm2076, %v1943, 0
      %v2362 = vsel %vm2076, %v1944, 0
      %v2365 = vsel %vm2076, %v1945, 0
      %2367 = vmatprep.subr.bf16.mxu0 0
      %2368 = vmatpush1.bf16.msra.mxu0 %v2307
      %2369 = vmatprep.subr.bf16.mxu0 0
      %2370 = vmatpush1.bf16.msra.mxu0 %v2308
      %2371 = vmatprep.subr.bf16.mxu0 0
      %2372 = vmatpush1.bf16.msra.mxu0 %v2309
      %2373 = vmatprep.subr.bf16.mxu0 0
      %2374 = vmatpush1.bf16.msra.mxu0 %v2310
      %2375 = vmatprep.subr.bf16.mxu0 0
      %2376 = vmatpush1.bf16.msra.mxu0 %v2311
      %2377 = vmatprep.subr.bf16.mxu0 0
      %2378 = vmatpush1.bf16.msra.mxu0 %v2312
      %2379 = vmatprep.subr.bf16.mxu0 0
      %2380 = vmatpush1.bf16.msra.mxu0 %v2313
      %2381 = vmatprep.subr.bf16.mxu0 0
      %2382 = vmatpush1.bf16.msra.mxu0 %v2314
      %2383 = vmatprep.subr.bf16.mxu0 0
      %2384 = vmatpush1.bf16.msra.mxu0 %v2315
      %2385 = vmatprep.subr.bf16.mxu0 0
      %2386 = vmatpush1.bf16.msra.mxu0 %v2316
      %2387 = vmatprep.subr.bf16.mxu0 0
      %2388 = vmatpush1.bf16.msra.mxu0 %v2317
      %2389 = vmatprep.subr.bf16.mxu0 0
      %2390 = vmatpush1.bf16.msra.mxu0 %v2318
      %2391 = vmatprep.subr.bf16.mxu0 0
      %2392 = vmatpush1.bf16.msra.mxu0 %v2319
      %2393 = vmatprep.subr.bf16.mxu0 0
      %2394 = vmatpush1.bf16.msra.mxu0 %v2320
      %2395 = vmatprep.subr.bf16.mxu0 0
      %2396 = vmatpush1.bf16.msra.mxu0 %v2321
      %2397 = vmatprep.subr.bf16.mxu0 0
      %2398 = vmatpush1.bf16.msra.mxu0 %v2322
      %2399 = vmatprep.mubr.bf16.mxu0 %v2176
      %2400 = vmatmul.mubr.bf16.gmra.mrb[0].mxu0 %v2120
      %v2401 = vpop.f32.mrb[0].mxu0
      %v2402 = vadd.f32 0.0, %v2401
      %v2403 = vpop.f32.mrb[0].mxu0
      %v2404 = vpop.f32.mrb[0].mxu0
      %v2405 = vadd.f32 0.0, %v2404
      %v2406 = vpop.f32.mrb[0].mxu0
      %2407 = vmatprep.mubr.bf16.mxu0 %v2179
      %2408 = vmatmul.mubr.bf16.gmra.mrb[0].mxu0 %v2123
      %v2409 = vpop.f32.mrb[0].mxu0
      %v2410 = vadd.f32 0.0, %v2409
      %v2411 = vpop.f32.mrb[0].mxu0
      %v2412 = vpop.f32.mrb[0].mxu0
      %v2413 = vadd.f32 0.0, %v2412
      %v2414 = vpop.f32.mrb[0].mxu0
      %2415 = vmatprep.mubr.bf16.mxu0 %v2182
      %2416 = vmatmul.mubr.bf16.gmra.mrb[0].mxu0 %v2126
      %v2417 = vpop.f32.mrb[0].mxu0
      %v2418 = vadd.f32 0.0, %v2417
      %v2419 = vpop.f32.mrb[0].mxu0
      %v2420 = vpop.f32.mrb[0].mxu0
      %v2421 = vadd.f32 0.0, %v2420
      %v2422 = vpop.f32.mrb[0].mxu0
      %2423 = vmatprep.mubr.bf16.mxu0 %v2185
      %2424 = vmatmul.mubr.bf16.gmra.mrb[0].mxu0 %v2129
      %v2425 = vpop.f32.mrb[0].mxu0
      %v2426 = vadd.f32 0.0, %v2425
      %v2427 = vpop.f32.mrb[0].mxu0
      %v2428 = vpop.f32.mrb[0].mxu0
      %v2429 = vadd.f32 0.0, %v2428
      %v2430 = vpop.f32.mrb[0].mxu0
      %2431 = vmatprep.mubr.bf16.mxu0 %v2188
      %2432 = vmatmul.mubr.bf16.gmra.mrb[0].mxu0 %v2132
      %v2433 = vpop.f32.mrb[0].mxu0
      %v2434 = vadd.f32 0.0, %v2433
      %v2435 = vpop.f32.mrb[0].mxu0
      %v2436 = vpop.f32.mrb[0].mxu0
      %v2437 = vadd.f32 0.0, %v2436
      %v2438 = vpop.f32.mrb[0].mxu0
      %2439 = vmatprep.mubr.bf16.mxu0 %v2191
      %2440 = vmatmul.mubr.bf16.gmra.mrb[0].mxu0 %v2135
      %v2441 = vpop.f32.mrb[0].mxu0
      %v2442 = vadd.f32 0.0, %v2441
      %v2443 = vpop.f32.mrb[0].mxu0
      %v2444 = vpop.f32.mrb[0].mxu0
      %v2445 = vadd.f32 0.0, %v2444
      %v2446 = vpop.f32.mrb[0].mxu0
      %2447 = vmatprep.mubr.bf16.mxu0 %v2194
      %2448 = vmatmul.mubr.bf16.gmra.mrb[0].mxu0 %v2138
      %v2449 = vpop.f32.mrb[0].mxu0
      %v2450 = vadd.f32 0.0, %v2449
      %v2451 = vpop.f32.mrb[0].mxu0
      %v2452 = vpop.f32.mrb[0].mxu0
      %v2453 = vadd.f32 0.0, %v2452
      %v2454 = vpop.f32.mrb[0].mxu0
      %2455 = vmatprep.mubr.bf16.mxu0 %v2197
      %2456 = vmatmul.mubr.bf16.gmra.mrb[0].mxu0 %v2141
      %v2457 = vpop.f32.mrb[0].mxu0
      %v2458 = vadd.f32 0.0, %v2457
      %v2459 = vpop.f32.mrb[0].mxu0
      %v2460 = vpop.f32.mrb[0].mxu0
      %v2461 = vadd.f32 0.0, %v2460
      %v2462 = vpop.f32.mrb[0].mxu0
      %2463 = vdwg.mxu0
      %2464 = vmatprep.subr.bf16.mxu0 0
      %2465 = vmatpush1.bf16.msra.mxu0 %v2323
      %2466 = vmatprep.subr.bf16.mxu0 0
      %2467 = vmatpush1.bf16.msra.mxu0 %v2324
      %2468 = vmatprep.subr.bf16.mxu0 0
      %2469 = vmatpush1.bf16.msra.mxu0 0
      %2470 = vmatprep.subr.bf16.mxu0 0
      %2471 = vmatpush1.bf16.msra.mxu0 0
      %2472 = vmatprep.subr.bf16.mxu0 0
      %2473 = vmatpush1.bf16.msra.mxu0 0
      %2474 = vmatprep.subr.bf16.mxu0 0
      %2475 = vmatpush1.bf16.msra.mxu0 0
      %2476 = vmatprep.subr.bf16.mxu0 0
      %2477 = vmatpush1.bf16.msra.mxu0 0
      %2478 = vmatprep.subr.bf16.mxu0 0
      %2479 = vmatpush1.bf16.msra.mxu0 0
      %2480 = vmatprep.subr.bf16.mxu0 0
      %2481 = vmatpush1.bf16.msra.mxu0 0
      %2482 = vmatprep.subr.bf16.mxu0 0
      %2483 = vmatpush1.bf16.msra.mxu0 0
      %2484 = vmatprep.subr.bf16.mxu0 0
      %2485 = vmatpush1.bf16.msra.mxu0 0
      %2486 = vmatprep.subr.bf16.mxu0 0
      %2487 = vmatpush1.bf16.msra.mxu0 0
      %2488 = vmatprep.subr.bf16.mxu0 0
      %2489 = vmatpush1.bf16.msra.mxu0 0
      %2490 = vmatprep.subr.bf16.mxu0 0
      %2491 = vmatpush1.bf16.msra.mxu0 0
      %2492 = vmatprep.subr.bf16.mxu0 0
      %2493 = vmatpush1.bf16.msra.mxu0 0
      %2494 = vmatprep.subr.bf16.mxu0 0
      %2495 = vmatpush1.bf16.msra.mxu0 0
      %2496 = vmatprep.mubr.bf16.mxu0 0
      %2497 = vmatmul.mubr.bf16.gmra.mrb[0].mxu0 %v2344
      %v2498 = vpop.f32.mrb[0].mxu0
      %v2499 = vadd.f32 %v2402, %v2498
      %v2500 = vpop.f32.mrb[0].mxu0
      %v2501 = vpop.f32.mrb[0].mxu0
      %v2502 = vadd.f32 %v2405, %v2501
      %v2503 = vpop.f32.mrb[0].mxu0
      %2504 = vmatprep.mubr.bf16.mxu0 0
      %2505 = vmatmul.mubr.bf16.gmra.mrb[0].mxu0 %v2347
      %v2506 = vpop.f32.mrb[0].mxu0
      %v2507 = vadd.f32 %v2410, %v2506
      %v2508 = vpop.f32.mrb[0].mxu0
      %v2509 = vpop.f32.mrb[0].mxu0
      %v2510 = vadd.f32 %v2413, %v2509
      %v2511 = vpop.f32.mrb[0].mxu0
      %2512 = vmatprep.mubr.bf16.mxu0 0
      %2513 = vmatmul.mubr.bf16.gmra.mrb[0].mxu0 %v2350
      %v2514 = vpop.f32.mrb[0].mxu0
      %v2515 = vadd.f32 %v2418, %v2514
      %v2516 = vpop.f32.mrb[0].mxu0
      %v2517 = vpop.f32.mrb[0].mxu0
      %v2518 = vadd.f32 %v2421, %v2517
      %v2519 = vpop.f32.mrb[0].mxu0
      %2520 = vmatprep.mubr.bf16.mxu0 0
      %2521 = vmatmul.mubr.bf16.gmra.mrb[0].mxu0 %v2353
      %v2522 = vpop.f32.mrb[0].mxu0
      %v2523 = vadd.f32 %v2426, %v2522
      %v2524 = vpop.f32.mrb[0].mxu0
      %v2525 = vpop.f32.mrb[0].mxu0
      %v2526 = vadd.f32 %v2429, %v2525
      %v2527 = vpop.f32.mrb[0].mxu0
      %2528 = vmatprep.mubr.bf16.mxu0 0
      %2529 = vmatmul.mubr.bf16.gmra.mrb[0].mxu0 %v2356
      %v2530 = vpop.f32.mrb[0].mxu0
      %v2531 = vadd.f32 %v2434, %v2530
      %v2532 = vpop.f32.mrb[0].mxu0
      %v2533 = vpop.f32.mrb[0].mxu0
      %v2534 = vadd.f32 %v2437, %v2533
      %v2535 = vpop.f32.mrb[0].mxu0
      %2536 = vmatprep.mubr.bf16.mxu0 0
      %2537 = vmatmul.mubr.bf16.gmra.mrb[0].mxu0 %v2359
      %v2538 = vpop.f32.mrb[0].mxu0
      %v2539 = vadd.f32 %v2442, %v2538
      %v2540 = vpop.f32.mrb[0].mxu0
      %v2541 = vpop.f32.mrb[0].mxu0
      %v2542 = vadd.f32 %v2445, %v2541
      %v2543 = vpop.f32.mrb[0].mxu0
      %2544 = vmatprep.mubr.bf16.mxu0 0
      %2545 = vmatmul.mubr.bf16.gmra.mrb[0].mxu0 %v2362
      %v2546 = vpop.f32.mrb[0].mxu0
      %v2547 = vadd.f32 %v2450, %v2546
      %v2548 = vpop.f32.mrb[0].mxu0
      %v2549 = vpop.f32.mrb[0].mxu0
      %v2550 = vadd.f32 %v2453, %v2549
      %v2551 = vpop.f32.mrb[0].mxu0
      %2552 = vmatprep.mubr.bf16.mxu0 0
      %2553 = vmatmul.mubr.bf16.gmra.mrb[0].mxu0 %v2365
      %v2554 = vpop.f32.mrb[0].mxu0
      %v2555 = vadd.f32 %v2458, %v2554
      %v2556 = vpop.f32.mrb[0].mxu0
      %v2557 = vpop.f32.mrb[0].mxu0
      %v2558 = vadd.f32 %v2461, %v2557
      %v2559 = vpop.f32.mrb[0].mxu0
      %2560 = vdwg.mxu0
      %v2561 = vld [vmem:[%s5] sm:$0x1]
      %v2563 = vlaneseq
      %v2564 = vshrl.u32 %v2563, 7
      %v2565 = vsub.s32 0, %v2564
      %v2566 = vrot.slane %v2561, %v2565
      %v2568 = vmul.f32 %v2499, %v2566
      %v2569 = vmul.f32 %v2502, %v2566
      %v2570 = vmul.f32 %v2507, %v2566
      %v2571 = vmul.f32 %v2510, %v2566
      %v2572 = vmul.f32 %v2515, %v2566
      %v2573 = vmul.f32 %v2518, %v2566
      %v2574 = vmul.f32 %v2523, %v2566
      %v2575 = vmul.f32 %v2526, %v2566
      %v2576 = vmul.f32 %v2531, %v2566
      %v2577 = vmul.f32 %v2534, %v2566
      %v2578 = vmul.f32 %v2539, %v2566
      %v2579 = vmul.f32 %v2542, %v2566
      %v2580 = vmul.f32 %v2547, %v2566
      %v2581 = vmul.f32 %v2550, %v2566
      %v2582 = vmul.f32 %v2555, %v2566
      %v2583 = vmul.f32 %v2558, %v2566
      %v2584 = vld [vmem:[%s6] sm:$0x1]
      %v2586 = vlaneseq
      %v2587 = vshrl.u32 %v2586, 7
      %v2588 = vsub.s32 0, %v2587
      %v2589 = vrot.slane %v2584, %v2588
      %v2591 = vadd.f32 %v2568, %v2589
      %v2592 = vadd.f32 %v2569, %v2589
      %v2593 = vadd.f32 %v2570, %v2589
      %v2594 = vadd.f32 %v2571, %v2589
      %v2595 = vadd.f32 %v2572, %v2589
      %v2596 = vadd.f32 %v2573, %v2589
      %v2597 = vadd.f32 %v2574, %v2589
      %v2598 = vadd.f32 %v2575, %v2589
      %v2599 = vadd.f32 %v2576, %v2589
      %v2600 = vadd.f32 %v2577, %v2589
      %v2601 = vadd.f32 %v2578, %v2589
      %v2602 = vadd.f32 %v2579, %v2589
      %v2603 = vadd.f32 %v2580, %v2589
      %v2604 = vadd.f32 %v2581, %v2589
      %v2605 = vadd.f32 %v2582, %v2589
      %v2606 = vadd.f32 %v2583, %v2589
      %v2607 = vmax.f32 %v2591, 0.0
      %v2608 = vmax.f32 %v2592, 0.0
      %v2609 = vmax.f32 %v2593, 0.0
      %v2610 = vmax.f32 %v2594, 0.0
      %v2611 = vmax.f32 %v2595, 0.0
      %v2612 = vmax.f32 %v2596, 0.0
      %v2613 = vmax.f32 %v2597, 0.0
      %v2614 = vmax.f32 %v2598, 0.0
      %v2615 = vmax.f32 %v2599, 0.0
      %v2616 = vmax.f32 %v2600, 0.0
      %v2617 = vmax.f32 %v2601, 0.0
      %v2618 = vmax.f32 %v2602, 0.0
      %v2619 = vmax.f32 %v2603, 0.0
      %v2620 = vmax.f32 %v2604, 0.0
      %v2621 = vmax.f32 %v2605, 0.0
      %v2622 = vmax.f32 %v2606, 0.0
      %v2623 = vpack.c.bf16 %v2608, %v2607
      %v2624 = vpack.c.bf16 %v2610, %v2609
      %v2625 = vpack.c.bf16 %v2612, %v2611
      %v2626 = vpack.c.bf16 %v2614, %v2613
      %v2627 = vpack.c.bf16 %v2616, %v2615
      %v2628 = vpack.c.bf16 %v2618, %v2617
      %v2629 = vpack.c.bf16 %v2620, %v2619
      %v2630 = vpack.c.bf16 %v2622, %v2621
      %v2631 = vld [vmem:[%s7] sm:$0xf]
      %v2632 = vld [vmem:[%s7 + $0x4] sm:$0xf]
      %v2633 = vld [vmem:[%s7 + $0x8] sm:$0xf]
      %v2634 = vld [vmem:[%s7 + $0xc] sm:$0xf]
      %v2639 = vunpack.c.l.b16 %v2631
      %v2640 = vunpack.c.l.b16 %v2632
      %v2641 = vunpack.c.l.b16 %v2633
      %v2642 = vunpack.c.l.b16 %v2634
      %v2643 = vpack.c.b16 %v2640, %v2639
      %v2644 = vpack.c.b16 %v2642, %v2641
      %v2648 = vsel %vm2076, %v2623, 0
      %v2651 = vsel %vm2076, %v2624, 0
      %v2654 = vsel %vm2076, %v2625, 0
      %v2657 = vsel %vm2076, %v2626, 0
      %v2660 = vsel %vm2076, %v2627, 0
      %v2663 = vsel %vm2076, %v2628, 0
      %v2666 = vsel %vm2076, %v2629, 0
      %v2669 = vsel %vm2076, %v2630, 0
      %2671 = vmatprep.subr.bf16.mxu0 0
      %2672 = vmatpush1.bf16.msra.mxu0 %v2643
      %2673 = vmatprep.subr.bf16.mxu0 0
      %2674 = vmatpush1.bf16.msra.mxu0 %v2644
      %2675 = vmatprep.subr.bf16.mxu0 0
      %2676 = vmatpush1.bf16.msra.mxu0 0
      %2677 = vmatprep.subr.bf16.mxu0 0
      %2678 = vmatpush1.bf16.msra.mxu0 0
      %2679 = vmatprep.subr.bf16.mxu0 0
      %2680 = vmatpush1.bf16.msra.mxu0 0
      %2681 = vmatprep.subr.bf16.mxu0 0
      %2682 = vmatpush1.bf16.msra.mxu0 0
      %2683 = vmatprep.subr.bf16.mxu0 0
      %2684 = vmatpush1.bf16.msra.mxu0 0
      %2685 = vmatprep.subr.bf16.mxu0 0
      %2686 = vmatpush1.bf16.msra.mxu0 0
      %2687 = vmatprep.subr.bf16.mxu0 0
      %2688 = vmatpush1.bf16.msra.mxu0 0
      %2689 = vmatprep.subr.bf16.mxu0 0
      %2690 = vmatpush1.bf16.msra.mxu0 0
      %2691 = vmatprep.subr.bf16.mxu0 0
      %2692 = vmatpush1.bf16.msra.mxu0 0
      %2693 = vmatprep.subr.bf16.mxu0 0
      %2694 = vmatpush1.bf16.msra.mxu0 0
      %2695 = vmatprep.subr.bf16.mxu0 0
      %2696 = vmatpush1.bf16.msra.mxu0 0
      %2697 = vmatprep.subr.bf16.mxu0 0
      %2698 = vmatpush1.bf16.msra.mxu0 0
      %2699 = vmatprep.subr.bf16.mxu0 0
      %2700 = vmatpush1.bf16.msra.mxu0 0
      %2701 = vmatprep.subr.bf16.mxu0 0
      %2702 = vmatpush1.bf16.msra.mxu0 0
      %2703 = vmatprep.mubr.bf16.mxu0 0
      %2704 = vmatmul.mubr.bf16.gmra.mrb[0].mxu0 %v2648
      %v2705 = vpop.f32.mrb[0].mxu0
      %v2706 = vadd.f32 0.0, %v2705
      %v2707 = vpop.f32.mrb[0].mxu0
      %v2708 = vpop.f32.mrb[0].mxu0
      %v2709 = vadd.f32 0.0, %v2708
      %v2710 = vpop.f32.mrb[0].mxu0
      %2711 = vmatprep.mubr.bf16.mxu0 0
      %2712 = vmatmul.mubr.bf16.gmra.mrb[0].mxu0 %v2651
      %v2713 = vpop.f32.mrb[0].mxu0
      %v2714 = vadd.f32 0.0, %v2713
      %v2715 = vpop.f32.mrb[0].mxu0
      %v2716 = vpop.f32.mrb[0].mxu0
      %v2717 = vadd.f32 0.0, %v2716
      %v2718 = vpop.f32.mrb[0].mxu0
      %2719 = vmatprep.mubr.bf16.mxu0 0
      %2720 = vmatmul.mubr.bf16.gmra.mrb[0].mxu0 %v2654
      %v2721 = vpop.f32.mrb[0].mxu0
      %v2722 = vadd.f32 0.0, %v2721
      %v2723 = vpop.f32.mrb[0].mxu0
      %v2724 = vpop.f32.mrb[0].mxu0
      %v2725 = vadd.f32 0.0, %v2724
      %v2726 = vpop.f32.mrb[0].mxu0
      %2727 = vmatprep.mubr.bf16.mxu0 0
      %2728 = vmatmul.mubr.bf16.gmra.mrb[0].mxu0 %v2657
      %v2729 = vpop.f32.mrb[0].mxu0
      %v2730 = vadd.f32 0.0, %v2729
      %v2731 = vpop.f32.mrb[0].mxu0
      %v2732 = vpop.f32.mrb[0].mxu0
      %v2733 = vadd.f32 0.0, %v2732
      %v2734 = vpop.f32.mrb[0].mxu0
      %2735 = vmatprep.mubr.bf16.mxu0 0
      %2736 = vmatmul.mubr.bf16.gmra.mrb[0].mxu0 %v2660
      %v2737 = vpop.f32.mrb[0].mxu0
      %v2738 = vadd.f32 0.0, %v2737
      %v2739 = vpop.f32.mrb[0].mxu0
      %v2740 = vpop.f32.mrb[0].mxu0
      %v2741 = vadd.f32 0.0, %v2740
      %v2742 = vpop.f32.mrb[0].mxu0
      %2743 = vmatprep.mubr.bf16.mxu0 0
      %2744 = vmatmul.mubr.bf16.gmra.mrb[0].mxu0 %v2663
      %v2745 = vpop.f32.mrb[0].mxu0
      %v2746 = vadd.f32 0.0, %v2745
      %v2747 = vpop.f32.mrb[0].mxu0
      %v2748 = vpop.f32.mrb[0].mxu0
      %v2749 = vadd.f32 0.0, %v2748
      %v2750 = vpop.f32.mrb[0].mxu0
      %2751 = vmatprep.mubr.bf16.mxu0 0
      %2752 = vmatmul.mubr.bf16.gmra.mrb[0].mxu0 %v2666
      %v2753 = vpop.f32.mrb[0].mxu0
      %v2754 = vadd.f32 0.0, %v2753
      %v2755 = vpop.f32.mrb[0].mxu0
      %v2756 = vpop.f32.mrb[0].mxu0
      %v2757 = vadd.f32 0.0, %v2756
      %v2758 = vpop.f32.mrb[0].mxu0
      %2759 = vmatprep.mubr.bf16.mxu0 0
      %2760 = vmatmul.mubr.bf16.gmra.mrb[0].mxu0 %v2669
      %v2761 = vpop.f32.mrb[0].mxu0
      %v2762 = vadd.f32 0.0, %v2761
      %v2763 = vpop.f32.mrb[0].mxu0
      %v2764 = vpop.f32.mrb[0].mxu0
      %v2765 = vadd.f32 0.0, %v2764
      %v2766 = vpop.f32.mrb[0].mxu0
      %2767 = vdwg.mxu0
      %v2768 = vld [vmem:[%s8] sm:$0x1]
      %v2770 = vlaneseq
      %v2771 = vshrl.u32 %v2770, 7
      %v2772 = vsub.s32 0, %v2771
      %v2773 = vrot.slane %v2768, %v2772
      %v2775 = vmul.f32 %v2706, %v2773
      %v2776 = vmul.f32 %v2709, %v2773
      %v2777 = vmul.f32 %v2714, %v2773
      %v2778 = vmul.f32 %v2717, %v2773
      %v2779 = vmul.f32 %v2722, %v2773
      %v2780 = vmul.f32 %v2725, %v2773
      %v2781 = vmul.f32 %v2730, %v2773
      %v2782 = vmul.f32 %v2733, %v2773
      %v2783 = vmul.f32 %v2738, %v2773
      %v2784 = vmul.f32 %v2741, %v2773
      %v2785 = vmul.f32 %v2746, %v2773
      %v2786 = vmul.f32 %v2749, %v2773
      %v2787 = vmul.f32 %v2754, %v2773
      %v2788 = vmul.f32 %v2757, %v2773
      %v2789 = vmul.f32 %v2762, %v2773
      %v2790 = vmul.f32 %v2765, %v2773
      %v2791 = vld [vmem:[%s9] sm:$0x1]
      %v2793 = vlaneseq
      %v2794 = vshrl.u32 %v2793, 7
      %v2795 = vsub.s32 0, %v2794
      %v2796 = vrot.slane %v2791, %v2795
      %v2798 = vadd.f32 %v2775, %v2796
      %v2799 = vadd.f32 %v2776, %v2796
      %v2800 = vadd.f32 %v2777, %v2796
      %v2801 = vadd.f32 %v2778, %v2796
      %v2802 = vadd.f32 %v2779, %v2796
      %v2803 = vadd.f32 %v2780, %v2796
      %v2804 = vadd.f32 %v2781, %v2796
      %v2805 = vadd.f32 %v2782, %v2796
      %v2806 = vadd.f32 %v2783, %v2796
      %v2807 = vadd.f32 %v2784, %v2796
      %v2808 = vadd.f32 %v2785, %v2796
      %v2809 = vadd.f32 %v2786, %v2796
      %v2810 = vadd.f32 %v2787, %v2796
      %v2811 = vadd.f32 %v2788, %v2796
      %v2812 = vadd.f32 %v2789, %v2796
      %v2813 = vadd.f32 %v2790, %v2796
      %v2814 = vunpack.c.l.bf16 %v363
      %v2815 = vunpack.c.l.bf16 %v364
      %v2816 = vunpack.c.l.bf16 %v365
      %v2817 = vunpack.c.l.bf16 %v366
      %v2818 = vunpack.c.l.bf16 %v367
      %v2819 = vunpack.c.l.bf16 %v368
      %v2820 = vunpack.c.l.bf16 %v369
      %v2821 = vunpack.c.l.bf16 %v370
      %v2822 = vunpack.c.l.bf16 %v371
      %v2823 = vunpack.c.l.bf16 %v372
      %v2824 = vunpack.c.l.bf16 %v373
      %v2825 = vunpack.c.l.bf16 %v374
      %v2826 = vunpack.c.l.bf16 %v375
      %v2827 = vunpack.c.l.bf16 %v376
      %v2828 = vunpack.c.l.bf16 %v377
      %v2829 = vunpack.c.l.bf16 %v378
      %v2830 = vadd.f32 %v2798, %v2814
      %v2831 = vadd.f32 %v2799, %v2815
      %v2832 = vadd.f32 %v2800, %v2816
      %v2833 = vadd.f32 %v2801, %v2817
      %v2834 = vadd.f32 %v2802, %v2818
      %v2835 = vadd.f32 %v2803, %v2819
      %v2836 = vadd.f32 %v2804, %v2820
      %v2837 = vadd.f32 %v2805, %v2821
      %v2838 = vadd.f32 %v2806, %v2822
      %v2839 = vadd.f32 %v2807, %v2823
      %v2840 = vadd.f32 %v2808, %v2824
      %v2841 = vadd.f32 %v2809, %v2825
      %v2842 = vadd.f32 %v2810, %v2826
      %v2843 = vadd.f32 %v2811, %v2827
      %v2844 = vadd.f32 %v2812, %v2828
      %v2845 = vadd.f32 %v2813, %v2829
      %v2846 = vmax.f32 %v2830, 0.0
      %v2847 = vmax.f32 %v2831, 0.0
      %v2848 = vmax.f32 %v2832, 0.0
      %v2849 = vmax.f32 %v2833, 0.0
      %v2850 = vmax.f32 %v2834, 0.0
      %v2851 = vmax.f32 %v2835, 0.0
      %v2852 = vmax.f32 %v2836, 0.0
      %v2853 = vmax.f32 %v2837, 0.0
      %v2854 = vmax.f32 %v2838, 0.0
      %v2855 = vmax.f32 %v2839, 0.0
      %v2856 = vmax.f32 %v2840, 0.0
      %v2857 = vmax.f32 %v2841, 0.0
      %v2858 = vmax.f32 %v2842, 0.0
      %v2859 = vmax.f32 %v2843, 0.0
      %v2860 = vmax.f32 %v2844, 0.0
      %v2861 = vmax.f32 %v2845, 0.0
      %v2862 = vpack.c.bf16 %v2847, %v2846
      %v2863 = vpack.c.bf16 %v2849, %v2848
      %v2864 = vpack.c.bf16 %v2851, %v2850
      %v2865 = vpack.c.bf16 %v2853, %v2852
      %v2866 = vpack.c.bf16 %v2855, %v2854
      %v2867 = vpack.c.bf16 %v2857, %v2856
      %v2868 = vpack.c.bf16 %v2859, %v2858
      %v2869 = vpack.c.bf16 %v2861, %v2860
      %v2878 = vunpack.c.l.b16 %v2862
      %v2879 = vunpack.c.h.b16 %v2862
      %v2880 = vunpack.c.l.b16 %v2863
      %v2881 = vunpack.c.h.b16 %v2863
      %v2882 = vunpack.c.l.b16 %v2864
      %v2883 = vunpack.c.h.b16 %v2864
      %v2884 = vunpack.c.l.b16 %v2865
      %v2885 = vunpack.c.h.b16 %v2865
      %v2886 = vunpack.c.l.b16 %v2866
      %v2887 = vunpack.c.h.b16 %v2866
      %v2888 = vunpack.c.l.b16 %v2867
      %v2889 = vunpack.c.h.b16 %v2867
      %v2890 = vunpack.c.l.b16 %v2868
      %v2891 = vunpack.c.h.b16 %v2868
      %v2892 = vunpack.c.l.b16 %v2869
      %v2893 = vunpack.c.h.b16 %v2869
      %v2894 = vpack.c.b16 %v2878, %v2878
      %v2895 = vpack.c.b16 %v2879, %v2879
      %v2896 = vpack.c.b16 %v2880, %v2880
      %v2897 = vpack.c.b16 %v2881, %v2881
      %v2898 = vpack.c.b16 %v2882, %v2882
      %v2899 = vpack.c.b16 %v2883, %v2883
      %v2900 = vpack.c.b16 %v2884, %v2884
      %v2901 = vpack.c.b16 %v2885, %v2885
      %v2902 = vpack.c.b16 %v2886, %v2886
      %v2903 = vpack.c.b16 %v2887, %v2887
      %v2904 = vpack.c.b16 %v2888, %v2888
      %v2905 = vpack.c.b16 %v2889, %v2889
      %v2906 = vpack.c.b16 %v2890, %v2890
      %v2907 = vpack.c.b16 %v2891, %v2891
      %v2908 = vpack.c.b16 %v2892, %v2892
      %v2909 = vpack.c.b16 %v2893, %v2893
      %2926 = vst [vmem:[%s359] sm:$0xf] %v2894
      %2927 = vst [vmem:[%s359 + $0x4] sm:$0xf] %v2895
      %2928 = vst [vmem:[%s359 + $0x8] sm:$0xf] %v2896
      %2929 = vst [vmem:[%s359 + $0xc] sm:$0xf] %v2897
      %2930 = vst [vmem:[%s359 + $0x10] sm:$0xf] %v2898
      %2931 = vst [vmem:[%s359 + $0x14] sm:$0xf] %v2899
      %2932 = vst [vmem:[%s359 + $0x18] sm:$0xf] %v2900
      %2933 = vst [vmem:[%s359 + $0x1c] sm:$0xf] %v2901
      %2934 = vst [vmem:[%s359 + $0x20] sm:$0xf] %v2902
      %2935 = vst [vmem:[%s359 + $0x24] sm:$0xf] %v2903
      %2936 = vst [vmem:[%s359 + $0x28] sm:$0xf] %v2904
      %2937 = vst [vmem:[%s359 + $0x2c] sm:$0xf] %v2905
      %2938 = vst [vmem:[%s359 + $0x30] sm:$0xf] %v2906
      %2939 = vst [vmem:[%s359 + $0x34] sm:$0xf] %v2907
      %2940 = vst [vmem:[%s359 + $0x38] sm:$0xf] %v2908
      %2941 = vst [vmem:[%s359 + $0x3c] sm:$0xf] %v2909
      %2948 = vrot.lane.b32.xlu0 %v833, 32
      %v2949 = vpop.permute.xlu0 %2948
      %2950 = vrot.lane.b32.xlu0 %v834, 32
      %v2951 = vpop.permute.xlu0 %2950
      %2952 = vrot.lane.b32.xlu0 %v835, 32
      %v2953 = vpop.permute.xlu0 %2952
      %2954 = vrot.lane.b32.xlu0 %v836, 32
      %v2955 = vpop.permute.xlu0 %2954
      %2956 = vrot.lane.b32.xlu0 %v837, 32
      %v2957 = vpop.permute.xlu0 %2956
      %2958 = vrot.lane.b32.xlu0 %v838, 32
      %v2959 = vpop.permute.xlu0 %2958
      %2960 = vrot.lane.b32.xlu0 %v839, 32
      %v2961 = vpop.permute.xlu0 %2960
      %2962 = vrot.lane.b32.xlu0 %v840, 32
      %v2963 = vpop.permute.xlu0 %2962
      %2971 = vrot.lane.b32.xlu0 %v1944, 64
      %v2972 = vpop.permute.xlu0 %2971
      %2973 = vrot.lane.b32.xlu0 %v1945, 64
      %v2974 = vpop.permute.xlu0 %2973
      %2975 = vrot.lane.b32.xlu0 %v1946, 64
      %v2976 = vpop.permute.xlu0 %2975
      %2977 = vrot.lane.b32.xlu0 %v1947, 64
      %v2978 = vpop.permute.xlu0 %2977
      %2979 = vrot.lane.b32.xlu0 %v1948, 64
      %v2980 = vpop.permute.xlu0 %2979
      %2981 = vrot.lane.b32.xlu0 %v1949, 64
      %v2982 = vpop.permute.xlu0 %2981
      %2983 = vrot.lane.b32.xlu0 %v1950, 64
      %v2984 = vpop.permute.xlu0 %2983
      %2985 = vrot.lane.b32.xlu0 %v1951, 64
      %v2986 = vpop.permute.xlu0 %2985
      %2994 = vrot.lane.b32.xlu0 %v1638, 96
      %v2995 = vpop.permute.xlu0 %2994
      %2996 = vrot.lane.b32.xlu0 %v1639, 96
      %v2997 = vpop.permute.xlu0 %2996
      %2998 = vrot.lane.b32.xlu0 %v1640, 96
      %v2999 = vpop.permute.xlu0 %2998
      %3000 = vrot.lane.b32.xlu0 %v1641, 96
      %v3001 = vpop.permute.xlu0 %3000
      %3002 = vrot.lane.b32.xlu0 %v1642, 96
      %v3003 = vpop.permute.xlu0 %3002
      %3004 = vrot.lane.b32.xlu0 %v1643, 96
      %v3005 = vpop.permute.xlu0 %3004
      %3006 = vrot.lane.b32.xlu0 %v1644, 96
      %v3007 = vpop.permute.xlu0 %3006
      %3008 = vrot.lane.b32.xlu0 %v1645, 96
      %v3009 = vpop.permute.xlu0 %3008
      %3011 = vrot.lane.b32.xlu0 %v1945, 32
      %v3012 = vpop.permute.xlu0 %3011
      %3013 = vrot.lane.b32.xlu0 %v1946, 32
      %v3014 = vpop.permute.xlu0 %3013
      %3015 = vrot.lane.b32.xlu0 %v1947, 32
      %v3016 = vpop.permute.xlu0 %3015
      %3017 = vrot.lane.b32.xlu0 %v1948, 32
      %v3018 = vpop.permute.xlu0 %3017
      %3019 = vrot.lane.b32.xlu0 %v1949, 32
      %v3020 = vpop.permute.xlu0 %3019
      %3021 = vrot.lane.b32.xlu0 %v1950, 32
      %v3022 = vpop.permute.xlu0 %3021
      %3023 = vrot.lane.b32.xlu0 %v1951, 32
      %v3024 = vpop.permute.xlu0 %3023
      %3025 = vrot.lane.b32.xlu0 %v1952, 32
      %v3026 = vpop.permute.xlu0 %3025
      %3027 = vrot.lane.b32.xlu0 %v1639, 64
      %v3028 = vpop.permute.xlu0 %3027
      %3029 = vrot.lane.b32.xlu0 %v1640, 64
      %v3030 = vpop.permute.xlu0 %3029
      %3031 = vrot.lane.b32.xlu0 %v1641, 64
      %v3032 = vpop.permute.xlu0 %3031
      %3033 = vrot.lane.b32.xlu0 %v1642, 64
      %v3034 = vpop.permute.xlu0 %3033
      %3035 = vrot.lane.b32.xlu0 %v1643, 64
      %v3036 = vpop.permute.xlu0 %3035
      %3037 = vrot.lane.b32.xlu0 %v1644, 64
      %v3038 = vpop.permute.xlu0 %3037
      %3039 = vrot.lane.b32.xlu0 %v1645, 64
      %v3040 = vpop.permute.xlu0 %3039
      %3042 = vrot.lane.b32.xlu0 %v835, 96
      %v3043 = vpop.permute.xlu0 %3042
      %3044 = vrot.lane.b32.xlu0 %v836, 96
      %v3045 = vpop.permute.xlu0 %3044
      %3046 = vrot.lane.b32.xlu0 %v837, 96
      %v3047 = vpop.permute.xlu0 %3046
      %3048 = vrot.lane.b32.xlu0 %v838, 96
      %v3049 = vpop.permute.xlu0 %3048
      %3050 = vrot.lane.b32.xlu0 %v839, 96
      %v3051 = vpop.permute.xlu0 %3050
      %3052 = vrot.lane.b32.xlu0 %v840, 96
      %v3053 = vpop.permute.xlu0 %3052
      %3054 = vrot.lane.b32.xlu0 %v841, 96
      %v3055 = vpop.permute.xlu0 %3054
      %3056 = vrot.lane.b32.xlu0 0, 96
      %v3057 = vpop.permute.xlu0 %3056
      %v3060 = vsel %vm2076, %v1637, %v2949
      %v3063 = vsel %vm2076, %v1638, %v2951
      %v3066 = vsel %vm2076, %v1639, %v2953
      %v3069 = vsel %vm2076, %v1640, %v2955
      %v3072 = vsel %vm2076, %v1641, %v2957
      %v3075 = vsel %vm2076, %v1642, %v2959
      %v3078 = vsel %vm2076, %v1643, %v2961
      %v3081 = vsel %vm2076, %v1644, %v2963
      %v3083 = vsel %vm2101, %v3060, %v2972
      %v3085 = vsel %vm2101, %v3063, %v2974
      %v3087 = vsel %vm2101, %v3066, %v2976
      %v3089 = vsel %vm2101, %v3069, %v2978
      %v3091 = vsel %vm2101, %v3072, %v2980
      %v3093 = vsel %vm2101, %v3075, %v2982
      %v3095 = vsel %vm2101, %v3078, %v2984
      %v3097 = vsel %vm2101, %v3081, %v2986
      %v3099 = vsel %vm2118, %v3083, %v2995
      %v3102 = vsel %vm2118, %v3085, %v2997
      %v3105 = vsel %vm2118, %v3087, %v2999
      %v3108 = vsel %vm2118, %v3089, %v3001
      %v3111 = vsel %vm2118, %v3091, %v3003
      %v3114 = vsel %vm2118, %v3093, %v3005
      %v3117 = vsel %vm2118, %v3095, %v3007
      %v3120 = vsel %vm2118, %v3097, %v3009
      %v3123 = vsel %vm2076, %v834, %v3012
      %v3125 = vsel %vm2076, %v835, %v3014
      %v3127 = vsel %vm2076, %v836, %v3016
      %v3129 = vsel %vm2076, %v837, %v3018
      %v3131 = vsel %vm2076, %v838, %v3020
      %v3133 = vsel %vm2076, %v839, %v3022
      %v3135 = vsel %vm2076, %v840, %v3024
      %v3137 = vsel %vm2076, %v841, %v3026
      %v3139 = vsel %vm2101, %v3123, %v3028
      %v3141 = vsel %vm2101, %v3125, %v3030
      %v3143 = vsel %vm2101, %v3127, %v3032
      %v3145 = vsel %vm2101, %v3129, %v3034
      %v3147 = vsel %vm2101, %v3131, %v3036
      %v3149 = vsel %vm2101, %v3133, %v3038
      %v3151 = vsel %vm2101, %v3135, %v3040
      %v3152 = vsel %vm2101, %v3137, %v1985
      %v3154 = vsel %vm2118, %v3139, %v3043
      %v3157 = vsel %vm2118, %v3141, %v3045
      %v3160 = vsel %vm2118, %v3143, %v3047
      %v3163 = vsel %vm2118, %v3145, %v3049
      %v3166 = vsel %vm2118, %v3147, %v3051
      %v3169 = vsel %vm2118, %v3149, %v3053
      %v3172 = vsel %vm2118, %v3151, %v3055
      %v3175 = vsel %vm2118, %v3152, %v3057
      %v3177 = vld [vmem:[%s4] sm:$0xf]
      %v3178 = vld [vmem:[%s4 + $0x4] sm:$0xf]
      %v3179 = vld [vmem:[%s4 + $0x8] sm:$0xf]
      %v3180 = vld [vmem:[%s4 + $0xc] sm:$0xf]
      %v3181 = vld [vmem:[%s4 + $0x10] sm:$0xf]
      %v3182 = vld [vmem:[%s4 + $0x14] sm:$0xf]
      %v3183 = vld [vmem:[%s4 + $0x18] sm:$0xf]
      %v3184 = vld [vmem:[%s4 + $0x1c] sm:$0xf]
      %v3185 = vld [vmem:[%s4 + $0x20] sm:$0xf]
      %v3186 = vld [vmem:[%s4 + $0x24] sm:$0xf]
      %v3187 = vld [vmem:[%s4 + $0x28] sm:$0xf]
      %v3188 = vld [vmem:[%s4 + $0x2c] sm:$0xf]
      %v3189 = vld [vmem:[%s4 + $0x30] sm:$0xf]
      %v3190 = vld [vmem:[%s4 + $0x34] sm:$0xf]
      %v3191 = vld [vmem:[%s4 + $0x38] sm:$0xf]
      %v3192 = vld [vmem:[%s4 + $0x3c] sm:$0xf]
      %v3193 = vld [vmem:[%s4 + $0x40] sm:$0xf]
      %v3194 = vld [vmem:[%s4 + $0x44] sm:$0xf]
      %v3195 = vld [vmem:[%s4 + $0x48] sm:$0xf]
      %v3196 = vld [vmem:[%s4 + $0x4c] sm:$0xf]
      %v3197 = vld [vmem:[%s4 + $0x50] sm:$0xf]
      %v3198 = vld [vmem:[%s4 + $0x54] sm:$0xf]
      %v3199 = vld [vmem:[%s4 + $0x58] sm:$0xf]
      %v3200 = vld [vmem:[%s4 + $0x5c] sm:$0xf]
      %v3201 = vld [vmem:[%s4 + $0x60] sm:$0xf]
      %v3202 = vld [vmem:[%s4 + $0x64] sm:$0xf]
      %v3203 = vld [vmem:[%s4 + $0x68] sm:$0xf]
      %v3204 = vld [vmem:[%s4 + $0x6c] sm:$0xf]
      %v3205 = vld [vmem:[%s4 + $0x70] sm:$0xf]
      %v3206 = vld [vmem:[%s4 + $0x74] sm:$0xf]
      %v3207 = vld [vmem:[%s4 + $0x78] sm:$0xf]
      %v3208 = vld [vmem:[%s4 + $0x7c] sm:$0xf]
      %v3209 = vld [vmem:[%s4 + $0x80] sm:$0xf]
      %v3210 = vld [vmem:[%s4 + $0x84] sm:$0xf]
      %v3211 = vld [vmem:[%s4 + $0x88] sm:$0xf]
      %v3212 = vld [vmem:[%s4 + $0x8c] sm:$0xf]
      %v3249 = vunpack.c.l.b16 %v3177
      %v3250 = vunpack.c.l.b16 %v3178
      %v3251 = vunpack.c.l.b16 %v3179
      %v3252 = vunpack.c.l.b16 %v3180
      %v3253 = vunpack.c.l.b16 %v3181
      %v3254 = vunpack.c.l.b16 %v3182
      %v3255 = vunpack.c.l.b16 %v3183
      %v3256 = vunpack.c.l.b16 %v3184
      %v3257 = vunpack.c.l.b16 %v3185
      %v3258 = vunpack.c.l.b16 %v3186
      %v3259 = vunpack.c.l.b16 %v3187
      %v3260 = vunpack.c.l.b16 %v3188
      %v3261 = vunpack.c.l.b16 %v3189
      %v3262 = vunpack.c.l.b16 %v3190
      %v3263 = vunpack.c.l.b16 %v3191
      %v3264 = vunpack.c.l.b16 %v3192
      %v3265 = vunpack.c.l.b16 %v3193
      %v3266 = vunpack.c.l.b16 %v3194
      %v3267 = vunpack.c.l.b16 %v3195
      %v3268 = vunpack.c.l.b16 %v3196
      %v3269 = vunpack.c.l.b16 %v3197
      %v3270 = vunpack.c.l.b16 %v3198
      %v3271 = vunpack.c.l.b16 %v3199
      %v3272 = vunpack.c.l.b16 %v3200
      %v3273 = vunpack.c.l.b16 %v3201
      %v3274 = vunpack.c.l.b16 %v3202
      %v3275 = vunpack.c.l.b16 %v3203
      %v3276 = vunpack.c.l.b16 %v3204
      %v3277 = vunpack.c.l.b16 %v3205
      %v3278 = vunpack.c.l.b16 %v3206
      %v3279 = vunpack.c.l.b16 %v3207
      %v3280 = vunpack.c.l.b16 %v3208
      %v3281 = vunpack.c.l.b16 %v3209
      %v3282 = vunpack.c.l.b16 %v3210
      %v3283 = vunpack.c.l.b16 %v3211
      %v3284 = vunpack.c.l.b16 %v3212
      %v3285 = vpack.c.b16 %v3250, %v3249
      %v3286 = vpack.c.b16 %v3252, %v3251
      %v3287 = vpack.c.b16 %v3254, %v3253
      %v3288 = vpack.c.b16 %v3256, %v3255
      %v3289 = vpack.c.b16 %v3258, %v3257
      %v3290 = vpack.c.b16 %v3260, %v3259
      %v3291 = vpack.c.b16 %v3262, %v3261
      %v3292 = vpack.c.b16 %v3264, %v3263
      %v3293 = vpack.c.b16 %v3266, %v3265
      %v3294 = vpack.c.b16 %v3268, %v3267
      %v3295 = vpack.c.b16 %v3270, %v3269
      %v3296 = vpack.c.b16 %v3272, %v3271
      %v3297 = vpack.c.b16 %v3274, %v3273
      %v3298 = vpack.c.b16 %v3276, %v3275
      %v3299 = vpack.c.b16 %v3278, %v3277
      %v3300 = vpack.c.b16 %v3280, %v3279
      %v3301 = vpack.c.b16 %v3282, %v3281
      %v3302 = vpack.c.b16 %v3284, %v3283
      %v3322 = vsel %vm2076, %v1946, 0
      %v3325 = vsel %vm2076, %v1947, 0
      %v3328 = vsel %vm2076, %v1948, 0
      %v3331 = vsel %vm2076, %v1949, 0
      %v3334 = vsel %vm2076, %v1950, 0
      %v3337 = vsel %vm2076, %v1951, 0
      %v3340 = vsel %vm2076, %v1952, 0
      %v3342 = vsel %vm2076, 0, 0
      %3344 = vmatprep.subr.bf16.mxu0 0
      %3345 = vmatpush1.bf16.msra.mxu0 %v3285
      %3346 = vmatprep.subr.bf16.mxu0 0
      %3347 = vmatpush1.bf16.msra.mxu0 %v3286
      %3348 = vmatprep.subr.bf16.mxu0 0
      %3349 = vmatpush1.bf16.msra.mxu0 %v3287
      %3350 = vmatprep.subr.bf16.mxu0 0
      %3351 = vmatpush1.bf16.msra.mxu0 %v3288
      %3352 = vmatprep.subr.bf16.mxu0 0
      %3353 = vmatpush1.bf16.msra.mxu0 %v3289
      %3354 = vmatprep.subr.bf16.mxu0 0
      %3355 = vmatpush1.bf16.msra.mxu0 %v3290
      %3356 = vmatprep.subr.bf16.mxu0 0
      %3357 = vmatpush1.bf16.msra.mxu0 %v3291
      %3358 = vmatprep.subr.bf16.mxu0 0
      %3359 = vmatpush1.bf16.msra.mxu0 %v3292
      %3360 = vmatprep.subr.bf16.mxu0 0
      %3361 = vmatpush1.bf16.msra.mxu0 %v3293
      %3362 = vmatprep.subr.bf16.mxu0 0
      %3363 = vmatpush1.bf16.msra.mxu0 %v3294
      %3364 = vmatprep.subr.bf16.mxu0 0
      %3365 = vmatpush1.bf16.msra.mxu0 %v3295
      %3366 = vmatprep.subr.bf16.mxu0 0
      %3367 = vmatpush1.bf16.msra.mxu0 %v3296
      %3368 = vmatprep.subr.bf16.mxu0 0
      %3369 = vmatpush1.bf16.msra.mxu0 %v3297
      %3370 = vmatprep.subr.bf16.mxu0 0
      %3371 = vmatpush1.bf16.msra.mxu0 %v3298
      %3372 = vmatprep.subr.bf16.mxu0 0
      %3373 = vmatpush1.bf16.msra.mxu0 %v3299
      %3374 = vmatprep.subr.bf16.mxu0 0
      %3375 = vmatpush1.bf16.msra.mxu0 %v3300
      %3376 = vmatprep.mubr.bf16.mxu0 %v3154
      %3377 = vmatmul.mubr.bf16.gmra.mrb[0].mxu0 %v3099
      %v3378 = vpop.f32.mrb[0].mxu0
      %v3379 = vadd.f32 0.0, %v3378
      %v3380 = vpop.f32.mrb[0].mxu0
      %v3381 = vpop.f32.mrb[0].mxu0
      %v3382 = vadd.f32 0.0, %v3381
      %v3383 = vpop.f32.mrb[0].mxu0
      %3384 = vmatprep.mubr.bf16.mxu0 %v3157
      %3385 = vmatmul.mubr.bf16.gmra.mrb[0].mxu0 %v3102
      %v3386 = vpop.f32.mrb[0].mxu0
      %v3387 = vadd.f32 0.0, %v3386
      %v3388 = vpop.f32.mrb[0].mxu0
      %v3389 = vpop.f32.mrb[0].mxu0
      %v3390 = vadd.f32 0.0, %v3389
      %v3391 = vpop.f32.mrb[0].mxu0
      %3392 = vmatprep.mubr.bf16.mxu0 %v3160
      %3393 = vmatmul.mubr.bf16.gmra.mrb[0].mxu0 %v3105
      %v3394 = vpop.f32.mrb[0].mxu0
      %v3395 = vadd.f32 0.0, %v3394
      %v3396 = vpop.f32.mrb[0].mxu0
      %v3397 = vpop.f32.mrb[0].mxu0
      %v3398 = vadd.f32 0.0, %v3397
      %v3399 = vpop.f32.mrb[0].mxu0
      %3400 = vmatprep.mubr.bf16.mxu0 %v3163
      %3401 = vmatmul.mubr.bf16.gmra.mrb[0].mxu0 %v3108
      %v3402 = vpop.f32.mrb[0].mxu0
      %v3403 = vadd.f32 0.0, %v3402
      %v3404 = vpop.f32.mrb[0].mxu0
      %v3405 = vpop.f32.mrb[0].mxu0
      %v3406 = vadd.f32 0.0, %v3405
      %v3407 = vpop.f32.mrb[0].mxu0
      %3408 = vmatprep.mubr.bf16.mxu0 %v3166
      %3409 = vmatmul.mubr.bf16.gmra.mrb[0].mxu0 %v3111
      %v3410 = vpop.f32.mrb[0].mxu0
      %v3411 = vadd.f32 0.0, %v3410
      %v3412 = vpop.f32.mrb[0].mxu0
      %v3413 = vpop.f32.mrb[0].mxu0
      %v3414 = vadd.f32 0.0, %v3413
      %v3415 = vpop.f32.mrb[0].mxu0
      %3416 = vmatprep.mubr.bf16.mxu0 %v3169
      %3417 = vmatmul.mubr.bf16.gmra.mrb[0].mxu0 %v3114
      %v3418 = vpop.f32.mrb[0].mxu0
      %v3419 = vadd.f32 0.0, %v3418
      %v3420 = vpop.f32.mrb[0].mxu0
      %v3421 = vpop.f32.mrb[0].mxu0
      %v3422 = vadd.f32 0.0, %v3421
      %v3423 = vpop.f32.mrb[0].mxu0
      %3424 = vmatprep.mubr.bf16.mxu0 %v3172
      %3425 = vmatmul.mubr.bf16.gmra.mrb[0].mxu0 %v3117
      %v3426 = vpop.f32.mrb[0].mxu0
      %v3427 = vadd.f32 0.0, %v3426
      %v3428 = vpop.f32.mrb[0].mxu0
      %v3429 = vpop.f32.mrb[0].mxu0
      %v3430 = vadd.f32 0.0, %v3429
      %v3431 = vpop.f32.mrb[0].mxu0
      %3432 = vmatprep.mubr.bf16.mxu0 %v3175
      %3433 = vmatmul.mubr.bf16.gmra.mrb[0].mxu0 %v3120
      %v3434 = vpop.f32.mrb[0].mxu0
      %v3435 = vadd.f32 0.0, %v3434
      %v3436 = vpop.f32.mrb[0].mxu0
      %v3437 = vpop.f32.mrb[0].mxu0
      %v3438 = vadd.f32 0.0, %v3437
      %v3439 = vpop.f32.mrb[0].mxu0
      %3440 = vdwg.mxu0
      %3441 = vmatprep.subr.bf16.mxu0 0
      %3442 = vmatpush1.bf16.msra.mxu0 %v3301
      %3443 = vmatprep.subr.bf16.mxu0 0
      %3444 = vmatpush1.bf16.msra.mxu0 %v3302
      %3445 = vmatprep.subr.bf16.mxu0 0
      %3446 = vmatpush1.bf16.msra.mxu0 0
      %3447 = vmatprep.subr.bf16.mxu0 0
      %3448 = vmatpush1.bf16.msra.mxu0 0
      %3449 = vmatprep.subr.bf16.mxu0 0
      %3450 = vmatpush1.bf16.msra.mxu0 0
      %3451 = vmatprep.subr.bf16.mxu0 0
      %3452 = vmatpush1.bf16.msra.mxu0 0
      %3453 = vmatprep.subr.bf16.mxu0 0
      %3454 = vmatpush1.bf16.msra.mxu0 0
      %3455 = vmatprep.subr.bf16.mxu0 0
      %3456 = vmatpush1.bf16.msra.mxu0 0
      %3457 = vmatprep.subr.bf16.mxu0 0
      %3458 = vmatpush1.bf16.msra.mxu0 0
      %3459 = vmatprep.subr.bf16.mxu0 0
      %3460 = vmatpush1.bf16.msra.mxu0 0
      %3461 = vmatprep.subr.bf16.mxu0 0
      %3462 = vmatpush1.bf16.msra.mxu0 0
      %3463 = vmatprep.subr.bf16.mxu0 0
      %3464 = vmatpush1.bf16.msra.mxu0 0
      %3465 = vmatprep.subr.bf16.mxu0 0
      %3466 = vmatpush1.bf16.msra.mxu0 0
      %3467 = vmatprep.subr.bf16.mxu0 0
      %3468 = vmatpush1.bf16.msra.mxu0 0
      %3469 = vmatprep.subr.bf16.mxu0 0
      %3470 = vmatpush1.bf16.msra.mxu0 0
      %3471 = vmatprep.subr.bf16.mxu0 0
      %3472 = vmatpush1.bf16.msra.mxu0 0
      %3473 = vmatprep.mubr.bf16.mxu0 0
      %3474 = vmatmul.mubr.bf16.gmra.mrb[0].mxu0 %v3322
      %v3475 = vpop.f32.mrb[0].mxu0
      %v3476 = vadd.f32 %v3379, %v3475
      %v3477 = vpop.f32.mrb[0].mxu0
      %v3478 = vpop.f32.mrb[0].mxu0
      %v3479 = vadd.f32 %v3382, %v3478
      %v3480 = vpop.f32.mrb[0].mxu0
      %3481 = vmatprep.mubr.bf16.mxu0 0
      %3482 = vmatmul.mubr.bf16.gmra.mrb[0].mxu0 %v3325
      %v3483 = vpop.f32.mrb[0].mxu0
      %v3484 = vadd.f32 %v3387, %v3483
      %v3485 = vpop.f32.mrb[0].mxu0
      %v3486 = vpop.f32.mrb[0].mxu0
      %v3487 = vadd.f32 %v3390, %v3486
      %v3488 = vpop.f32.mrb[0].mxu0
      %3489 = vmatprep.mubr.bf16.mxu0 0
      %3490 = vmatmul.mubr.bf16.gmra.mrb[0].mxu0 %v3328
      %v3491 = vpop.f32.mrb[0].mxu0
      %v3492 = vadd.f32 %v3395, %v3491
      %v3493 = vpop.f32.mrb[0].mxu0
      %v3494 = vpop.f32.mrb[0].mxu0
      %v3495 = vadd.f32 %v3398, %v3494
      %v3496 = vpop.f32.mrb[0].mxu0
      %3497 = vmatprep.mubr.bf16.mxu0 0
      %3498 = vmatmul.mubr.bf16.gmra.mrb[0].mxu0 %v3331
      %v3499 = vpop.f32.mrb[0].mxu0
      %v3500 = vadd.f32 %v3403, %v3499
      %v3501 = vpop.f32.mrb[0].mxu0
      %v3502 = vpop.f32.mrb[0].mxu0
      %v3503 = vadd.f32 %v3406, %v3502
      %v3504 = vpop.f32.mrb[0].mxu0
      %3505 = vmatprep.mubr.bf16.mxu0 0
      %3506 = vmatmul.mubr.bf16.gmra.mrb[0].mxu0 %v3334
      %v3507 = vpop.f32.mrb[0].mxu0
      %v3508 = vadd.f32 %v3411, %v3507
      %v3509 = vpop.f32.mrb[0].mxu0
      %v3510 = vpop.f32.mrb[0].mxu0
      %v3511 = vadd.f32 %v3414, %v3510
      %v3512 = vpop.f32.mrb[0].mxu0
      %3513 = vmatprep.mubr.bf16.mxu0 0
      %3514 = vmatmul.mubr.bf16.gmra.mrb[0].mxu0 %v3337
      %v3515 = vpop.f32.mrb[0].mxu0
      %v3516 = vadd.f32 %v3419, %v3515
      %v3517 = vpop.f32.mrb[0].mxu0
      %v3518 = vpop.f32.mrb[0].mxu0
      %v3519 = vadd.f32 %v3422, %v3518
      %v3520 = vpop.f32.mrb[0].mxu0
      %3521 = vmatprep.mubr.bf16.mxu0 0
      %3522 = vmatmul.mubr.bf16.gmra.mrb[0].mxu0 %v3340
      %v3523 = vpop.f32.mrb[0].mxu0
      %v3524 = vadd.f32 %v3427, %v3523
      %v3525 = vpop.f32.mrb[0].mxu0
      %v3526 = vpop.f32.mrb[0].mxu0
      %v3527 = vadd.f32 %v3430, %v3526
      %v3528 = vpop.f32.mrb[0].mxu0
      %3529 = vmatprep.mubr.bf16.mxu0 0
      %3530 = vmatmul.mubr.bf16.gmra.mrb[0].mxu0 %v3342
      %v3531 = vpop.f32.mrb[0].mxu0
      %v3532 = vadd.f32 %v3435, %v3531
      %v3533 = vpop.f32.mrb[0].mxu0
      %v3534 = vpop.f32.mrb[0].mxu0
      %v3535 = vadd.f32 %v3438, %v3534
      %v3536 = vpop.f32.mrb[0].mxu0
      %3537 = vdwg.mxu0
      %v3538 = vld [vmem:[%s5] sm:$0x1]
      %v3540 = vlaneseq
      %v3541 = vshrl.u32 %v3540, 7
      %v3542 = vsub.s32 0, %v3541
      %v3543 = vrot.slane %v3538, %v3542
      %v3545 = vmul.f32 %v3476, %v3543
      %v3546 = vmul.f32 %v3479, %v3543
      %v3547 = vmul.f32 %v3484, %v3543
      %v3548 = vmul.f32 %v3487, %v3543
      %v3549 = vmul.f32 %v3492, %v3543
      %v3550 = vmul.f32 %v3495, %v3543
      %v3551 = vmul.f32 %v3500, %v3543
      %v3552 = vmul.f32 %v3503, %v3543
      %v3553 = vmul.f32 %v3508, %v3543
      %v3554 = vmul.f32 %v3511, %v3543
      %v3555 = vmul.f32 %v3516, %v3543
      %v3556 = vmul.f32 %v3519, %v3543
      %v3557 = vmul.f32 %v3524, %v3543
      %v3558 = vmul.f32 %v3527, %v3543
      %v3559 = vmul.f32 %v3532, %v3543
      %v3560 = vmul.f32 %v3535, %v3543
      %v3561 = vld [vmem:[%s6] sm:$0x1]
      %v3563 = vlaneseq
      %v3564 = vshrl.u32 %v3563, 7
      %v3565 = vsub.s32 0, %v3564
      %v3566 = vrot.slane %v3561, %v3565
      %v3568 = vadd.f32 %v3545, %v3566
      %v3569 = vadd.f32 %v3546, %v3566
      %v3570 = vadd.f32 %v3547, %v3566
      %v3571 = vadd.f32 %v3548, %v3566
      %v3572 = vadd.f32 %v3549, %v3566
      %v3573 = vadd.f32 %v3550, %v3566
      %v3574 = vadd.f32 %v3551, %v3566
      %v3575 = vadd.f32 %v3552, %v3566
      %v3576 = vadd.f32 %v3553, %v3566
      %v3577 = vadd.f32 %v3554, %v3566
      %v3578 = vadd.f32 %v3555, %v3566
      %v3579 = vadd.f32 %v3556, %v3566
      %v3580 = vadd.f32 %v3557, %v3566
      %v3581 = vadd.f32 %v3558, %v3566
      %v3582 = vadd.f32 %v3559, %v3566
      %v3583 = vadd.f32 %v3560, %v3566
      %v3584 = vmax.f32 %v3568, 0.0
      %v3585 = vmax.f32 %v3569, 0.0
      %v3586 = vmax.f32 %v3570, 0.0
      %v3587 = vmax.f32 %v3571, 0.0
      %v3588 = vmax.f32 %v3572, 0.0
      %v3589 = vmax.f32 %v3573, 0.0
      %v3590 = vmax.f32 %v3574, 0.0
      %v3591 = vmax.f32 %v3575, 0.0
      %v3592 = vmax.f32 %v3576, 0.0
      %v3593 = vmax.f32 %v3577, 0.0
      %v3594 = vmax.f32 %v3578, 0.0
      %v3595 = vmax.f32 %v3579, 0.0
      %v3596 = vmax.f32 %v3580, 0.0
      %v3597 = vmax.f32 %v3581, 0.0
      %v3598 = vmax.f32 %v3582, 0.0
      %v3599 = vmax.f32 %v3583, 0.0
      %v3600 = vpack.c.bf16 %v3585, %v3584
      %v3601 = vpack.c.bf16 %v3587, %v3586
      %v3602 = vpack.c.bf16 %v3589, %v3588
      %v3603 = vpack.c.bf16 %v3591, %v3590
      %v3604 = vpack.c.bf16 %v3593, %v3592
      %v3605 = vpack.c.bf16 %v3595, %v3594
      %v3606 = vpack.c.bf16 %v3597, %v3596
      %v3607 = vpack.c.bf16 %v3599, %v3598
      %v3608 = vld [vmem:[%s7] sm:$0xf]
      %v3609 = vld [vmem:[%s7 + $0x4] sm:$0xf]
      %v3610 = vld [vmem:[%s7 + $0x8] sm:$0xf]
      %v3611 = vld [vmem:[%s7 + $0xc] sm:$0xf]
      %v3616 = vunpack.c.l.b16 %v3608
      %v3617 = vunpack.c.l.b16 %v3609
      %v3618 = vunpack.c.l.b16 %v3610
      %v3619 = vunpack.c.l.b16 %v3611
      %v3620 = vpack.c.b16 %v3617, %v3616
      %v3621 = vpack.c.b16 %v3619, %v3618
      %v3625 = vsel %vm2076, %v3600, 0
      %v3628 = vsel %vm2076, %v3601, 0
      %v3631 = vsel %vm2076, %v3602, 0
      %v3634 = vsel %vm2076, %v3603, 0
      %v3637 = vsel %vm2076, %v3604, 0
      %v3640 = vsel %vm2076, %v3605, 0
      %v3643 = vsel %vm2076, %v3606, 0
      %v3646 = vsel %vm2076, %v3607, 0
      %3648 = vmatprep.subr.bf16.mxu0 0
      %3649 = vmatpush1.bf16.msra.mxu0 %v3620
      %3650 = vmatprep.subr.bf16.mxu0 0
      %3651 = vmatpush1.bf16.msra.mxu0 %v3621
      %3652 = vmatprep.subr.bf16.mxu0 0
      %3653 = vmatpush1.bf16.msra.mxu0 0
      %3654 = vmatprep.subr.bf16.mxu0 0
      %3655 = vmatpush1.bf16.msra.mxu0 0
      %3656 = vmatprep.subr.bf16.mxu0 0
      %3657 = vmatpush1.bf16.msra.mxu0 0
      %3658 = vmatprep.subr.bf16.mxu0 0
      %3659 = vmatpush1.bf16.msra.mxu0 0
      %3660 = vmatprep.subr.bf16.mxu0 0
      %3661 = vmatpush1.bf16.msra.mxu0 0
      %3662 = vmatprep.subr.bf16.mxu0 0
      %3663 = vmatpush1.bf16.msra.mxu0 0
      %3664 = vmatprep.subr.bf16.mxu0 0
      %3665 = vmatpush1.bf16.msra.mxu0 0
      %3666 = vmatprep.subr.bf16.mxu0 0
      %3667 = vmatpush1.bf16.msra.mxu0 0
      %3668 = vmatprep.subr.bf16.mxu0 0
      %3669 = vmatpush1.bf16.msra.mxu0 0
      %3670 = vmatprep.subr.bf16.mxu0 0
      %3671 = vmatpush1.bf16.msra.mxu0 0
      %3672 = vmatprep.subr.bf16.mxu0 0
      %3673 = vmatpush1.bf16.msra.mxu0 0
      %3674 = vmatprep.subr.bf16.mxu0 0
      %3675 = vmatpush1.bf16.msra.mxu0 0
      %3676 = vmatprep.subr.bf16.mxu0 0
      %3677 = vmatpush1.bf16.msra.mxu0 0
      %3678 = vmatprep.subr.bf16.mxu0 0
      %3679 = vmatpush1.bf16.msra.mxu0 0
      %3680 = vmatprep.mubr.bf16.mxu0 0
      %3681 = vmatmul.mubr.bf16.gmra.mrb[0].mxu0 %v3625
      %v3682 = vpop.f32.mrb[0].mxu0
      %v3683 = vadd.f32 0.0, %v3682
      %v3684 = vpop.f32.mrb[0].mxu0
      %v3685 = vpop.f32.mrb[0].mxu0
      %v3686 = vadd.f32 0.0, %v3685
      %v3687 = vpop.f32.mrb[0].mxu0
      %3688 = vmatprep.mubr.bf16.mxu0 0
      %3689 = vmatmul.mubr.bf16.gmra.mrb[0].mxu0 %v3628
      %v3690 = vpop.f32.mrb[0].mxu0
      %v3691 = vadd.f32 0.0, %v3690
      %v3692 = vpop.f32.mrb[0].mxu0
      %v3693 = vpop.f32.mrb[0].mxu0
      %v3694 = vadd.f32 0.0, %v3693
      %v3695 = vpop.f32.mrb[0].mxu0
      %3696 = vmatprep.mubr.bf16.mxu0 0
      %3697 = vmatmul.mubr.bf16.gmra.mrb[0].mxu0 %v3631
      %v3698 = vpop.f32.mrb[0].mxu0
      %v3699 = vadd.f32 0.0, %v3698
      %v3700 = vpop.f32.mrb[0].mxu0
      %v3701 = vpop.f32.mrb[0].mxu0
      %v3702 = vadd.f32 0.0, %v3701
      %v3703 = vpop.f32.mrb[0].mxu0
      %3704 = vmatprep.mubr.bf16.mxu0 0
      %3705 = vmatmul.mubr.bf16.gmra.mrb[0].mxu0 %v3634
      %v3706 = vpop.f32.mrb[0].mxu0
      %v3707 = vadd.f32 0.0, %v3706
      %v3708 = vpop.f32.mrb[0].mxu0
      %v3709 = vpop.f32.mrb[0].mxu0
      %v3710 = vadd.f32 0.0, %v3709
      %v3711 = vpop.f32.mrb[0].mxu0
      %3712 = vmatprep.mubr.bf16.mxu0 0
      %3713 = vmatmul.mubr.bf16.gmra.mrb[0].mxu0 %v3637
      %v3714 = vpop.f32.mrb[0].mxu0
      %v3715 = vadd.f32 0.0, %v3714
      %v3716 = vpop.f32.mrb[0].mxu0
      %v3717 = vpop.f32.mrb[0].mxu0
      %v3718 = vadd.f32 0.0, %v3717
      %v3719 = vpop.f32.mrb[0].mxu0
      %3720 = vmatprep.mubr.bf16.mxu0 0
      %3721 = vmatmul.mubr.bf16.gmra.mrb[0].mxu0 %v3640
      %v3722 = vpop.f32.mrb[0].mxu0
      %v3723 = vadd.f32 0.0, %v3722
      %v3724 = vpop.f32.mrb[0].mxu0
      %v3725 = vpop.f32.mrb[0].mxu0
      %v3726 = vadd.f32 0.0, %v3725
      %v3727 = vpop.f32.mrb[0].mxu0
      %3728 = vmatprep.mubr.bf16.mxu0 0
      %3729 = vmatmul.mubr.bf16.gmra.mrb[0].mxu0 %v3643
      %v3730 = vpop.f32.mrb[0].mxu0
      %v3731 = vadd.f32 0.0, %v3730
      %v3732 = vpop.f32.mrb[0].mxu0
      %v3733 = vpop.f32.mrb[0].mxu0
      %v3734 = vadd.f32 0.0, %v3733
      %v3735 = vpop.f32.mrb[0].mxu0
      %3736 = vmatprep.mubr.bf16.mxu0 0
      %3737 = vmatmul.mubr.bf16.gmra.mrb[0].mxu0 %v3646
      %v3738 = vpop.f32.mrb[0].mxu0
      %v3739 = vadd.f32 0.0, %v3738
      %v3740 = vpop.f32.mrb[0].mxu0
      %v3741 = vpop.f32.mrb[0].mxu0
      %v3742 = vadd.f32 0.0, %v3741
      %v3743 = vpop.f32.mrb[0].mxu0
      %3744 = vdwg.mxu0
      %v3745 = vld [vmem:[%s8] sm:$0x1]
      %v3747 = vlaneseq
      %v3748 = vshrl.u32 %v3747, 7
      %v3749 = vsub.s32 0, %v3748
      %v3750 = vrot.slane %v3745, %v3749
      %v3752 = vmul.f32 %v3683, %v3750
      %v3753 = vmul.f32 %v3686, %v3750
      %v3754 = vmul.f32 %v3691, %v3750
      %v3755 = vmul.f32 %v3694, %v3750
      %v3756 = vmul.f32 %v3699, %v3750
      %v3757 = vmul.f32 %v3702, %v3750
      %v3758 = vmul.f32 %v3707, %v3750
      %v3759 = vmul.f32 %v3710, %v3750
      %v3760 = vmul.f32 %v3715, %v3750
      %v3761 = vmul.f32 %v3718, %v3750
      %v3762 = vmul.f32 %v3723, %v3750
      %v3763 = vmul.f32 %v3726, %v3750
      %v3764 = vmul.f32 %v3731, %v3750
      %v3765 = vmul.f32 %v3734, %v3750
      %v3766 = vmul.f32 %v3739, %v3750
      %v3767 = vmul.f32 %v3742, %v3750
      %v3768 = vld [vmem:[%s9] sm:$0x1]
      %v3770 = vlaneseq
      %v3771 = vshrl.u32 %v3770, 7
      %v3772 = vsub.s32 0, %v3771
      %v3773 = vrot.slane %v3768, %v3772
      %v3775 = vadd.f32 %v3752, %v3773
      %v3776 = vadd.f32 %v3753, %v3773
      %v3777 = vadd.f32 %v3754, %v3773
      %v3778 = vadd.f32 %v3755, %v3773
      %v3779 = vadd.f32 %v3756, %v3773
      %v3780 = vadd.f32 %v3757, %v3773
      %v3781 = vadd.f32 %v3758, %v3773
      %v3782 = vadd.f32 %v3759, %v3773
      %v3783 = vadd.f32 %v3760, %v3773
      %v3784 = vadd.f32 %v3761, %v3773
      %v3785 = vadd.f32 %v3762, %v3773
      %v3786 = vadd.f32 %v3763, %v3773
      %v3787 = vadd.f32 %v3764, %v3773
      %v3788 = vadd.f32 %v3765, %v3773
      %v3789 = vadd.f32 %v3766, %v3773
      %v3790 = vadd.f32 %v3767, %v3773
      %v3791 = vunpack.c.l.bf16 %v379
      %v3792 = vunpack.c.l.bf16 %v380
      %v3793 = vunpack.c.l.bf16 %v381
      %v3794 = vunpack.c.l.bf16 %v382
      %v3795 = vunpack.c.l.bf16 %v383
      %v3796 = vunpack.c.l.bf16 %v384
      %v3797 = vunpack.c.l.bf16 %v385
      %v3798 = vunpack.c.l.bf16 %v386
      %v3799 = vunpack.c.l.bf16 %v387
      %v3800 = vunpack.c.l.bf16 %v388
      %v3801 = vunpack.c.l.bf16 %v389
      %v3802 = vunpack.c.l.bf16 %v390
      %v3803 = vunpack.c.l.bf16 %v391
      %v3804 = vunpack.c.l.bf16 %v392
      %v3805 = vunpack.c.l.bf16 %v393
      %v3806 = vunpack.c.l.bf16 %v394
      %v3807 = vadd.f32 %v3775, %v3791
      %v3808 = vadd.f32 %v3776, %v3792
      %v3809 = vadd.f32 %v3777, %v3793
      %v3810 = vadd.f32 %v3778, %v3794
      %v3811 = vadd.f32 %v3779, %v3795
      %v3812 = vadd.f32 %v3780, %v3796
      %v3813 = vadd.f32 %v3781, %v3797
      %v3814 = vadd.f32 %v3782, %v3798
      %v3815 = vadd.f32 %v3783, %v3799
      %v3816 = vadd.f32 %v3784, %v3800
      %v3817 = vadd.f32 %v3785, %v3801
      %v3818 = vadd.f32 %v3786, %v3802
      %v3819 = vadd.f32 %v3787, %v3803
      %v3820 = vadd.f32 %v3788, %v3804
      %v3821 = vadd.f32 %v3789, %v3805
      %v3822 = vadd.f32 %v3790, %v3806
      %v3823 = vmax.f32 %v3807, 0.0
      %v3824 = vmax.f32 %v3808, 0.0
      %v3825 = vmax.f32 %v3809, 0.0
      %v3826 = vmax.f32 %v3810, 0.0
      %v3827 = vmax.f32 %v3811, 0.0
      %v3828 = vmax.f32 %v3812, 0.0
      %v3829 = vmax.f32 %v3813, 0.0
      %v3830 = vmax.f32 %v3814, 0.0
      %v3831 = vmax.f32 %v3815, 0.0
      %v3832 = vmax.f32 %v3816, 0.0
      %v3833 = vmax.f32 %v3817, 0.0
      %v3834 = vmax.f32 %v3818, 0.0
      %v3835 = vmax.f32 %v3819, 0.0
      %v3836 = vmax.f32 %v3820, 0.0
      %v3837 = vmax.f32 %v3821, 0.0
      %v3838 = vmax.f32 %v3822, 0.0
      %v3839 = vpack.c.bf16 %v3824, %v3823
      %v3840 = vpack.c.bf16 %v3826, %v3825
      %v3841 = vpack.c.bf16 %v3828, %v3827
      %v3842 = vpack.c.bf16 %v3830, %v3829
      %v3843 = vpack.c.bf16 %v3832, %v3831
      %v3844 = vpack.c.bf16 %v3834, %v3833
      %v3845 = vpack.c.bf16 %v3836, %v3835
      %v3846 = vpack.c.bf16 %v3838, %v3837
      %v3855 = vunpack.c.l.b16 %v3839
      %v3856 = vunpack.c.h.b16 %v3839
      %v3857 = vunpack.c.l.b16 %v3840
      %v3858 = vunpack.c.h.b16 %v3840
      %v3859 = vunpack.c.l.b16 %v3841
      %v3860 = vunpack.c.h.b16 %v3841
      %v3861 = vunpack.c.l.b16 %v3842
      %v3862 = vunpack.c.h.b16 %v3842
      %v3863 = vunpack.c.l.b16 %v3843
      %v3864 = vunpack.c.h.b16 %v3843
      %v3865 = vunpack.c.l.b16 %v3844
      %v3866 = vunpack.c.h.b16 %v3844
      %v3867 = vunpack.c.l.b16 %v3845
      %v3868 = vunpack.c.h.b16 %v3845
      %v3869 = vunpack.c.l.b16 %v3846
      %v3870 = vunpack.c.h.b16 %v3846
      %v3871 = vpack.c.b16 %v3855, %v3855
      %v3872 = vpack.c.b16 %v3856, %v3856
      %v3873 = vpack.c.b16 %v3857, %v3857
      %v3874 = vpack.c.b16 %v3858, %v3858
      %v3875 = vpack.c.b16 %v3859, %v3859
      %v3876 = vpack.c.b16 %v3860, %v3860
      %v3877 = vpack.c.b16 %v3861, %v3861
      %v3878 = vpack.c.b16 %v3862, %v3862
      %v3879 = vpack.c.b16 %v3863, %v3863
      %v3880 = vpack.c.b16 %v3864, %v3864
      %v3881 = vpack.c.b16 %v3865, %v3865
      %v3882 = vpack.c.b16 %v3866, %v3866
      %v3883 = vpack.c.b16 %v3867, %v3867
      %v3884 = vpack.c.b16 %v3868, %v3868
      %v3885 = vpack.c.b16 %v3869, %v3869
      %v3886 = vpack.c.b16 %v3870, %v3870
      %3903 = vst [vmem:[%s359 + $0x40] sm:$0xf] %v3871
      %3904 = vst [vmem:[%s359 + $0x44] sm:$0xf] %v3872
      %3905 = vst [vmem:[%s359 + $0x48] sm:$0xf] %v3873
      %3906 = vst [vmem:[%s359 + $0x4c] sm:$0xf] %v3874
      %3907 = vst [vmem:[%s359 + $0x50] sm:$0xf] %v3875
      %3908 = vst [vmem:[%s359 + $0x54] sm:$0xf] %v3876
      %3909 = vst [vmem:[%s359 + $0x58] sm:$0xf] %v3877
      %3910 = vst [vmem:[%s359 + $0x5c] sm:$0xf] %v3878
      %3911 = vst [vmem:[%s359 + $0x60] sm:$0xf] %v3879
      %3912 = vst [vmem:[%s359 + $0x64] sm:$0xf] %v3880
      %3913 = vst [vmem:[%s359 + $0x68] sm:$0xf] %v3881
      %3914 = vst [vmem:[%s359 + $0x6c] sm:$0xf] %v3882
      %3915 = vst [vmem:[%s359 + $0x70] sm:$0xf] %v3883
      %3916 = vst [vmem:[%s359 + $0x74] sm:$0xf] %v3884
      %3917 = vst [vmem:[%s359 + $0x78] sm:$0xf] %v3885
      %3918 = vst [vmem:[%s359 + $0x7c] sm:$0xf] %v3886
      %p3919 = scmp.lt.s32.totalorder %s21, 1
      %s3920 = scalar_select %p3919, %s21, 1
      %s3921 = smul.addr %s3920, 32
      %s3922 = smul.addr %s3921, 4
      %s3923 = scalar_lea.vmem %s10, %s3922
      // Predicated region
      $region61: #{bottleneck_forward.1} parent=59 // pred_check
        %p3924 = pneg %p254
      $region62: #{bottleneck_forward.1} parent=59 // pred_check_branch
        %3926 = sbr.rel (%p3924) target = $region64
      $region63: #{bottleneck_forward.1} parent=59 // pred_region
        _
      $region64: #{bottleneck_forward.1} parent=59 // pred_fallthru
        _
    $region60: #{bottleneck_forward.1} parent=5 // pred_fallthru
      _
    %p3927 = scmp.le.s32.totalorder 2, %s16
    // Predicated region
    $region65: #{bottleneck_forward.1} parent=5 // pred_check
      %p3928 = pneg %p3927
    $region66: #{bottleneck_forward.1} parent=5 // pred_check_branch
      %3930 = sbr.rel (%p3928) target = $region68
    $region67: #{bottleneck_forward.1} parent=5 // pred_region
      %s3931 = ssub.s32 %s16, 2
      // Predicated region
      $region69: #{bottleneck_forward.1} parent=67 // pred_check
        %p3932 = pneg %p260
      $region70: #{bottleneck_forward.1} parent=67 // pred_check_branch
        %3934 = sbr.rel (%p3932) target = $region72
      $region71: #{bottleneck_forward.1} parent=67 // pred_region
        %p3935 = scmp.lt.s32.totalorder %s22, 1
        %s3936 = scalar_select %p3935, %s22, 1
        %s3937 = smul.addr %s3936, 32
        %s3938 = smul.addr %s3937, 4
        %s3939 = scalar_lea.vmem %s10, %s3938
      $region72: #{bottleneck_forward.1} parent=67 // pred_fallthru
        _
    $region68: #{bottleneck_forward.1} parent=5 // pred_fallthru
      _
  $region6: #{bottleneck_forward.1} parent=0 // loop_footer
    %s20 = sadd.s32 1, %s16
  $region7: #{bottleneck_forward.1} parent=0 // loop_footer_branch
    %15 = sbr.rel target = $region3
  $region8: #{bottleneck_forward.1} parent=0 // loop_exit
    _

</llo_original>
